<compile_context>
chip_gen: v7x
topology: tpu7x:2x2x1
jax: 0.10.0
libtpu: 0.0.40
codegen_flags: <defaults>
</compile_context>

<pallas_src>
import math

import jax
import jax.numpy as jnp
from jax.experimental import pallas as pl
from jax.experimental.pallas import tpu as pltpu


# ---------------------------------------------------------------------------
# Fused kernel
# ---------------------------------------------------------------------------
def _make_kernel(kernel_size, block_meta, conv_len):
    """block_meta: tuple of (dilation, has_downsample) per TemporalConvBlock."""
    k = kernel_size
    L = conv_len

    def kernel(x_ref, *refs):
        o_ref = refs[-1]
        p = refs[:-1]

        # Shift matrices: S_s[i, i + s] = 1, so (v @ S_s)[:, t] = v[:, t - s]
        # (zeros for t < s).  Implemented as MXU matmuls — unambiguous causal
        # semantics and robust lowering for any (unaligned) shift amount.
        # TODO(synk): for long sequences replace with a pltpu.roll + iota-mask
        #             lane shift to avoid the extra L x L matmul per tap.
        row = jax.lax.broadcasted_iota(jnp.int32, (L, L), 0)
        col = jax.lax.broadcasted_iota(jnp.int32, (L, L), 1)
        shift_mats = {}

        def shift_right(v, s):
            if s == 0:
                return v
            if s not in shift_mats:  # build each distinct shift matrix once
                shift_mats[s] = jnp.where(col - row == s, 1.0, 0.0)
            return jnp.dot(v, shift_mats[s], preferred_element_type=jnp.float32)

        def causal_conv(v, w_ref, b_ref, dilation):
            # v: (C_in, L) f32; w_ref: (k, C_out, C_in); b_ref: (C_out, 1).
            c_out = w_ref.shape[1]
            acc = jnp.zeros((c_out, L), jnp.float32)
            for j in range(k):  # static unroll over the k taps
                acc = acc + jnp.dot(
                    w_ref[j], shift_right(v, (k - 1 - j) * dilation),
                    preferred_element_type=jnp.float32)
            return acc + b_ref[...]

        a = x_ref[0].astype(jnp.float32)                          # (T, S)

        # nn.Linear(input_size -> output_size) over the State axis.
        a = jnp.dot(a, p[0][...], preferred_element_type=jnp.float32) + p[1][...]

        idx = 2
        for dilation, has_ds in block_meta:
            w1, b1, w2, b2 = p[idx], p[idx + 1], p[idx + 2], p[idx + 3]
            idx += 4
            h = jnp.maximum(causal_conv(a, w1, b1, dilation), 0.0)
            # Dropout: identity in eval mode.
            h = jnp.maximum(causal_conv(h, w2, b2, dilation), 0.0)
            if has_ds:  # 1x1 Conv1d downsample on the residual path
                wd, bd = p[idx], p[idx + 1]
                idx += 2
                res = jnp.dot(wd[...], a, preferred_element_type=jnp.float32) + bd[...]
            else:
                res = a
            a = jnp.maximum(h + res, 0.0)

        o_ref[0] = a.astype(o_ref.dtype)

    return kernel


# ---------------------------------------------------------------------------
# Wrapper
# ---------------------------------------------------------------------------
def temporal_conv_net_forward(x, params, *, kernel_size):
    """Pallas forward pass.  x: (*, Time_Channels, State) float32."""
    old_shape = x.shape
    xb = x.reshape((-1,) + old_shape[-2:])                        # (B, T, S)
    B, T, S = xb.shape
    H = params["w_lin"].shape[1]                                  # output_size
    L = H                                                         # chomp keeps length

    # Pack weights into the pallas_call input list (kernel-friendly layouts).
    inputs = [xb, params["w_lin"], params["b_lin"].reshape(1, H)]
    block_meta = []
    for blk in params["blocks"]:
        w1 = jnp.transpose(blk["w1"], (2, 0, 1))                  # (k, C_out, C_in)
        w2 = jnp.transpose(blk["w2"], (2, 0, 1))
        inputs += [w1, blk["b1"].reshape(-1, 1), w2, blk["b2"].reshape(-1, 1)]
        has_ds = blk["wd"] is not None
        if has_ds:
            inputs += [blk["wd"][:, :, 0], blk["bd"].reshape(-1, 1)]
        block_meta.append((blk["dilation"], has_ds))
    block_meta = tuple(block_meta)

    c_last = params["blocks"][-1]["w2"].shape[0]

    def _const_spec(arr):  # whole-array block, resident across the grid
        return pl.BlockSpec(arr.shape, lambda b, _n=arr.ndim: (0,) * _n)

    in_specs = [pl.BlockSpec((1, T, S), lambda b: (b, 0, 0))]
    in_specs += [_const_spec(a) for a in inputs[1:]]

    out = pl.pallas_call(
        _make_kernel(kernel_size, block_meta, L),
        out_shape=jax.ShapeDtypeStruct((B, c_last, L), x.dtype),
        grid_spec=pltpu.PrefetchScalarGridSpec(
            num_scalar_prefetch=0,
            grid=(B,),
            in_specs=in_specs,
            out_specs=pl.BlockSpec((1, c_last, L), lambda b: (b, 0, 0)),
        ),
        compiler_params=pltpu.CompilerParams(
            dimension_semantics=("parallel",),       # batch across TCs (v7x)
            vmem_limit_bytes=32 * 1024 * 1024,       # weights+acts are << this
        ),
    )(*inputs)

    return out.reshape(old_shape[:-2] + (c_last, L))


# ---------------------------------------------------------------------------
# Pure-JAX reference (independent formulation via conv_general_dilated)
# ---------------------------------------------------------------------------
def _conv1d_causal_ref(a, w, b, dilation):
    """PyTorch Conv1d(padding=(k-1)*d, dilation=d) + Chomp1d.  a: (B, C, L)."""
    ks = w.shape[-1]
    pad = (ks - 1) * dilation
    y = jax.lax.conv_general_dilated(
        a, w, window_strides=(1,), padding=[(pad, pad)],
        rhs_dilation=(dilation,), dimension_numbers=("NCH", "OIH", "NCH"))
    return y[:, :, : a.shape[-1]] + b[None, :, None]


def temporal_conv_net_ref(x, params, *, kernel_size):
    old_shape = x.shape
    a = x.reshape((-1,) + old_shape[-2:])
    a = jnp.einsum("bts,sh->bth", a, params["w_lin"]) + params["b_lin"]
    for blk in params["blocks"]:
        d = blk["dilation"]
        h = jax.nn.relu(_conv1d_causal_ref(a, blk["w1"], blk["b1"], d))
        h = jax.nn.relu(_conv1d_causal_ref(h, blk["w2"], blk["b2"], d))
        res = a if blk["wd"] is None else _conv1d_causal_ref(a, blk["wd"], blk["bd"], 1)
        a = jax.nn.relu(h + res)
    return a.reshape(old_shape[:-2] + a.shape[-2:])


# ---------------------------------------------------------------------------
# Deterministic parameter init (no checkpoint; layouts match PyTorch modules)
# ---------------------------------------------------------------------------
def init_params(key, *, input_size, output_size, num_channels, kernel_size):
    chans = list(num_channels) + [output_size]
    keys = iter(jax.random.split(key, 2 + 6 * (len(chans) - 1)))

    def nrm(shape, fan_in):
        return jax.random.normal(next(keys), shape, jnp.float32) / math.sqrt(fan_in)

    params = {
        # stored as (in, out): equivalent to PyTorch's x @ W.T with W (out, in)
        "w_lin": nrm((input_size, output_size), input_size),
        "b_lin": nrm((output_size,), 1.0) * 0.1,
        "blocks": [],
    }
    for i in range(len(chans) - 1):
        c_in, c_out = chans[i], chans[i + 1]
        blk = {
            "dilation": 2 ** i,
            "w1": nrm((c_out, c_in, kernel_size), c_in * kernel_size),
            "b1": nrm((c_out,), 1.0) * 0.1,
            "w2": nrm((c_out, c_out, kernel_size), c_out * kernel_size),
            "b2": nrm((c_out,), 1.0) * 0.1,
            "wd": None,
            "bd": None,
        }
        if c_in != c_out:
            blk["wd"] = nrm((c_out, c_in, 1), c_in)
            blk["bd"] = nrm((c_out,), 1.0) * 0.1
        params["blocks"].append(blk)
    return params


if __name__ == "__main__":
    # TemporalConvNet(input_size, output_size, num_channels, kernel_size, dropout):
    # the Conv1d channel dim is the Time_Channels axis (so num_channels[0] must
    # equal time_len) and the conv length is output_size (chosen = 128 so the
    # lane dimension is dense).
    time_len = 8                 # Time_Channels (= in-channels of block 0)
    input_size = 32              # State (acted on by the leading nn.Linear)
    output_size = 128            # conv length / final channel count
    num_channels = [8, 16, 16]   # blocks: 8->16 (d=1), 16->16 (d=2), 16->128 (d=4)
    kernel_size = 3
    batch = 2

    key = jax.random.PRNGKey(0)
    kp, kx = jax.random.split(key)
    params = init_params(kp, input_size=input_size, output_size=output_size,
                         num_channels=num_channels, kernel_size=kernel_size)
    x = jax.random.normal(kx, (batch, time_len, input_size), jnp.float32)

    y = temporal_conv_net_forward(x, params, kernel_size=kernel_size)
    jax.block_until_ready(y)

    y_ref = temporal_conv_net_ref(x, params, kernel_size=kernel_size)
    jax.block_until_ready(y_ref)

    assert y.shape == y_ref.shape == (batch, output_size, output_size), y.shape
    err = float(jnp.max(jnp.abs(y - y_ref)) / (jnp.max(jnp.abs(y_ref)) + 1e-6))
    assert err < 3e-2, f"mismatch vs reference: rel max err = {err}"

    print("KERNEL_OK")
</pallas_src>

<mosaic_0001>
module attributes {stable_mosaic.version = 11 : i64} {
  func.func @kernel(%arg0: i32, %arg1: memref<1x8x32xf32, #tpu.memory_space<vmem>>, %arg2: memref<32x128xf32, #tpu.memory_space<vmem>>, %arg3: memref<1x128xf32, #tpu.memory_space<vmem>>, %arg4: memref<3x16x8xf32, #tpu.memory_space<vmem>>, %arg5: memref<16x1xf32, #tpu.memory_space<vmem>>, %arg6: memref<3x16x16xf32, #tpu.memory_space<vmem>>, %arg7: memref<16x1xf32, #tpu.memory_space<vmem>>, %arg8: memref<16x8xf32, #tpu.memory_space<vmem>>, %arg9: memref<16x1xf32, #tpu.memory_space<vmem>>, %arg10: memref<3x16x16xf32, #tpu.memory_space<vmem>>, %arg11: memref<16x1xf32, #tpu.memory_space<vmem>>, %arg12: memref<3x16x16xf32, #tpu.memory_space<vmem>>, %arg13: memref<16x1xf32, #tpu.memory_space<vmem>>, %arg14: memref<3x128x16xf32, #tpu.memory_space<vmem>>, %arg15: memref<128x1xf32, #tpu.memory_space<vmem>>, %arg16: memref<3x128x128xf32, #tpu.memory_space<vmem>>, %arg17: memref<128x1xf32, #tpu.memory_space<vmem>>, %arg18: memref<128x16xf32, #tpu.memory_space<vmem>>, %arg19: memref<128x1xf32, #tpu.memory_space<vmem>>, %arg20: memref<1x128x128xf32, #tpu.memory_space<vmem>>) attributes {dimension_semantics = [#tpu.dimension_semantics<parallel>], iteration_bounds = array<i64: 2>, scalar_prefetch = 0 : i64, scratch_operands = 0 : i64, tpu.core_type = #tpu.core_type<tc>, window_params = [{transform_indices = @transform_0, window_bounds = array<i64: 1, 8, 32>}, {pipeline_mode = #tpu.pipeline_mode<synchronous>, transform_indices = @transform_1, window_bounds = array<i64: 32, 128>}, {pipeline_mode = #tpu.pipeline_mode<synchronous>, transform_indices = @transform_2, window_bounds = array<i64: 1, 128>}, {pipeline_mode = #tpu.pipeline_mode<synchronous>, transform_indices = @transform_3, window_bounds = array<i64: 3, 16, 8>}, {pipeline_mode = #tpu.pipeline_mode<synchronous>, transform_indices = @transform_4, window_bounds = array<i64: 16, 1>}, {pipeline_mode = #tpu.pipeline_mode<synchronous>, transform_indices = @transform_5, window_bounds = array<i64: 3, 16, 16>}, {pipeline_mode = #tpu.pipeline_mode<synchronous>, transform_indices = @transform_6, window_bounds = array<i64: 16, 1>}, {pipeline_mode = #tpu.pipeline_mode<synchronous>, transform_indices = @transform_7, window_bounds = array<i64: 16, 8>}, {pipeline_mode = #tpu.pipeline_mode<synchronous>, transform_indices = @transform_8, window_bounds = array<i64: 16, 1>}, {pipeline_mode = #tpu.pipeline_mode<synchronous>, transform_indices = @transform_9, window_bounds = array<i64: 3, 16, 16>}, {pipeline_mode = #tpu.pipeline_mode<synchronous>, transform_indices = @transform_10, window_bounds = array<i64: 16, 1>}, {pipeline_mode = #tpu.pipeline_mode<synchronous>, transform_indices = @transform_11, window_bounds = array<i64: 3, 16, 16>}, {pipeline_mode = #tpu.pipeline_mode<synchronous>, transform_indices = @transform_12, window_bounds = array<i64: 16, 1>}, {pipeline_mode = #tpu.pipeline_mode<synchronous>, transform_indices = @transform_13, window_bounds = array<i64: 3, 128, 16>}, {pipeline_mode = #tpu.pipeline_mode<synchronous>, transform_indices = @transform_14, window_bounds = array<i64: 128, 1>}, {pipeline_mode = #tpu.pipeline_mode<synchronous>, transform_indices = @transform_15, window_bounds = array<i64: 3, 128, 128>}, {pipeline_mode = #tpu.pipeline_mode<synchronous>, transform_indices = @transform_16, window_bounds = array<i64: 128, 1>}, {pipeline_mode = #tpu.pipeline_mode<synchronous>, transform_indices = @transform_17, window_bounds = array<i64: 128, 16>}, {pipeline_mode = #tpu.pipeline_mode<synchronous>, transform_indices = @transform_18, window_bounds = array<i64: 128, 1>}, {transform_indices = @transform_19, window_bounds = array<i64: 1, 128, 128>}]} {
    %0 = tpu.iota {dimensions = array<i32: 0>} : vector<128x128xi32>
    %1 = tpu.iota {dimensions = array<i32: 1>} : vector<128x128xi32>
    %c0 = arith.constant 0 : index
    %c0_0 = arith.constant 0 : index
    %c0_1 = arith.constant 0 : index
    %2 = vector.load %arg1[%c0, %c0_0, %c0_1] : memref<1x8x32xf32, #tpu.memory_space<vmem>>, vector<1x8x32xf32>
    %3 = vector.shape_cast %2 : vector<1x8x32xf32> to vector<8x32xf32>
    %c0_2 = arith.constant 0 : index
    %c0_3 = arith.constant 0 : index
    %4 = vector.load %arg2[%c0_2, %c0_3] : memref<32x128xf32, #tpu.memory_space<vmem>>, vector<32x128xf32>
    %cst = arith.constant dense<0.000000e+00> : vector<8x128xf32>
    %5 = tpu.matmul %3, %4, %cst {dimension_numbers = #tpu.dot_dimension_numbers<[1], [0], [0], [1], [0, 0, 1, 1], [], []>} : vector<8x32xf32>, vector<32x128xf32>, vector<8x128xf32> -> vector<8x128xf32>
    %c0_4 = arith.constant 0 : index
    %c0_5 = arith.constant 0 : index
    %6 = vector.load %arg3[%c0_4, %c0_5] : memref<1x128xf32, #tpu.memory_space<vmem>>, vector<1x128xf32>
    %7 = vector.broadcast %6 : vector<1x128xf32> to vector<8x128xf32>
    %8 = arith.addf %5, %7 : vector<8x128xf32>
    %cst_6 = arith.constant 0.000000e+00 : f32
    %9 = vector.broadcast %cst_6 : f32 to vector<16x128xf32>
    %c0_7 = arith.constant 0 : index
    %c0_8 = arith.constant 0 : index
    %c0_9 = arith.constant 0 : index
    %10 = vector.load %arg4[%c0_7, %c0_8, %c0_9] : memref<3x16x8xf32, #tpu.memory_space<vmem>>, vector<1x16x8xf32>
    %11 = vector.shape_cast %10 : vector<1x16x8xf32> to vector<16x8xf32>
    %12 = arith.subi %1, %0 : vector<128x128xi32>
    %c2_i32 = arith.constant 2 : i32
    %13 = vector.broadcast %c2_i32 : i32 to vector<128x128xi32>
    %14 = arith.cmpi eq, %12, %13 : vector<128x128xi32>
    %cst_10 = arith.constant 1.000000e+00 : f32
    %cst_11 = arith.constant 0.000000e+00 : f32
    %15 = vector.broadcast %cst_10 : f32 to vector<128x128xf32>
    %16 = vector.broadcast %cst_11 : f32 to vector<128x128xf32>
    %17 = arith.select %14, %15, %16 : vector<128x128xi1>, vector<128x128xf32>
    %cst_12 = arith.constant dense<0.000000e+00> : vector<8x128xf32>
    %18 = tpu.matmul %8, %17, %cst_12 {dimension_numbers = #tpu.dot_dimension_numbers<[1], [0], [0], [1], [0, 0, 1, 1], [], []>} : vector<8x128xf32>, vector<128x128xf32>, vector<8x128xf32> -> vector<8x128xf32>
    %cst_13 = arith.constant dense<0.000000e+00> : vector<16x128xf32>
    %19 = tpu.matmul %11, %18, %cst_13 {dimension_numbers = #tpu.dot_dimension_numbers<[1], [0], [0], [1], [0, 0, 1, 1], [], []>} : vector<16x8xf32>, vector<8x128xf32>, vector<16x128xf32> -> vector<16x128xf32>
    %20 = arith.addf %9, %19 : vector<16x128xf32>
    %c1 = arith.constant 1 : index
    %c0_14 = arith.constant 0 : index
    %c0_15 = arith.constant 0 : index
    %21 = vector.load %arg4[%c1, %c0_14, %c0_15] : memref<3x16x8xf32, #tpu.memory_space<vmem>>, vector<1x16x8xf32>
    %22 = vector.shape_cast %21 : vector<1x16x8xf32> to vector<16x8xf32>
    %23 = arith.subi %1, %0 : vector<128x128xi32>
    %c1_i32 = arith.constant 1 : i32
    %24 = vector.broadcast %c1_i32 : i32 to vector<128x128xi32>
    %25 = arith.cmpi eq, %23, %24 : vector<128x128xi32>
    %cst_16 = arith.constant 1.000000e+00 : f32
    %cst_17 = arith.constant 0.000000e+00 : f32
    %26 = vector.broadcast %cst_16 : f32 to vector<128x128xf32>
    %27 = vector.broadcast %cst_17 : f32 to vector<128x128xf32>
    %28 = arith.select %25, %26, %27 : vector<128x128xi1>, vector<128x128xf32>
    %cst_18 = arith.constant dense<0.000000e+00> : vector<8x128xf32>
    %29 = tpu.matmul %8, %28, %cst_18 {dimension_numbers = #tpu.dot_dimension_numbers<[1], [0], [0], [1], [0, 0, 1, 1], [], []>} : vector<8x128xf32>, vector<128x128xf32>, vector<8x128xf32> -> vector<8x128xf32>
    %cst_19 = arith.constant dense<0.000000e+00> : vector<16x128xf32>
    %30 = tpu.matmul %22, %29, %cst_19 {dimension_numbers = #tpu.dot_dimension_numbers<[1], [0], [0], [1], [0, 0, 1, 1], [], []>} : vector<16x8xf32>, vector<8x128xf32>, vector<16x128xf32> -> vector<16x128xf32>
    %31 = arith.addf %20, %30 : vector<16x128xf32>
    %c2 = arith.constant 2 : index
    %c0_20 = arith.constant 0 : index
    %c0_21 = arith.constant 0 : index
    %32 = vector.load %arg4[%c2, %c0_20, %c0_21] : memref<3x16x8xf32, #tpu.memory_space<vmem>>, vector<1x16x8xf32>
    %33 = vector.shape_cast %32 : vector<1x16x8xf32> to vector<16x8xf32>
    %cst_22 = arith.constant dense<0.000000e+00> : vector<16x128xf32>
    %34 = tpu.matmul %33, %8, %cst_22 {dimension_numbers = #tpu.dot_dimension_numbers<[1], [0], [0], [1], [0, 0, 1, 1], [], []>} : vector<16x8xf32>, vector<8x128xf32>, vector<16x128xf32> -> vector<16x128xf32>
    %35 = arith.addf %31, %34 : vector<16x128xf32>
    %c0_23 = arith.constant 0 : index
    %c0_24 = arith.constant 0 : index
    %36 = vector.load %arg5[%c0_23, %c0_24] : memref<16x1xf32, #tpu.memory_space<vmem>>, vector<16x1xf32>
    %37 = vector.broadcast %36 : vector<16x1xf32> to vector<16x128xf32>
    %38 = arith.addf %35, %37 : vector<16x128xf32>
    %cst_25 = arith.constant 0.000000e+00 : f32
    %39 = vector.broadcast %cst_25 : f32 to vector<16x128xf32>
    %40 = arith.maximumf %38, %39 : vector<16x128xf32>
    %cst_26 = arith.constant 0.000000e+00 : f32
    %41 = vector.broadcast %cst_26 : f32 to vector<16x128xf32>
    %c0_27 = arith.constant 0 : index
    %c0_28 = arith.constant 0 : index
    %c0_29 = arith.constant 0 : index
    %42 = vector.load %arg6[%c0_27, %c0_28, %c0_29] : memref<3x16x16xf32, #tpu.memory_space<vmem>>, vector<1x16x16xf32>
    %43 = vector.shape_cast %42 : vector<1x16x16xf32> to vector<16x16xf32>
    %cst_30 = arith.constant dense<0.000000e+00> : vector<16x128xf32>
    %44 = tpu.matmul %40, %17, %cst_30 {dimension_numbers = #tpu.dot_dimension_numbers<[1], [0], [0], [1], [0, 0, 1, 1], [], []>} : vector<16x128xf32>, vector<128x128xf32>, vector<16x128xf32> -> vector<16x128xf32>
    %cst_31 = arith.constant dense<0.000000e+00> : vector<16x128xf32>
    %45 = tpu.matmul %43, %44, %cst_31 {dimension_numbers = #tpu.dot_dimension_numbers<[1], [0], [0], [1], [0, 0, 1, 1], [], []>} : vector<16x16xf32>, vector<16x128xf32>, vector<16x128xf32> -> vector<16x128xf32>
    %46 = arith.addf %41, %45 : vector<16x128xf32>
    %c1_32 = arith.constant 1 : index
    %c0_33 = arith.constant 0 : index
    %c0_34 = arith.constant 0 : index
    %47 = vector.load %arg6[%c1_32, %c0_33, %c0_34] : memref<3x16x16xf32, #tpu.memory_space<vmem>>, vector<1x16x16xf32>
    %48 = vector.shape_cast %47 : vector<1x16x16xf32> to vector<16x16xf32>
    %cst_35 = arith.constant dense<0.000000e+00> : vector<16x128xf32>
    %49 = tpu.matmul %40, %28, %cst_35 {dimension_numbers = #tpu.dot_dimension_numbers<[1], [0], [0], [1], [0, 0, 1, 1], [], []>} : vector<16x128xf32>, vector<128x128xf32>, vector<16x128xf32> -> vector<16x128xf32>
    %cst_36 = arith.constant dense<0.000000e+00> : vector<16x128xf32>
    %50 = tpu.matmul %48, %49, %cst_36 {dimension_numbers = #tpu.dot_dimension_numbers<[1], [0], [0], [1], [0, 0, 1, 1], [], []>} : vector<16x16xf32>, vector<16x128xf32>, vector<16x128xf32> -> vector<16x128xf32>
    %51 = arith.addf %46, %50 : vector<16x128xf32>
    %c2_37 = arith.constant 2 : index
    %c0_38 = arith.constant 0 : index
    %c0_39 = arith.constant 0 : index
    %52 = vector.load %arg6[%c2_37, %c0_38, %c0_39] : memref<3x16x16xf32, #tpu.memory_space<vmem>>, vector<1x16x16xf32>
    %53 = vector.shape_cast %52 : vector<1x16x16xf32> to vector<16x16xf32>
    %cst_40 = arith.constant dense<0.000000e+00> : vector<16x128xf32>
    %54 = tpu.matmul %53, %40, %cst_40 {dimension_numbers = #tpu.dot_dimension_numbers<[1], [0], [0], [1], [0, 0, 1, 1], [], []>} : vector<16x16xf32>, vector<16x128xf32>, vector<16x128xf32> -> vector<16x128xf32>
    %55 = arith.addf %51, %54 : vector<16x128xf32>
    %c0_41 = arith.constant 0 : index
    %c0_42 = arith.constant 0 : index
    %56 = vector.load %arg7[%c0_41, %c0_42] : memref<16x1xf32, #tpu.memory_space<vmem>>, vector<16x1xf32>
    %57 = vector.broadcast %56 : vector<16x1xf32> to vector<16x128xf32>
    %58 = arith.addf %55, %57 : vector<16x128xf32>
    %cst_43 = arith.constant 0.000000e+00 : f32
    %59 = vector.broadcast %cst_43 : f32 to vector<16x128xf32>
    %60 = arith.maximumf %58, %59 : vector<16x128xf32>
    %c0_44 = arith.constant 0 : index
    %c0_45 = arith.constant 0 : index
    %61 = vector.load %arg8[%c0_44, %c0_45] : memref<16x8xf32, #tpu.memory_space<vmem>>, vector<16x8xf32>
    %cst_46 = arith.constant dense<0.000000e+00> : vector<16x128xf32>
    %62 = tpu.matmul %61, %8, %cst_46 {dimension_numbers = #tpu.dot_dimension_numbers<[1], [0], [0], [1], [0, 0, 1, 1], [], []>} : vector<16x8xf32>, vector<8x128xf32>, vector<16x128xf32> -> vector<16x128xf32>
    %c0_47 = arith.constant 0 : index
    %c0_48 = arith.constant 0 : index
    %63 = vector.load %arg9[%c0_47, %c0_48] : memref<16x1xf32, #tpu.memory_space<vmem>>, vector<16x1xf32>
    %64 = vector.broadcast %63 : vector<16x1xf32> to vector<16x128xf32>
    %65 = arith.addf %62, %64 : vector<16x128xf32>
    %66 = arith.addf %60, %65 : vector<16x128xf32>
    %cst_49 = arith.constant 0.000000e+00 : f32
    %67 = vector.broadcast %cst_49 : f32 to vector<16x128xf32>
    %68 = arith.maximumf %66, %67 : vector<16x128xf32>
    %cst_50 = arith.constant 0.000000e+00 : f32
    %69 = vector.broadcast %cst_50 : f32 to vector<16x128xf32>
    %c0_51 = arith.constant 0 : index
    %c0_52 = arith.constant 0 : index
    %c0_53 = arith.constant 0 : index
    %70 = vector.load %arg10[%c0_51, %c0_52, %c0_53] : memref<3x16x16xf32, #tpu.memory_space<vmem>>, vector<1x16x16xf32>
    %71 = vector.shape_cast %70 : vector<1x16x16xf32> to vector<16x16xf32>
    %72 = arith.subi %1, %0 : vector<128x128xi32>
    %c4_i32 = arith.constant 4 : i32
    %73 = vector.broadcast %c4_i32 : i32 to vector<128x128xi32>
    %74 = arith.cmpi eq, %72, %73 : vector<128x128xi32>
    %cst_54 = arith.constant 1.000000e+00 : f32
    %cst_55 = arith.constant 0.000000e+00 : f32
    %75 = vector.broadcast %cst_54 : f32 to vector<128x128xf32>
    %76 = vector.broadcast %cst_55 : f32 to vector<128x128xf32>
    %77 = arith.select %74, %75, %76 : vector<128x128xi1>, vector<128x128xf32>
    %cst_56 = arith.constant dense<0.000000e+00> : vector<16x128xf32>
    %78 = tpu.matmul %68, %77, %cst_56 {dimension_numbers = #tpu.dot_dimension_numbers<[1], [0], [0], [1], [0, 0, 1, 1], [], []>} : vector<16x128xf32>, vector<128x128xf32>, vector<16x128xf32> -> vector<16x128xf32>
    %cst_57 = arith.constant dense<0.000000e+00> : vector<16x128xf32>
    %79 = tpu.matmul %71, %78, %cst_57 {dimension_numbers = #tpu.dot_dimension_numbers<[1], [0], [0], [1], [0, 0, 1, 1], [], []>} : vector<16x16xf32>, vector<16x128xf32>, vector<16x128xf32> -> vector<16x128xf32>
    %80 = arith.addf %69, %79 : vector<16x128xf32>
    %c1_58 = arith.constant 1 : index
    %c0_59 = arith.constant 0 : index
    %c0_60 = arith.constant 0 : index
    %81 = vector.load %arg10[%c1_58, %c0_59, %c0_60] : memref<3x16x16xf32, #tpu.memory_space<vmem>>, vector<1x16x16xf32>
    %82 = vector.shape_cast %81 : vector<1x16x16xf32> to vector<16x16xf32>
    %cst_61 = arith.constant dense<0.000000e+00> : vector<16x128xf32>
    %83 = tpu.matmul %68, %17, %cst_61 {dimension_numbers = #tpu.dot_dimension_numbers<[1], [0], [0], [1], [0, 0, 1, 1], [], []>} : vector<16x128xf32>, vector<128x128xf32>, vector<16x128xf32> -> vector<16x128xf32>
    %cst_62 = arith.constant dense<0.000000e+00> : vector<16x128xf32>
    %84 = tpu.matmul %82, %83, %cst_62 {dimension_numbers = #tpu.dot_dimension_numbers<[1], [0], [0], [1], [0, 0, 1, 1], [], []>} : vector<16x16xf32>, vector<16x128xf32>, vector<16x128xf32> -> vector<16x128xf32>
    %85 = arith.addf %80, %84 : vector<16x128xf32>
    %c2_63 = arith.constant 2 : index
    %c0_64 = arith.constant 0 : index
    %c0_65 = arith.constant 0 : index
    %86 = vector.load %arg10[%c2_63, %c0_64, %c0_65] : memref<3x16x16xf32, #tpu.memory_space<vmem>>, vector<1x16x16xf32>
    %87 = vector.shape_cast %86 : vector<1x16x16xf32> to vector<16x16xf32>
    %cst_66 = arith.constant dense<0.000000e+00> : vector<16x128xf32>
    %88 = tpu.matmul %87, %68, %cst_66 {dimension_numbers = #tpu.dot_dimension_numbers<[1], [0], [0], [1], [0, 0, 1, 1], [], []>} : vector<16x16xf32>, vector<16x128xf32>, vector<16x128xf32> -> vector<16x128xf32>
    %89 = arith.addf %85, %88 : vector<16x128xf32>
    %c0_67 = arith.constant 0 : index
    %c0_68 = arith.constant 0 : index
    %90 = vector.load %arg11[%c0_67, %c0_68] : memref<16x1xf32, #tpu.memory_space<vmem>>, vector<16x1xf32>
    %91 = vector.broadcast %90 : vector<16x1xf32> to vector<16x128xf32>
    %92 = arith.addf %89, %91 : vector<16x128xf32>
    %cst_69 = arith.constant 0.000000e+00 : f32
    %93 = vector.broadcast %cst_69 : f32 to vector<16x128xf32>
    %94 = arith.maximumf %92, %93 : vector<16x128xf32>
    %cst_70 = arith.constant 0.000000e+00 : f32
    %95 = vector.broadcast %cst_70 : f32 to vector<16x128xf32>
    %c0_71 = arith.constant 0 : index
    %c0_72 = arith.constant 0 : index
    %c0_73 = arith.constant 0 : index
    %96 = vector.load %arg12[%c0_71, %c0_72, %c0_73] : memref<3x16x16xf32, #tpu.memory_space<vmem>>, vector<1x16x16xf32>
    %97 = vector.shape_cast %96 : vector<1x16x16xf32> to vector<16x16xf32>
    %cst_74 = arith.constant dense<0.000000e+00> : vector<16x128xf32>
    %98 = tpu.matmul %94, %77, %cst_74 {dimension_numbers = #tpu.dot_dimension_numbers<[1], [0], [0], [1], [0, 0, 1, 1], [], []>} : vector<16x128xf32>, vector<128x128xf32>, vector<16x128xf32> -> vector<16x128xf32>
    %cst_75 = arith.constant dense<0.000000e+00> : vector<16x128xf32>
    %99 = tpu.matmul %97, %98, %cst_75 {dimension_numbers = #tpu.dot_dimension_numbers<[1], [0], [0], [1], [0, 0, 1, 1], [], []>} : vector<16x16xf32>, vector<16x128xf32>, vector<16x128xf32> -> vector<16x128xf32>
    %100 = arith.addf %95, %99 : vector<16x128xf32>
    %c1_76 = arith.constant 1 : index
    %c0_77 = arith.constant 0 : index
    %c0_78 = arith.constant 0 : index
    %101 = vector.load %arg12[%c1_76, %c0_77, %c0_78] : memref<3x16x16xf32, #tpu.memory_space<vmem>>, vector<1x16x16xf32>
    %102 = vector.shape_cast %101 : vector<1x16x16xf32> to vector<16x16xf32>
    %cst_79 = arith.constant dense<0.000000e+00> : vector<16x128xf32>
    %103 = tpu.matmul %94, %17, %cst_79 {dimension_numbers = #tpu.dot_dimension_numbers<[1], [0], [0], [1], [0, 0, 1, 1], [], []>} : vector<16x128xf32>, vector<128x128xf32>, vector<16x128xf32> -> vector<16x128xf32>
    %cst_80 = arith.constant dense<0.000000e+00> : vector<16x128xf32>
    %104 = tpu.matmul %102, %103, %cst_80 {dimension_numbers = #tpu.dot_dimension_numbers<[1], [0], [0], [1], [0, 0, 1, 1], [], []>} : vector<16x16xf32>, vector<16x128xf32>, vector<16x128xf32> -> vector<16x128xf32>
    %105 = arith.addf %100, %104 : vector<16x128xf32>
    %c2_81 = arith.constant 2 : index
    %c0_82 = arith.constant 0 : index
    %c0_83 = arith.constant 0 : index
    %106 = vector.load %arg12[%c2_81, %c0_82, %c0_83] : memref<3x16x16xf32, #tpu.memory_space<vmem>>, vector<1x16x16xf32>
    %107 = vector.shape_cast %106 : vector<1x16x16xf32> to vector<16x16xf32>
    %cst_84 = arith.constant dense<0.000000e+00> : vector<16x128xf32>
    %108 = tpu.matmul %107, %94, %cst_84 {dimension_numbers = #tpu.dot_dimension_numbers<[1], [0], [0], [1], [0, 0, 1, 1], [], []>} : vector<16x16xf32>, vector<16x128xf32>, vector<16x128xf32> -> vector<16x128xf32>
    %109 = arith.addf %105, %108 : vector<16x128xf32>
    %c0_85 = arith.constant 0 : index
    %c0_86 = arith.constant 0 : index
    %110 = vector.load %arg13[%c0_85, %c0_86] : memref<16x1xf32, #tpu.memory_space<vmem>>, vector<16x1xf32>
    %111 = vector.broadcast %110 : vector<16x1xf32> to vector<16x128xf32>
    %112 = arith.addf %109, %111 : vector<16x128xf32>
    %cst_87 = arith.constant 0.000000e+00 : f32
    %113 = vector.broadcast %cst_87 : f32 to vector<16x128xf32>
    %114 = arith.maximumf %112, %113 : vector<16x128xf32>
    %115 = arith.addf %114, %68 : vector<16x128xf32>
    %cst_88 = arith.constant 0.000000e+00 : f32
    %116 = vector.broadcast %cst_88 : f32 to vector<16x128xf32>
    %117 = arith.maximumf %115, %116 : vector<16x128xf32>
    %cst_89 = arith.constant 0.000000e+00 : f32
    %118 = vector.broadcast %cst_89 : f32 to vector<128x128xf32>
    %c0_90 = arith.constant 0 : index
    %c0_91 = arith.constant 0 : index
    %c0_92 = arith.constant 0 : index
    %119 = vector.load %arg14[%c0_90, %c0_91, %c0_92] : memref<3x128x16xf32, #tpu.memory_space<vmem>>, vector<1x128x16xf32>
    %120 = vector.shape_cast %119 : vector<1x128x16xf32> to vector<128x16xf32>
    %121 = arith.subi %1, %0 : vector<128x128xi32>
    %c8_i32 = arith.constant 8 : i32
    %122 = vector.broadcast %c8_i32 : i32 to vector<128x128xi32>
    %123 = arith.cmpi eq, %121, %122 : vector<128x128xi32>
    %cst_93 = arith.constant 1.000000e+00 : f32
    %cst_94 = arith.constant 0.000000e+00 : f32
    %124 = vector.broadcast %cst_93 : f32 to vector<128x128xf32>
    %125 = vector.broadcast %cst_94 : f32 to vector<128x128xf32>
    %126 = arith.select %123, %124, %125 : vector<128x128xi1>, vector<128x128xf32>
    %cst_95 = arith.constant dense<0.000000e+00> : vector<16x128xf32>
    %127 = tpu.matmul %117, %126, %cst_95 {dimension_numbers = #tpu.dot_dimension_numbers<[1], [0], [0], [1], [0, 0, 1, 1], [], []>} : vector<16x128xf32>, vector<128x128xf32>, vector<16x128xf32> -> vector<16x128xf32>
    %cst_96 = arith.constant dense<0.000000e+00> : vector<128x128xf32>
    %128 = tpu.matmul %120, %127, %cst_96 {dimension_numbers = #tpu.dot_dimension_numbers<[1], [0], [0], [1], [0, 0, 1, 1], [], []>} : vector<128x16xf32>, vector<16x128xf32>, vector<128x128xf32> -> vector<128x128xf32>
    %129 = arith.addf %118, %128 : vector<128x128xf32>
    %c1_97 = arith.constant 1 : index
    %c0_98 = arith.constant 0 : index
    %c0_99 = arith.constant 0 : index
    %130 = vector.load %arg14[%c1_97, %c0_98, %c0_99] : memref<3x128x16xf32, #tpu.memory_space<vmem>>, vector<1x128x16xf32>
    %131 = vector.shape_cast %130 : vector<1x128x16xf32> to vector<128x16xf32>
    %cst_100 = arith.constant dense<0.000000e+00> : vector<16x128xf32>
    %132 = tpu.matmul %117, %77, %cst_100 {dimension_numbers = #tpu.dot_dimension_numbers<[1], [0], [0], [1], [0, 0, 1, 1], [], []>} : vector<16x128xf32>, vector<128x128xf32>, vector<16x128xf32> -> vector<16x128xf32>
    %cst_101 = arith.constant dense<0.000000e+00> : vector<128x128xf32>
    %133 = tpu.matmul %131, %132, %cst_101 {dimension_numbers = #tpu.dot_dimension_numbers<[1], [0], [0], [1], [0, 0, 1, 1], [], []>} : vector<128x16xf32>, vector<16x128xf32>, vector<128x128xf32> -> vector<128x128xf32>
    %134 = arith.addf %129, %133 : vector<128x128xf32>
    %c2_102 = arith.constant 2 : index
    %c0_103 = arith.constant 0 : index
    %c0_104 = arith.constant 0 : index
    %135 = vector.load %arg14[%c2_102, %c0_103, %c0_104] : memref<3x128x16xf32, #tpu.memory_space<vmem>>, vector<1x128x16xf32>
    %136 = vector.shape_cast %135 : vector<1x128x16xf32> to vector<128x16xf32>
    %cst_105 = arith.constant dense<0.000000e+00> : vector<128x128xf32>
    %137 = tpu.matmul %136, %117, %cst_105 {dimension_numbers = #tpu.dot_dimension_numbers<[1], [0], [0], [1], [0, 0, 1, 1], [], []>} : vector<128x16xf32>, vector<16x128xf32>, vector<128x128xf32> -> vector<128x128xf32>
    %138 = arith.addf %134, %137 : vector<128x128xf32>
    %c0_106 = arith.constant 0 : index
    %c0_107 = arith.constant 0 : index
    %139 = vector.load %arg15[%c0_106, %c0_107] : memref<128x1xf32, #tpu.memory_space<vmem>>, vector<128x1xf32>
    %140 = vector.broadcast %139 : vector<128x1xf32> to vector<128x128xf32>
    %141 = arith.addf %138, %140 : vector<128x128xf32>
    %cst_108 = arith.constant 0.000000e+00 : f32
    %142 = vector.broadcast %cst_108 : f32 to vector<128x128xf32>
    %143 = arith.maximumf %141, %142 : vector<128x128xf32>
    %cst_109 = arith.constant 0.000000e+00 : f32
    %144 = vector.broadcast %cst_109 : f32 to vector<128x128xf32>
    %c0_110 = arith.constant 0 : index
    %c0_111 = arith.constant 0 : index
    %c0_112 = arith.constant 0 : index
    %145 = vector.load %arg16[%c0_110, %c0_111, %c0_112] : memref<3x128x128xf32, #tpu.memory_space<vmem>>, vector<1x128x128xf32>
    %146 = vector.shape_cast %145 : vector<1x128x128xf32> to vector<128x128xf32>
    %cst_113 = arith.constant dense<0.000000e+00> : vector<128x128xf32>
    %147 = tpu.matmul %143, %126, %cst_113 {dimension_numbers = #tpu.dot_dimension_numbers<[1], [0], [0], [1], [0, 0, 1, 1], [], []>} : vector<128x128xf32>, vector<128x128xf32>, vector<128x128xf32> -> vector<128x128xf32>
    %cst_114 = arith.constant dense<0.000000e+00> : vector<128x128xf32>
    %148 = tpu.matmul %146, %147, %cst_114 {dimension_numbers = #tpu.dot_dimension_numbers<[1], [0], [0], [1], [0, 0, 1, 1], [], []>} : vector<128x128xf32>, vector<128x128xf32>, vector<128x128xf32> -> vector<128x128xf32>
    %149 = arith.addf %144, %148 : vector<128x128xf32>
    %c1_115 = arith.constant 1 : index
    %c0_116 = arith.constant 0 : index
    %c0_117 = arith.constant 0 : index
    %150 = vector.load %arg16[%c1_115, %c0_116, %c0_117] : memref<3x128x128xf32, #tpu.memory_space<vmem>>, vector<1x128x128xf32>
    %151 = vector.shape_cast %150 : vector<1x128x128xf32> to vector<128x128xf32>
    %cst_118 = arith.constant dense<0.000000e+00> : vector<128x128xf32>
    %152 = tpu.matmul %143, %77, %cst_118 {dimension_numbers = #tpu.dot_dimension_numbers<[1], [0], [0], [1], [0, 0, 1, 1], [], []>} : vector<128x128xf32>, vector<128x128xf32>, vector<128x128xf32> -> vector<128x128xf32>
    %cst_119 = arith.constant dense<0.000000e+00> : vector<128x128xf32>
    %153 = tpu.matmul %151, %152, %cst_119 {dimension_numbers = #tpu.dot_dimension_numbers<[1], [0], [0], [1], [0, 0, 1, 1], [], []>} : vector<128x128xf32>, vector<128x128xf32>, vector<128x128xf32> -> vector<128x128xf32>
    %154 = arith.addf %149, %153 : vector<128x128xf32>
    %c2_120 = arith.constant 2 : index
    %c0_121 = arith.constant 0 : index
    %c0_122 = arith.constant 0 : index
    %155 = vector.load %arg16[%c2_120, %c0_121, %c0_122] : memref<3x128x128xf32, #tpu.memory_space<vmem>>, vector<1x128x128xf32>
    %156 = vector.shape_cast %155 : vector<1x128x128xf32> to vector<128x128xf32>
    %cst_123 = arith.constant dense<0.000000e+00> : vector<128x128xf32>
    %157 = tpu.matmul %156, %143, %cst_123 {dimension_numbers = #tpu.dot_dimension_numbers<[1], [0], [0], [1], [0, 0, 1, 1], [], []>} : vector<128x128xf32>, vector<128x128xf32>, vector<128x128xf32> -> vector<128x128xf32>
    %158 = arith.addf %154, %157 : vector<128x128xf32>
    %c0_124 = arith.constant 0 : index
    %c0_125 = arith.constant 0 : index
    %159 = vector.load %arg17[%c0_124, %c0_125] : memref<128x1xf32, #tpu.memory_space<vmem>>, vector<128x1xf32>
    %160 = vector.broadcast %159 : vector<128x1xf32> to vector<128x128xf32>
    %161 = arith.addf %158, %160 : vector<128x128xf32>
    %cst_126 = arith.constant 0.000000e+00 : f32
    %162 = vector.broadcast %cst_126 : f32 to vector<128x128xf32>
    %163 = arith.maximumf %161, %162 : vector<128x128xf32>
    %c0_127 = arith.constant 0 : index
    %c0_128 = arith.constant 0 : index
    %164 = vector.load %arg18[%c0_127, %c0_128] : memref<128x16xf32, #tpu.memory_space<vmem>>, vector<128x16xf32>
    %cst_129 = arith.constant dense<0.000000e+00> : vector<128x128xf32>
    %165 = tpu.matmul %164, %117, %cst_129 {dimension_numbers = #tpu.dot_dimension_numbers<[1], [0], [0], [1], [0, 0, 1, 1], [], []>} : vector<128x16xf32>, vector<16x128xf32>, vector<128x128xf32> -> vector<128x128xf32>
    %c0_130 = arith.constant 0 : index
    %c0_131 = arith.constant 0 : index
    %166 = vector.load %arg19[%c0_130, %c0_131] : memref<128x1xf32, #tpu.memory_space<vmem>>, vector<128x1xf32>
    %167 = vector.broadcast %166 : vector<128x1xf32> to vector<128x128xf32>
    %168 = arith.addf %165, %167 : vector<128x128xf32>
    %169 = arith.addf %163, %168 : vector<128x128xf32>
    %cst_132 = arith.constant 0.000000e+00 : f32
    %170 = vector.broadcast %cst_132 : f32 to vector<128x128xf32>
    %171 = arith.maximumf %169, %170 : vector<128x128xf32>
    %c0_133 = arith.constant 0 : index
    %c0_134 = arith.constant 0 : index
    %c0_135 = arith.constant 0 : index
    %172 = vector.load %arg20[%c0_133, %c0_134, %c0_135] : memref<1x128x128xf32, #tpu.memory_space<vmem>>, vector<1x128x128xf32>
    %173 = vector.shape_cast %172 : vector<1x128x128xf32> to vector<128x128xf32>
    %174 = vector.shape_cast %171 : vector<128x128xf32> to vector<1x128x128xf32>
    tpu.vector_store %arg20[%c0_133, %c0_134, %c0_135], %174 {strides = array<i32>} : memref<1x128x128xf32, #tpu.memory_space<vmem>>, vector<1x128x128xf32>,
    return
  }
  func.func @transform_0(%arg0: i32) -> (i32, i32, i32) {
    %c0_i32 = arith.constant 0 : i32
    %c0_i32_0 = arith.constant 0 : i32
    %c0_i32_1 = arith.constant 0 : i32
    return %arg0, %c0_i32, %c0_i32_0 : i32, i32, i32
  }
  func.func @transform_1(%arg0: i32) -> (i32, i32) {
    %c0_i32 = arith.constant 0 : i32
    %c0_i32_0 = arith.constant 0 : i32
    %c0_i32_1 = arith.constant 0 : i32
    return %c0_i32, %c0_i32_0 : i32, i32
  }
  func.func @transform_2(%arg0: i32) -> (i32, i32) {
    %c0_i32 = arith.constant 0 : i32
    %c0_i32_0 = arith.constant 0 : i32
    %c0_i32_1 = arith.constant 0 : i32
    return %c0_i32, %c0_i32_0 : i32, i32
  }
  func.func @transform_3(%arg0: i32) -> (i32, i32, i32) {
    %c0_i32 = arith.constant 0 : i32
    %c0_i32_0 = arith.constant 0 : i32
    %c0_i32_1 = arith.constant 0 : i32
    %c0_i32_2 = arith.constant 0 : i32
    return %c0_i32, %c0_i32_0, %c0_i32_1 : i32, i32, i32
  }
  func.func @transform_4(%arg0: i32) -> (i32, i32) {
    %c0_i32 = arith.constant 0 : i32
    %c0_i32_0 = arith.constant 0 : i32
    %c0_i32_1 = arith.constant 0 : i32
    return %c0_i32, %c0_i32_0 : i32, i32
  }
  func.func @transform_5(%arg0: i32) -> (i32, i32, i32) {
    %c0_i32 = arith.constant 0 : i32
    %c0_i32_0 = arith.constant 0 : i32
    %c0_i32_1 = arith.constant 0 : i32
    %c0_i32_2 = arith.constant 0 : i32
    return %c0_i32, %c0_i32_0, %c0_i32_1 : i32, i32, i32
  }
  func.func @transform_6(%arg0: i32) -> (i32, i32) {
    %c0_i32 = arith.constant 0 : i32
    %c0_i32_0 = arith.constant 0 : i32
    %c0_i32_1 = arith.constant 0 : i32
    return %c0_i32, %c0_i32_0 : i32, i32
  }
  func.func @transform_7(%arg0: i32) -> (i32, i32) {
    %c0_i32 = arith.constant 0 : i32
    %c0_i32_0 = arith.constant 0 : i32
    %c0_i32_1 = arith.constant 0 : i32
    return %c0_i32, %c0_i32_0 : i32, i32
  }
  func.func @transform_8(%arg0: i32) -> (i32, i32) {
    %c0_i32 = arith.constant 0 : i32
    %c0_i32_0 = arith.constant 0 : i32
    %c0_i32_1 = arith.constant 0 : i32
    return %c0_i32, %c0_i32_0 : i32, i32
  }
  func.func @transform_9(%arg0: i32) -> (i32, i32, i32) {
    %c0_i32 = arith.constant 0 : i32
    %c0_i32_0 = arith.constant 0 : i32
    %c0_i32_1 = arith.constant 0 : i32
    %c0_i32_2 = arith.constant 0 : i32
    return %c0_i32, %c0_i32_0, %c0_i32_1 : i32, i32, i32
  }
  func.func @transform_10(%arg0: i32) -> (i32, i32) {
    %c0_i32 = arith.constant 0 : i32
    %c0_i32_0 = arith.constant 0 : i32
    %c0_i32_1 = arith.constant 0 : i32
    return %c0_i32, %c0_i32_0 : i32, i32
  }
  func.func @transform_11(%arg0: i32) -> (i32, i32, i32) {
    %c0_i32 = arith.constant 0 : i32
    %c0_i32_0 = arith.constant 0 : i32
    %c0_i32_1 = arith.constant 0 : i32
    %c0_i32_2 = arith.constant 0 : i32
    return %c0_i32, %c0_i32_0, %c0_i32_1 : i32, i32, i32
  }
  func.func @transform_12(%arg0: i32) -> (i32, i32) {
    %c0_i32 = arith.constant 0 : i32
    %c0_i32_0 = arith.constant 0 : i32
    %c0_i32_1 = arith.constant 0 : i32
    return %c0_i32, %c0_i32_0 : i32, i32
  }
  func.func @transform_13(%arg0: i32) -> (i32, i32, i32) {
    %c0_i32 = arith.constant 0 : i32
    %c0_i32_0 = arith.constant 0 : i32
    %c0_i32_1 = arith.constant 0 : i32
    %c0_i32_2 = arith.constant 0 : i32
    return %c0_i32, %c0_i32_0, %c0_i32_1 : i32, i32, i32
  }
  func.func @transform_14(%arg0: i32) -> (i32, i32) {
    %c0_i32 = arith.constant 0 : i32
    %c0_i32_0 = arith.constant 0 : i32
    %c0_i32_1 = arith.constant 0 : i32
    return %c0_i32, %c0_i32_0 : i32, i32
  }
  func.func @transform_15(%arg0: i32) -> (i32, i32, i32) {
    %c0_i32 = arith.constant 0 : i32
    %c0_i32_0 = arith.constant 0 : i32
    %c0_i32_1 = arith.constant 0 : i32
    %c0_i32_2 = arith.constant 0 : i32
    return %c0_i32, %c0_i32_0, %c0_i32_1 : i32, i32, i32
  }
  func.func @transform_16(%arg0: i32) -> (i32, i32) {
    %c0_i32 = arith.constant 0 : i32
    %c0_i32_0 = arith.constant 0 : i32
    %c0_i32_1 = arith.constant 0 : i32
    return %c0_i32, %c0_i32_0 : i32, i32
  }
  func.func @transform_17(%arg0: i32) -> (i32, i32) {
    %c0_i32 = arith.constant 0 : i32
    %c0_i32_0 = arith.constant 0 : i32
    %c0_i32_1 = arith.constant 0 : i32
    return %c0_i32, %c0_i32_0 : i32, i32
  }
  func.func @transform_18(%arg0: i32) -> (i32, i32) {
    %c0_i32 = arith.constant 0 : i32
    %c0_i32_0 = arith.constant 0 : i32
    %c0_i32_1 = arith.constant 0 : i32
    return %c0_i32, %c0_i32_0 : i32, i32
  }
  func.func @transform_19(%arg0: i32) -> (i32, i32, i32) {
    %c0_i32 = arith.constant 0 : i32
    %c0_i32_0 = arith.constant 0 : i32
    %c0_i32_1 = arith.constant 0 : i32
    return %arg0, %c0_i32, %c0_i32_0 : i32, i32, i32
  }
}

</mosaic_0001>

<llo_original>
// kernel: tpu_custom_call.1
$region0: #{tpu_custom_call.1}
  #allocation0 [shape = 'u32[]', space=smem, size = 0x4, offset = 0x4, fixed_abs, tag = 'smem constant byte address 0x4 - core index']
  #allocation1 [shape = 'u32[144,128]{1,0:T(1,128)}', space=vmem, size = 0x12000, scoped, tag = 'internal scratch']
  %s0 = inlined_call_operand.vmem [shape: f32[2,8,32], index: 0, kind: input, shape index: {}]
  %s1 = inlined_call_operand.vmem [shape: f32[32,128], index: 1, kind: input, shape index: {}]
  %s2 = inlined_call_operand.vmem [shape: f32[1,128], index: 2, kind: input, shape index: {}]
  %s3 = inlined_call_operand.vmem [shape: f32[3,16,8], index: 3, kind: input, shape index: {}]
  %s4 = inlined_call_operand.vmem [shape: f32[16,1], index: 4, kind: input, shape index: {}]
  %s5 = inlined_call_operand.vmem [shape: f32[3,16,16], index: 5, kind: input, shape index: {}]
  %s6 = inlined_call_operand.vmem [shape: f32[16,1], index: 6, kind: input, shape index: {}]
  %s7 = inlined_call_operand.vmem [shape: f32[16,8], index: 7, kind: input, shape index: {}]
  %s8 = inlined_call_operand.vmem [shape: f32[16,1], index: 8, kind: input, shape index: {}]
  %s9 = inlined_call_operand.vmem [shape: f32[3,16,16], index: 9, kind: input, shape index: {}]
  %s10 = inlined_call_operand.vmem [shape: f32[16,1], index: 10, kind: input, shape index: {}]
  %s11 = inlined_call_operand.vmem [shape: f32[3,16,16], index: 11, kind: input, shape index: {}]
  %s12 = inlined_call_operand.vmem [shape: f32[16,1], index: 12, kind: input, shape index: {}]
  %s13 = inlined_call_operand.vmem [shape: f32[3,128,16], index: 13, kind: input, shape index: {}]
  %s14 = inlined_call_operand.vmem [shape: f32[128,1], index: 14, kind: input, shape index: {}]
  %s15 = inlined_call_operand.vmem [shape: f32[3,128,128], index: 15, kind: input, shape index: {}]
  %s16 = inlined_call_operand.vmem [shape: f32[128,1], index: 16, kind: input, shape index: {}]
  %s17 = inlined_call_operand.vmem [shape: f32[128,16], index: 17, kind: input, shape index: {}]
  %s18 = inlined_call_operand.vmem [shape: f32[128,1], index: 18, kind: input, shape index: {}]
  %s19 = inlined_call_operand.hbm [shape: f32[2,128,128], index: 19, kind: output, shape index: {}]
  %s20 = sld [smem:[#allocation0]]
  $region109: #{tpu_custom_call.1} parent=0
    _
  %s22 = ssub.s32 1, %s20
  %s23 = scalar_select 0, %s22, %s20
  $region1: #{tpu_custom_call.1} parent=0
    #allocation2 [shape = 'u8[131072]{0}', space=vmem, size = 0x20000, scoped, tag = 'output window, operand 0']
    #allocation3 [shape = 's32[2]{0}', space=sflag, size = 0x8, scoped, tag = 'scoped memory for tpu_custom_call.1']
    %24 = vsyncpa [#allocation3], 0
    %s25 = scalar_lea.sflag [#allocation3], 1
    %26 = vsyncpa %s25, 0
    loop: start=0, step=1, limit=4
    $region2: #{tpu_custom_call.1} parent=1 // loop_pre_header
      _
    $region3: #{tpu_custom_call.1} parent=1 // loop_header
      %s28 = sphi 0, %s32
      %p29 = scmp.ge.s32.totalorder %s28, 4
      %s38 = sphi 0, %s40
      %s41 = sphi 0, %s38
      %s42 = sphi 0, %s41
      %s58 = sphi 0, %s42
      %s62 = sphi 0, %s62
      %s64 = sphi 0, %s62
      %s65 = sphi 0, %s64
      %s79 = sphi 0, %s65
      %s83 = sphi 0, %s83
      %s85 = sphi 0, %s83
      %s86 = sphi 0, %s85
      %s100 = sphi 0, %s86
      %s104 = sphi 0, %s104
      %s106 = sphi 0, %s104
      %s107 = sphi 0, %s106
      %s121 = sphi 0, %s107
      %s125 = sphi 0, %s125
      %s127 = sphi 0, %s125
      %s128 = sphi 0, %s127
      %s142 = sphi 0, %s128
      %s146 = sphi 0, %s146
      %s148 = sphi 0, %s146
      %s149 = sphi 0, %s148
      %s163 = sphi 0, %s149
      %s167 = sphi 0, %s167
      %s169 = sphi 0, %s167
      %s170 = sphi 0, %s169
      %s184 = sphi 0, %s170
      %s188 = sphi 0, %s188
      %s190 = sphi 0, %s188
      %s191 = sphi 0, %s190
      %s205 = sphi 0, %s191
      %s209 = sphi 0, %s209
      %s211 = sphi 0, %s209
      %s212 = sphi 0, %s211
      %s226 = sphi 0, %s212
      %s230 = sphi 0, %s230
      %s232 = sphi 0, %s230
      %s233 = sphi 0, %s232
      %s247 = sphi 0, %s233
      %s251 = sphi 0, %s251
      %s253 = sphi 0, %s251
      %s254 = sphi 0, %s253
      %s268 = sphi 0, %s254
      %s272 = sphi 0, %s272
      %s274 = sphi 0, %s272
      %s275 = sphi 0, %s274
      %s289 = sphi 0, %s275
      %s293 = sphi 0, %s293
      %s295 = sphi 0, %s293
      %s296 = sphi 0, %s295
      %s310 = sphi 0, %s296
      %s314 = sphi 0, %s314
      %s316 = sphi 0, %s314
      %s317 = sphi 0, %s316
      %s331 = sphi 0, %s317
      %s335 = sphi 0, %s335
      %s337 = sphi 0, %s335
      %s338 = sphi 0, %s337
      %s352 = sphi 0, %s338
      %s356 = sphi 0, %s356
      %s358 = sphi 0, %s356
      %s359 = sphi 0, %s358
      %s373 = sphi 0, %s359
      %s377 = sphi 0, %s377
      %s379 = sphi 0, %s377
      %s380 = sphi 0, %s379
      %s394 = sphi 0, %s380
      %s398 = sphi 0, %s398
      %s400 = sphi 0, %s398
      %s401 = sphi 0, %s400
      %s415 = sphi 0, %s401
      %s419 = sphi 0, %s419
      %s421 = sphi 0, %s419
      %s422 = sphi 0, %s421
      %s436 = sphi 0, %s422
      %s442 = sphi 0, %s444
      %s445 = sphi 0, %s442
      %s446 = sphi 0, %s445
      %s462 = sphi 0, %s446
    $region4: #{tpu_custom_call.1} parent=1 // loop_header_branch
      %31 = sbr.rel (%p29) target = $region8
    $region5: #{tpu_custom_call.1} parent=1 // loop_body
      %s33 = ssub.s32 %s28, 1
      %s34 = ssub.s32 %s28, 2
      %s35 = sadd.s32 %s28, 1
      %s36 = ssub.s32 %s28, %s35
      %p37 = scmp.eq.s32.totalorder %s36, 0
      %s39 = sadd.s32 %s38, 1
      %s40 = scalar_select %p37, %s38, %s39
      %p43 = pneg %p37
      %p44 = scmp.eq.s32.totalorder %s28, 1
      %p45 = por %p43, %p44
      %p46 = scmp.ne.s32.totalorder %s38, %s41
      %p47 = scmp.eq.s32.totalorder %s28, 0
      %p48 = por %p46, %p47
      %p49 = scmp.ne.s32.totalorder %s38, %s41
      %p50 = scmp.eq.s32.totalorder %s33, 1
      %p51 = por %p49, %p50
      %p52 = scmp.ne.s32.totalorder %s41, %s42
      %p53 = scmp.eq.s32.totalorder %s33, 0
      %p54 = por %p52, %p53
      %p55 = scmp.ne.s32.totalorder %s41, %s42
      %p56 = scmp.eq.s32.totalorder %s34, 1
      %p57 = por %p55, %p56
      %p59 = scmp.ne.s32.totalorder %s42, %s58
      %p60 = scmp.eq.s32.totalorder %s34, 0
      %p61 = por %p59, %p60
      %s63 = sadd.s32 %s62, 1
      %p66 = scmp.eq.s32.totalorder %s28, 1
      %p67 = scmp.ne.s32.totalorder %s62, %s64
      %p68 = scmp.eq.s32.totalorder %s28, 0
      %p69 = por %p67, %p68
      %p70 = scmp.ne.s32.totalorder %s62, %s64
      %p71 = scmp.eq.s32.totalorder %s33, 1
      %p72 = por %p70, %p71
      %p73 = scmp.ne.s32.totalorder %s64, %s65
      %p74 = scmp.eq.s32.totalorder %s33, 0
      %p75 = por %p73, %p74
      %p76 = scmp.ne.s32.totalorder %s64, %s65
      %p77 = scmp.eq.s32.totalorder %s34, 1
      %p78 = por %p76, %p77
      %p80 = scmp.ne.s32.totalorder %s65, %s79
      %p81 = scmp.eq.s32.totalorder %s34, 0
      %p82 = por %p80, %p81
      %s84 = sadd.s32 %s83, 1
      %p87 = scmp.eq.s32.totalorder %s28, 1
      %p88 = scmp.ne.s32.totalorder %s83, %s85
      %p89 = scmp.eq.s32.totalorder %s28, 0
      %p90 = por %p88, %p89
      %p91 = scmp.ne.s32.totalorder %s83, %s85
      %p92 = scmp.eq.s32.totalorder %s33, 1
      %p93 = por %p91, %p92
      %p94 = scmp.ne.s32.totalorder %s85, %s86
      %p95 = scmp.eq.s32.totalorder %s33, 0
      %p96 = por %p94, %p95
      %p97 = scmp.ne.s32.totalorder %s85, %s86
      %p98 = scmp.eq.s32.totalorder %s34, 1
      %p99 = por %p97, %p98
      %p101 = scmp.ne.s32.totalorder %s86, %s100
      %p102 = scmp.eq.s32.totalorder %s34, 0
      %p103 = por %p101, %p102
      %s105 = sadd.s32 %s104, 1
      %p108 = scmp.eq.s32.totalorder %s28, 1
      %p109 = scmp.ne.s32.totalorder %s104, %s106
      %p110 = scmp.eq.s32.totalorder %s28, 0
      %p111 = por %p109, %p110
      %p112 = scmp.ne.s32.totalorder %s104, %s106
      %p113 = scmp.eq.s32.totalorder %s33, 1
      %p114 = por %p112, %p113
      %p115 = scmp.ne.s32.totalorder %s106, %s107
      %p116 = scmp.eq.s32.totalorder %s33, 0
      %p117 = por %p115, %p116
      %p118 = scmp.ne.s32.totalorder %s106, %s107
      %p119 = scmp.eq.s32.totalorder %s34, 1
      %p120 = por %p118, %p119
      %p122 = scmp.ne.s32.totalorder %s107, %s121
      %p123 = scmp.eq.s32.totalorder %s34, 0
      %p124 = por %p122, %p123
      %s126 = sadd.s32 %s125, 1
      %p129 = scmp.eq.s32.totalorder %s28, 1
      %p130 = scmp.ne.s32.totalorder %s125, %s127
      %p131 = scmp.eq.s32.totalorder %s28, 0
      %p132 = por %p130, %p131
      %p133 = scmp.ne.s32.totalorder %s125, %s127
      %p134 = scmp.eq.s32.totalorder %s33, 1
      %p135 = por %p133, %p134
      %p136 = scmp.ne.s32.totalorder %s127, %s128
      %p137 = scmp.eq.s32.totalorder %s33, 0
      %p138 = por %p136, %p137
      %p139 = scmp.ne.s32.totalorder %s127, %s128
      %p140 = scmp.eq.s32.totalorder %s34, 1
      %p141 = por %p139, %p140
      %p143 = scmp.ne.s32.totalorder %s128, %s142
      %p144 = scmp.eq.s32.totalorder %s34, 0
      %p145 = por %p143, %p144
      %s147 = sadd.s32 %s146, 1
      %p150 = scmp.eq.s32.totalorder %s28, 1
      %p151 = scmp.ne.s32.totalorder %s146, %s148
      %p152 = scmp.eq.s32.totalorder %s28, 0
      %p153 = por %p151, %p152
      %p154 = scmp.ne.s32.totalorder %s146, %s148
      %p155 = scmp.eq.s32.totalorder %s33, 1
      %p156 = por %p154, %p155
      %p157 = scmp.ne.s32.totalorder %s148, %s149
      %p158 = scmp.eq.s32.totalorder %s33, 0
      %p159 = por %p157, %p158
      %p160 = scmp.ne.s32.totalorder %s148, %s149
      %p161 = scmp.eq.s32.totalorder %s34, 1
      %p162 = por %p160, %p161
      %p164 = scmp.ne.s32.totalorder %s149, %s163
      %p165 = scmp.eq.s32.totalorder %s34, 0
      %p166 = por %p164, %p165
      %s168 = sadd.s32 %s167, 1
      %p171 = scmp.eq.s32.totalorder %s28, 1
      %p172 = scmp.ne.s32.totalorder %s167, %s169
      %p173 = scmp.eq.s32.totalorder %s28, 0
      %p174 = por %p172, %p173
      %p175 = scmp.ne.s32.totalorder %s167, %s169
      %p176 = scmp.eq.s32.totalorder %s33, 1
      %p177 = por %p175, %p176
      %p178 = scmp.ne.s32.totalorder %s169, %s170
      %p179 = scmp.eq.s32.totalorder %s33, 0
      %p180 = por %p178, %p179
      %p181 = scmp.ne.s32.totalorder %s169, %s170
      %p182 = scmp.eq.s32.totalorder %s34, 1
      %p183 = por %p181, %p182
      %p185 = scmp.ne.s32.totalorder %s170, %s184
      %p186 = scmp.eq.s32.totalorder %s34, 0
      %p187 = por %p185, %p186
      %s189 = sadd.s32 %s188, 1
      %p192 = scmp.eq.s32.totalorder %s28, 1
      %p193 = scmp.ne.s32.totalorder %s188, %s190
      %p194 = scmp.eq.s32.totalorder %s28, 0
      %p195 = por %p193, %p194
      %p196 = scmp.ne.s32.totalorder %s188, %s190
      %p197 = scmp.eq.s32.totalorder %s33, 1
      %p198 = por %p196, %p197
      %p199 = scmp.ne.s32.totalorder %s190, %s191
      %p200 = scmp.eq.s32.totalorder %s33, 0
      %p201 = por %p199, %p200
      %p202 = scmp.ne.s32.totalorder %s190, %s191
      %p203 = scmp.eq.s32.totalorder %s34, 1
      %p204 = por %p202, %p203
      %p206 = scmp.ne.s32.totalorder %s191, %s205
      %p207 = scmp.eq.s32.totalorder %s34, 0
      %p208 = por %p206, %p207
      %s210 = sadd.s32 %s209, 1
      %p213 = scmp.eq.s32.totalorder %s28, 1
      %p214 = scmp.ne.s32.totalorder %s209, %s211
      %p215 = scmp.eq.s32.totalorder %s28, 0
      %p216 = por %p214, %p215
      %p217 = scmp.ne.s32.totalorder %s209, %s211
      %p218 = scmp.eq.s32.totalorder %s33, 1
      %p219 = por %p217, %p218
      %p220 = scmp.ne.s32.totalorder %s211, %s212
      %p221 = scmp.eq.s32.totalorder %s33, 0
      %p222 = por %p220, %p221
      %p223 = scmp.ne.s32.totalorder %s211, %s212
      %p224 = scmp.eq.s32.totalorder %s34, 1
      %p225 = por %p223, %p224
      %p227 = scmp.ne.s32.totalorder %s212, %s226
      %p228 = scmp.eq.s32.totalorder %s34, 0
      %p229 = por %p227, %p228
      %s231 = sadd.s32 %s230, 1
      %p234 = scmp.eq.s32.totalorder %s28, 1
      %p235 = scmp.ne.s32.totalorder %s230, %s232
      %p236 = scmp.eq.s32.totalorder %s28, 0
      %p237 = por %p235, %p236
      %p238 = scmp.ne.s32.totalorder %s230, %s232
      %p239 = scmp.eq.s32.totalorder %s33, 1
      %p240 = por %p238, %p239
      %p241 = scmp.ne.s32.totalorder %s232, %s233
      %p242 = scmp.eq.s32.totalorder %s33, 0
      %p243 = por %p241, %p242
      %p244 = scmp.ne.s32.totalorder %s232, %s233
      %p245 = scmp.eq.s32.totalorder %s34, 1
      %p246 = por %p244, %p245
      %p248 = scmp.ne.s32.totalorder %s233, %s247
      %p249 = scmp.eq.s32.totalorder %s34, 0
      %p250 = por %p248, %p249
      %s252 = sadd.s32 %s251, 1
      %p255 = scmp.eq.s32.totalorder %s28, 1
      %p256 = scmp.ne.s32.totalorder %s251, %s253
      %p257 = scmp.eq.s32.totalorder %s28, 0
      %p258 = por %p256, %p257
      %p259 = scmp.ne.s32.totalorder %s251, %s253
      %p260 = scmp.eq.s32.totalorder %s33, 1
      %p261 = por %p259, %p260
      %p262 = scmp.ne.s32.totalorder %s253, %s254
      %p263 = scmp.eq.s32.totalorder %s33, 0
      %p264 = por %p262, %p263
      %p265 = scmp.ne.s32.totalorder %s253, %s254
      %p266 = scmp.eq.s32.totalorder %s34, 1
      %p267 = por %p265, %p266
      %p269 = scmp.ne.s32.totalorder %s254, %s268
      %p270 = scmp.eq.s32.totalorder %s34, 0
      %p271 = por %p269, %p270
      %s273 = sadd.s32 %s272, 1
      %p276 = scmp.eq.s32.totalorder %s28, 1
      %p277 = scmp.ne.s32.totalorder %s272, %s274
      %p278 = scmp.eq.s32.totalorder %s28, 0
      %p279 = por %p277, %p278
      %p280 = scmp.ne.s32.totalorder %s272, %s274
      %p281 = scmp.eq.s32.totalorder %s33, 1
      %p282 = por %p280, %p281
      %p283 = scmp.ne.s32.totalorder %s274, %s275
      %p284 = scmp.eq.s32.totalorder %s33, 0
      %p285 = por %p283, %p284
      %p286 = scmp.ne.s32.totalorder %s274, %s275
      %p287 = scmp.eq.s32.totalorder %s34, 1
      %p288 = por %p286, %p287
      %p290 = scmp.ne.s32.totalorder %s275, %s289
      %p291 = scmp.eq.s32.totalorder %s34, 0
      %p292 = por %p290, %p291
      %s294 = sadd.s32 %s293, 1
      %p297 = scmp.eq.s32.totalorder %s28, 1
      %p298 = scmp.ne.s32.totalorder %s293, %s295
      %p299 = scmp.eq.s32.totalorder %s28, 0
      %p300 = por %p298, %p299
      %p301 = scmp.ne.s32.totalorder %s293, %s295
      %p302 = scmp.eq.s32.totalorder %s33, 1
      %p303 = por %p301, %p302
      %p304 = scmp.ne.s32.totalorder %s295, %s296
      %p305 = scmp.eq.s32.totalorder %s33, 0
      %p306 = por %p304, %p305
      %p307 = scmp.ne.s32.totalorder %s295, %s296
      %p308 = scmp.eq.s32.totalorder %s34, 1
      %p309 = por %p307, %p308
      %p311 = scmp.ne.s32.totalorder %s296, %s310
      %p312 = scmp.eq.s32.totalorder %s34, 0
      %p313 = por %p311, %p312
      %s315 = sadd.s32 %s314, 1
      %p318 = scmp.eq.s32.totalorder %s28, 1
      %p319 = scmp.ne.s32.totalorder %s314, %s316
      %p320 = scmp.eq.s32.totalorder %s28, 0
      %p321 = por %p319, %p320
      %p322 = scmp.ne.s32.totalorder %s314, %s316
      %p323 = scmp.eq.s32.totalorder %s33, 1
      %p324 = por %p322, %p323
      %p325 = scmp.ne.s32.totalorder %s316, %s317
      %p326 = scmp.eq.s32.totalorder %s33, 0
      %p327 = por %p325, %p326
      %p328 = scmp.ne.s32.totalorder %s316, %s317
      %p329 = scmp.eq.s32.totalorder %s34, 1
      %p330 = por %p328, %p329
      %p332 = scmp.ne.s32.totalorder %s317, %s331
      %p333 = scmp.eq.s32.totalorder %s34, 0
      %p334 = por %p332, %p333
      %s336 = sadd.s32 %s335, 1
      %p339 = scmp.eq.s32.totalorder %s28, 1
      %p340 = scmp.ne.s32.totalorder %s335, %s337
      %p341 = scmp.eq.s32.totalorder %s28, 0
      %p342 = por %p340, %p341
      %p343 = scmp.ne.s32.totalorder %s335, %s337
      %p344 = scmp.eq.s32.totalorder %s33, 1
      %p345 = por %p343, %p344
      %p346 = scmp.ne.s32.totalorder %s337, %s338
      %p347 = scmp.eq.s32.totalorder %s33, 0
      %p348 = por %p346, %p347
      %p349 = scmp.ne.s32.totalorder %s337, %s338
      %p350 = scmp.eq.s32.totalorder %s34, 1
      %p351 = por %p349, %p350
      %p353 = scmp.ne.s32.totalorder %s338, %s352
      %p354 = scmp.eq.s32.totalorder %s34, 0
      %p355 = por %p353, %p354
      %s357 = sadd.s32 %s356, 1
      %p360 = scmp.eq.s32.totalorder %s28, 1
      %p361 = scmp.ne.s32.totalorder %s356, %s358
      %p362 = scmp.eq.s32.totalorder %s28, 0
      %p363 = por %p361, %p362
      %p364 = scmp.ne.s32.totalorder %s356, %s358
      %p365 = scmp.eq.s32.totalorder %s33, 1
      %p366 = por %p364, %p365
      %p367 = scmp.ne.s32.totalorder %s358, %s359
      %p368 = scmp.eq.s32.totalorder %s33, 0
      %p369 = por %p367, %p368
      %p370 = scmp.ne.s32.totalorder %s358, %s359
      %p371 = scmp.eq.s32.totalorder %s34, 1
      %p372 = por %p370, %p371
      %p374 = scmp.ne.s32.totalorder %s359, %s373
      %p375 = scmp.eq.s32.totalorder %s34, 0
      %p376 = por %p374, %p375
      %s378 = sadd.s32 %s377, 1
      %p381 = scmp.eq.s32.totalorder %s28, 1
      %p382 = scmp.ne.s32.totalorder %s377, %s379
      %p383 = scmp.eq.s32.totalorder %s28, 0
      %p384 = por %p382, %p383
      %p385 = scmp.ne.s32.totalorder %s377, %s379
      %p386 = scmp.eq.s32.totalorder %s33, 1
      %p387 = por %p385, %p386
      %p388 = scmp.ne.s32.totalorder %s379, %s380
      %p389 = scmp.eq.s32.totalorder %s33, 0
      %p390 = por %p388, %p389
      %p391 = scmp.ne.s32.totalorder %s379, %s380
      %p392 = scmp.eq.s32.totalorder %s34, 1
      %p393 = por %p391, %p392
      %p395 = scmp.ne.s32.totalorder %s380, %s394
      %p396 = scmp.eq.s32.totalorder %s34, 0
      %p397 = por %p395, %p396
      %s399 = sadd.s32 %s398, 1
      %p402 = scmp.eq.s32.totalorder %s28, 1
      %p403 = scmp.ne.s32.totalorder %s398, %s400
      %p404 = scmp.eq.s32.totalorder %s28, 0
      %p405 = por %p403, %p404
      %p406 = scmp.ne.s32.totalorder %s398, %s400
      %p407 = scmp.eq.s32.totalorder %s33, 1
      %p408 = por %p406, %p407
      %p409 = scmp.ne.s32.totalorder %s400, %s401
      %p410 = scmp.eq.s32.totalorder %s33, 0
      %p411 = por %p409, %p410
      %p412 = scmp.ne.s32.totalorder %s400, %s401
      %p413 = scmp.eq.s32.totalorder %s34, 1
      %p414 = por %p412, %p413
      %p416 = scmp.ne.s32.totalorder %s401, %s415
      %p417 = scmp.eq.s32.totalorder %s34, 0
      %p418 = por %p416, %p417
      %s420 = sadd.s32 %s419, 1
      %p423 = scmp.eq.s32.totalorder %s28, 1
      %p424 = scmp.ne.s32.totalorder %s419, %s421
      %p425 = scmp.eq.s32.totalorder %s28, 0
      %p426 = por %p424, %p425
      %p427 = scmp.ne.s32.totalorder %s419, %s421
      %p428 = scmp.eq.s32.totalorder %s33, 1
      %p429 = por %p427, %p428
      %p430 = scmp.ne.s32.totalorder %s421, %s422
      %p431 = scmp.eq.s32.totalorder %s33, 0
      %p432 = por %p430, %p431
      %p433 = scmp.ne.s32.totalorder %s421, %s422
      %p434 = scmp.eq.s32.totalorder %s34, 1
      %p435 = por %p433, %p434
      %p437 = scmp.ne.s32.totalorder %s422, %s436
      %p438 = scmp.eq.s32.totalorder %s34, 0
      %p439 = por %p437, %p438
      %s440 = ssub.s32 %s28, %s35
      %p441 = scmp.eq.s32.totalorder %s440, 0
      %s443 = sadd.s32 %s442, 1
      %s444 = scalar_select %p441, %s442, %s443
      %p447 = pneg %p441
      %p448 = scmp.eq.s32.totalorder %s28, 1
      %p449 = por %p447, %p448
      %p450 = scmp.ne.s32.totalorder %s442, %s445
      %p451 = scmp.eq.s32.totalorder %s28, 0
      %p452 = por %p450, %p451
      %p453 = scmp.ne.s32.totalorder %s442, %s445
      %p454 = scmp.eq.s32.totalorder %s33, 1
      %p455 = por %p453, %p454
      %p456 = scmp.ne.s32.totalorder %s445, %s446
      %p457 = scmp.eq.s32.totalorder %s33, 0
      %p458 = por %p456, %p457
      %p459 = scmp.ne.s32.totalorder %s445, %s446
      %p460 = scmp.eq.s32.totalorder %s34, 1
      %p461 = por %p459, %p460
      %p463 = scmp.ne.s32.totalorder %s446, %s462
      %p464 = scmp.eq.s32.totalorder %s34, 0
      %p465 = por %p463, %p464
      %p466 = scmp.le.s32.totalorder 1, %s28
      %p467 = scmp.lt.s32.totalorder %s28, 3
      %p468 = pnand %p466, %p467
      %p469 = pneg %p468
      // Predicated region
      $region9: #{tpu_custom_call.1} parent=5 // pred_check
        _
      $region10: #{tpu_custom_call.1} parent=5 // pred_check_branch
        %471 = sbr.rel (%p468) target = $region12
      $region11: #{tpu_custom_call.1} parent=5 // pred_region
        %s472 = ssub.s32 %s28, 1
        // Predicated region
        $region13: #{tpu_custom_call.1} parent=11 // pred_check
          %p473 = pneg %p75
        $region14: #{tpu_custom_call.1} parent=11 // pred_check_branch
          %475 = sbr.rel (%p473) target = $region16
        $region15: #{tpu_custom_call.1} parent=11 // pred_region
          _
        $region16: #{tpu_custom_call.1} parent=11 // pred_fallthru
          _
        // Predicated region
        $region17: #{tpu_custom_call.1} parent=11 // pred_check
          %p476 = pneg %p96
        $region18: #{tpu_custom_call.1} parent=11 // pred_check_branch
          %478 = sbr.rel (%p476) target = $region20
        $region19: #{tpu_custom_call.1} parent=11 // pred_region
          _
        $region20: #{tpu_custom_call.1} parent=11 // pred_fallthru
          _
        // Predicated region
        $region21: #{tpu_custom_call.1} parent=11 // pred_check
          %p479 = pneg %p117
        $region22: #{tpu_custom_call.1} parent=11 // pred_check_branch
          %481 = sbr.rel (%p479) target = $region24
        $region23: #{tpu_custom_call.1} parent=11 // pred_region
          _
        $region24: #{tpu_custom_call.1} parent=11 // pred_fallthru
          _
        // Predicated region
        $region25: #{tpu_custom_call.1} parent=11 // pred_check
          %p482 = pneg %p138
        $region26: #{tpu_custom_call.1} parent=11 // pred_check_branch
          %484 = sbr.rel (%p482) target = $region28
        $region27: #{tpu_custom_call.1} parent=11 // pred_region
          _
        $region28: #{tpu_custom_call.1} parent=11 // pred_fallthru
          _
        // Predicated region
        $region29: #{tpu_custom_call.1} parent=11 // pred_check
          %p485 = pneg %p159
        $region30: #{tpu_custom_call.1} parent=11 // pred_check_branch
          %487 = sbr.rel (%p485) target = $region32
        $region31: #{tpu_custom_call.1} parent=11 // pred_region
          _
        $region32: #{tpu_custom_call.1} parent=11 // pred_fallthru
          _
        // Predicated region
        $region33: #{tpu_custom_call.1} parent=11 // pred_check
          %p488 = pneg %p180
        $region34: #{tpu_custom_call.1} parent=11 // pred_check_branch
          %490 = sbr.rel (%p488) target = $region36
        $region35: #{tpu_custom_call.1} parent=11 // pred_region
          _
        $region36: #{tpu_custom_call.1} parent=11 // pred_fallthru
          _
        // Predicated region
        $region37: #{tpu_custom_call.1} parent=11 // pred_check
          %p491 = pneg %p201
        $region38: #{tpu_custom_call.1} parent=11 // pred_check_branch
          %493 = sbr.rel (%p491) target = $region40
        $region39: #{tpu_custom_call.1} parent=11 // pred_region
          _
        $region40: #{tpu_custom_call.1} parent=11 // pred_fallthru
          _
        // Predicated region
        $region41: #{tpu_custom_call.1} parent=11 // pred_check
          %p494 = pneg %p222
        $region42: #{tpu_custom_call.1} parent=11 // pred_check_branch
          %496 = sbr.rel (%p494) target = $region44
        $region43: #{tpu_custom_call.1} parent=11 // pred_region
          _
        $region44: #{tpu_custom_call.1} parent=11 // pred_fallthru
          _
        // Predicated region
        $region45: #{tpu_custom_call.1} parent=11 // pred_check
          %p497 = pneg %p243
        $region46: #{tpu_custom_call.1} parent=11 // pred_check_branch
          %499 = sbr.rel (%p497) target = $region48
        $region47: #{tpu_custom_call.1} parent=11 // pred_region
          _
        $region48: #{tpu_custom_call.1} parent=11 // pred_fallthru
          _
        // Predicated region
        $region49: #{tpu_custom_call.1} parent=11 // pred_check
          %p500 = pneg %p264
        $region50: #{tpu_custom_call.1} parent=11 // pred_check_branch
          %502 = sbr.rel (%p500) target = $region52
        $region51: #{tpu_custom_call.1} parent=11 // pred_region
          _
        $region52: #{tpu_custom_call.1} parent=11 // pred_fallthru
          _
        // Predicated region
        $region53: #{tpu_custom_call.1} parent=11 // pred_check
          %p503 = pneg %p285
        $region54: #{tpu_custom_call.1} parent=11 // pred_check_branch
          %505 = sbr.rel (%p503) target = $region56
        $region55: #{tpu_custom_call.1} parent=11 // pred_region
          _
        $region56: #{tpu_custom_call.1} parent=11 // pred_fallthru
          _
        // Predicated region
        $region57: #{tpu_custom_call.1} parent=11 // pred_check
          %p506 = pneg %p306
        $region58: #{tpu_custom_call.1} parent=11 // pred_check_branch
          %508 = sbr.rel (%p506) target = $region60
        $region59: #{tpu_custom_call.1} parent=11 // pred_region
          _
        $region60: #{tpu_custom_call.1} parent=11 // pred_fallthru
          _
        // Predicated region
        $region61: #{tpu_custom_call.1} parent=11 // pred_check
          %p509 = pneg %p327
        $region62: #{tpu_custom_call.1} parent=11 // pred_check_branch
          %511 = sbr.rel (%p509) target = $region64
        $region63: #{tpu_custom_call.1} parent=11 // pred_region
          _
        $region64: #{tpu_custom_call.1} parent=11 // pred_fallthru
          _
        // Predicated region
        $region65: #{tpu_custom_call.1} parent=11 // pred_check
          %p512 = pneg %p348
        $region66: #{tpu_custom_call.1} parent=11 // pred_check_branch
          %514 = sbr.rel (%p512) target = $region68
        $region67: #{tpu_custom_call.1} parent=11 // pred_region
          _
        $region68: #{tpu_custom_call.1} parent=11 // pred_fallthru
          _
        // Predicated region
        $region69: #{tpu_custom_call.1} parent=11 // pred_check
          %p515 = pneg %p369
        $region70: #{tpu_custom_call.1} parent=11 // pred_check_branch
          %517 = sbr.rel (%p515) target = $region72
        $region71: #{tpu_custom_call.1} parent=11 // pred_region
          _
        $region72: #{tpu_custom_call.1} parent=11 // pred_fallthru
          _
        // Predicated region
        $region73: #{tpu_custom_call.1} parent=11 // pred_check
          %p518 = pneg %p390
        $region74: #{tpu_custom_call.1} parent=11 // pred_check_branch
          %520 = sbr.rel (%p518) target = $region76
        $region75: #{tpu_custom_call.1} parent=11 // pred_region
          _
        $region76: #{tpu_custom_call.1} parent=11 // pred_fallthru
          _
        // Predicated region
        $region77: #{tpu_custom_call.1} parent=11 // pred_check
          %p521 = pneg %p411
        $region78: #{tpu_custom_call.1} parent=11 // pred_check_branch
          %523 = sbr.rel (%p521) target = $region80
        $region79: #{tpu_custom_call.1} parent=11 // pred_region
          _
        $region80: #{tpu_custom_call.1} parent=11 // pred_fallthru
          _
        // Predicated region
        $region81: #{tpu_custom_call.1} parent=11 // pred_check
          %p524 = pneg %p432
        $region82: #{tpu_custom_call.1} parent=11 // pred_check_branch
          %526 = sbr.rel (%p524) target = $region84
        $region83: #{tpu_custom_call.1} parent=11 // pred_region
          _
        $region84: #{tpu_custom_call.1} parent=11 // pred_fallthru
          _
      $region12: #{tpu_custom_call.1} parent=5 // pred_fallthru
        _
      %p527 = scmp.lt.s32.totalorder %s28, 2
      // Predicated region
      $region85: #{tpu_custom_call.1} parent=5 // pred_check
        %p528 = pneg %p527
      $region86: #{tpu_custom_call.1} parent=5 // pred_check_branch
        %530 = sbr.rel (%p528) target = $region88
      $region87: #{tpu_custom_call.1} parent=5 // pred_region
        // Predicated region
        $region89: #{tpu_custom_call.1} parent=87 // pred_check
          %p531 = pneg %p48
        $region90: #{tpu_custom_call.1} parent=87 // pred_check_branch
          %533 = sbr.rel (%p531) target = $region92
        $region91: #{tpu_custom_call.1} parent=87 // pred_region
          %p534 = scmp.lt.s32.totalorder %s28, 1
          %s535 = scalar_select %p534, %s28, 1
          %s536 = smul.addr %s535, 8
          %s537 = scalar_lea.vmem %s0, %s536
        $region92: #{tpu_custom_call.1} parent=87 // pred_fallthru
          _
      $region88: #{tpu_custom_call.1} parent=5 // pred_fallthru
        _
      %p538 = scmp.le.s32.totalorder 1, %s28
      %p539 = scmp.lt.s32.totalorder %s28, 3
      %p540 = pnand %p538, %p539
      %p541 = pneg %p540
      // Predicated region
      $region93: #{tpu_custom_call.1} parent=5 // pred_check
        _
      $region94: #{tpu_custom_call.1} parent=5 // pred_check_branch
        %543 = sbr.rel (%p540) target = $region96
      $region95: #{tpu_custom_call.1} parent=5 // pred_region
        %s544 = ssub.s32 %s28, 1
        %p545 = scmp.lt.s32.totalorder %s33, 1
        %s546 = scalar_select %p545, %s33, 1
        %s547 = smul.addr %s546, 8
        %s548 = scalar_lea.vmem %s0, %s547
        %p549 = pneg %p54
        %p550 = pneg %p51
        %p551 = pneg %p75
        %p552 = pneg %p72
        %p553 = pneg %p96
        %p554 = pneg %p93
        %p555 = pneg %p117
        %p556 = pneg %p114
        %p557 = pneg %p138
        %p558 = pneg %p135
        %p559 = pneg %p159
        %p560 = pneg %p156
        %p561 = pneg %p180
        %p562 = pneg %p177
        %p563 = pneg %p201
        %p564 = pneg %p198
        %p565 = pneg %p222
        %p566 = pneg %p219
        %p567 = pneg %p243
        %p568 = pneg %p240
        %p569 = pneg %p264
        %p570 = pneg %p261
        %p571 = pneg %p285
        %p572 = pneg %p282
        %p573 = pneg %p306
        %p574 = pneg %p303
        %p575 = pneg %p327
        %p576 = pneg %p324
        %p577 = pneg %p348
        %p578 = pneg %p345
        %p579 = pneg %p369
        %p580 = pneg %p366
        %p581 = pneg %p390
        %p582 = pneg %p387
        %p583 = pneg %p411
        %p584 = pneg %p408
        %p585 = pneg %p432
        %p586 = pneg %p429
        %p587 = pneg %p458
        %p588 = pneg %p455
        %s589 = sand.u32 %s445, 1
        %s590 = scalar_lea.sflag [#allocation3], %s589
        %s591 = sand.u32 %s445, 1
        %s592 = smul.addr %s591, 128
        %s593 = scalar_lea.vmem [#allocation2], %s592
        %p594 = scmp.lt.s32.totalorder %s33, 1
        %s595 = scalar_select %p594, %s33, 1
        %s596 = smul.addr %s595, 8
        %s597 = scalar_lea.vmem %s0, %s596
        %v598 = vlaneseq
        %v599 = vshrl.u32 %v598, 7
        %v600 = vadd.s32 %v599, 8
        %v601 = vadd.s32 %v599, 16
        %v602 = vadd.s32 %v599, 24
        %v603 = vadd.s32 %v599, 32
        %v604 = vadd.s32 %v599, 40
        %v605 = vadd.s32 %v599, 48
        %v606 = vadd.s32 %v599, 56
        %v607 = vadd.s32 %v599, 64
        %v608 = vadd.s32 %v599, 72
        %v609 = vadd.s32 %v599, 80
        %v610 = vadd.s32 %v599, 88
        %v611 = vadd.s32 %v599, 96
        %v612 = vadd.s32 %v599, 104
        %v613 = vadd.s32 %v599, 112
        %v614 = vadd.s32 %v599, 120
        %v615 = vlaneseq
        %v616 = vand.u32 %v615, 127
        %v617 = vld [vmem:[%s597] sm:$0xff]
        %v618 = vld [vmem:[%s1] sm:$0xff]
        %v619 = vld [vmem:[%s1 + $0x8] sm:$0xff]
        %v620 = vld [vmem:[%s1 + $0x10] sm:$0xff]
        %v621 = vld [vmem:[%s1 + $0x18] sm:$0xff]
        %v622 = vld [vmem:[%s2] sm:$0x1]
        %v624 = vlaneseq
        %v625 = vshrl.u32 %v624, 7
        %v626 = vsub.s32 0, %v625
        %v627 = vrot.slane %v622, %v626
        %vm629 = vcmask 261120
        %v631 = vsel %vm629, %v617, 0
        %633 = vmatprep.subr.mxu0 0.0
        %634 = vmatpush1.msra.mxu0 %v618
        %635 = vmatprep.subr.mxu0 0.0
        %636 = vmatpush1.msra.mxu0 %v619
        %637 = vmatprep.subr.mxu0 0.0
        %638 = vmatpush1.msra.mxu0 %v620
        %639 = vmatprep.subr.mxu0 0.0
        %640 = vmatpush1.msra.mxu0 %v621
        %641 = vmatprep.subr.mxu0 0.0
        %642 = vmatpush1.msra.mxu0 0.0
        %643 = vmatprep.subr.mxu0 0.0
        %644 = vmatpush1.msra.mxu0 0.0
        %645 = vmatprep.subr.mxu0 0.0
        %646 = vmatpush1.msra.mxu0 0.0
        %647 = vmatprep.subr.mxu0 0.0
        %648 = vmatpush1.msra.mxu0 0.0
        %649 = vmatprep.subr.mxu0 0.0
        %650 = vmatpush1.msra.mxu0 0.0
        %651 = vmatprep.subr.mxu0 0.0
        %652 = vmatpush1.msra.mxu0 0.0
        %653 = vmatprep.subr.mxu0 0.0
        %654 = vmatpush1.msra.mxu0 0.0
        %655 = vmatprep.subr.mxu0 0.0
        %656 = vmatpush1.msra.mxu0 0.0
        %657 = vmatprep.subr.mxu0 0.0
        %658 = vmatpush1.msra.mxu0 0.0
        %659 = vmatprep.subr.mxu0 0.0
        %660 = vmatpush1.msra.mxu0 0.0
        %661 = vmatprep.subr.mxu0 0.0
        %662 = vmatpush1.msra.mxu0 0.0
        %663 = vmatprep.subr.mxu0 0.0
        %664 = vmatpush1.msra.mxu0 0.0
        %665 = vmatprep.subr.mxu0 0.0
        %666 = vmatpush1.msra.mxu0 0.0
        %667 = vmatprep.subr.mxu0 0.0
        %668 = vmatpush1.msra.mxu0 0.0
        %669 = vmatprep.subr.mxu0 0.0
        %670 = vmatpush1.msra.mxu0 0.0
        %671 = vmatprep.subr.mxu0 0.0
        %672 = vmatpush1.msra.mxu0 0.0
        %673 = vmatprep.subr.mxu0 0.0
        %674 = vmatpush1.msra.mxu0 0.0
        %675 = vmatprep.subr.mxu0 0.0
        %676 = vmatpush1.msra.mxu0 0.0
        %677 = vmatprep.subr.mxu0 0.0
        %678 = vmatpush1.msra.mxu0 0.0
        %679 = vmatprep.subr.mxu0 0.0
        %680 = vmatpush1.msra.mxu0 0.0
        %681 = vmatprep.subr.mxu0 0.0
        %682 = vmatpush1.msra.mxu0 0.0
        %683 = vmatprep.subr.mxu0 0.0
        %684 = vmatpush1.msra.mxu0 0.0
        %685 = vmatprep.subr.mxu0 0.0
        %686 = vmatpush1.msra.mxu0 0.0
        %687 = vmatprep.subr.mxu0 0.0
        %688 = vmatpush1.msra.mxu0 0.0
        %689 = vmatprep.subr.mxu0 0.0
        %690 = vmatpush1.msra.mxu0 0.0
        %691 = vmatprep.subr.mxu0 0.0
        %692 = vmatpush1.msra.mxu0 0.0
        %693 = vmatprep.subr.mxu0 0.0
        %694 = vmatpush1.msra.mxu0 0.0
        %695 = vmatprep.subr.mxu0 0.0
        %696 = vmatpush1.msra.mxu0 0.0
        %697 = vmatprep.mubr.f32.mxu0 0.0
        %698 = vmatmul.mubr.f32.gmra.mrb[0].mxu0 %v631
        %v699 = vpop.f32.mrb[0].mxu0
        %v700 = vadd.f32 %v627, %v699
        %v701 = vpop.f32.mrb[0].mxu0
        %702 = vdwg.mxu0
        %v703 = vld [vmem:[%s3] sm:$0xff]
        %v704 = vld [vmem:[%s3 + $0x8] sm:$0xff]
        %v705 = vsub.s32 %v616, %v599
        %v706 = vsub.s32 %v616, %v600
        %v707 = vsub.s32 %v616, %v601
        %v708 = vsub.s32 %v616, %v602
        %v709 = vsub.s32 %v616, %v603
        %v710 = vsub.s32 %v616, %v604
        %v711 = vsub.s32 %v616, %v605
        %v712 = vsub.s32 %v616, %v606
        %v713 = vsub.s32 %v616, %v607
        %v714 = vsub.s32 %v616, %v608
        %v715 = vsub.s32 %v616, %v609
        %v716 = vsub.s32 %v616, %v610
        %v717 = vsub.s32 %v616, %v611
        %v718 = vsub.s32 %v616, %v612
        %v719 = vsub.s32 %v616, %v613
        %v720 = vsub.s32 %v616, %v614
        %vm721 = vcmp.eq.s32.totalorder %v705, 2
        %vm722 = vcmp.eq.s32.totalorder %v706, 2
        %vm723 = vcmp.eq.s32.totalorder %v707, 2
        %vm724 = vcmp.eq.s32.totalorder %v708, 2
        %vm725 = vcmp.eq.s32.totalorder %v709, 2
        %vm726 = vcmp.eq.s32.totalorder %v710, 2
        %vm727 = vcmp.eq.s32.totalorder %v711, 2
        %vm728 = vcmp.eq.s32.totalorder %v712, 2
        %vm729 = vcmp.eq.s32.totalorder %v713, 2
        %vm730 = vcmp.eq.s32.totalorder %v714, 2
        %vm731 = vcmp.eq.s32.totalorder %v715, 2
        %vm732 = vcmp.eq.s32.totalorder %v716, 2
        %vm733 = vcmp.eq.s32.totalorder %v717, 2
        %vm734 = vcmp.eq.s32.totalorder %v718, 2
        %vm735 = vcmp.eq.s32.totalorder %v719, 2
        %vm736 = vcmp.eq.s32.totalorder %v720, 2
        %v737 = vsel %vm721, 1.0, 0.0
        %v738 = vsel %vm722, 1.0, 0.0
        %v739 = vsel %vm723, 1.0, 0.0
        %v740 = vsel %vm724, 1.0, 0.0
        %v741 = vsel %vm725, 1.0, 0.0
        %v742 = vsel %vm726, 1.0, 0.0
        %v743 = vsel %vm727, 1.0, 0.0
        %v744 = vsel %vm728, 1.0, 0.0
        %v745 = vsel %vm729, 1.0, 0.0
        %v746 = vsel %vm730, 1.0, 0.0
        %v747 = vsel %vm731, 1.0, 0.0
        %v748 = vsel %vm732, 1.0, 0.0
        %v749 = vsel %vm733, 1.0, 0.0
        %v750 = vsel %vm734, 1.0, 0.0
        %v751 = vsel %vm735, 1.0, 0.0
        %v752 = vsel %vm736, 1.0, 0.0
        %753 = vmatprep.subr.mxu0 0.0
        %754 = vmatpush1.msra.mxu0 %v737
        %755 = vmatprep.subr.mxu0 0.0
        %756 = vmatpush1.msra.mxu0 %v738
        %757 = vmatprep.subr.mxu0 0.0
        %758 = vmatpush1.msra.mxu0 %v739
        %759 = vmatprep.subr.mxu0 0.0
        %760 = vmatpush1.msra.mxu0 %v740
        %761 = vmatprep.subr.mxu0 0.0
        %762 = vmatpush1.msra.mxu0 %v741
        %763 = vmatprep.subr.mxu0 0.0
        %764 = vmatpush1.msra.mxu0 %v742
        %765 = vmatprep.subr.mxu0 0.0
        %766 = vmatpush1.msra.mxu0 %v743
        %767 = vmatprep.subr.mxu0 0.0
        %768 = vmatpush1.msra.mxu0 %v744
        %769 = vmatprep.subr.mxu0 0.0
        %770 = vmatpush1.msra.mxu0 %v745
        %771 = vmatprep.subr.mxu0 0.0
        %772 = vmatpush1.msra.mxu0 %v746
        %773 = vmatprep.subr.mxu0 0.0
        %774 = vmatpush1.msra.mxu0 %v747
        %775 = vmatprep.subr.mxu0 0.0
        %776 = vmatpush1.msra.mxu0 %v748
        %777 = vmatprep.subr.mxu0 0.0
        %778 = vmatpush1.msra.mxu0 %v749
        %779 = vmatprep.subr.mxu0 0.0
        %780 = vmatpush1.msra.mxu0 %v750
        %781 = vmatprep.subr.mxu0 0.0
        %782 = vmatpush1.msra.mxu0 %v751
        %783 = vmatprep.subr.mxu0 0.0
        %784 = vmatpush1.msra.mxu0 %v752
        %785 = vmatprep.subr.mxu0 0.0
        %786 = vmatpush1.msra.mxu0 0.0
        %787 = vmatprep.subr.mxu0 0.0
        %788 = vmatpush1.msra.mxu0 0.0
        %789 = vmatprep.subr.mxu0 0.0
        %790 = vmatpush1.msra.mxu0 0.0
        %791 = vmatprep.subr.mxu0 0.0
        %792 = vmatpush1.msra.mxu0 0.0
        %793 = vmatprep.subr.mxu0 0.0
        %794 = vmatpush1.msra.mxu0 0.0
        %795 = vmatprep.subr.mxu0 0.0
        %796 = vmatpush1.msra.mxu0 0.0
        %797 = vmatprep.subr.mxu0 0.0
        %798 = vmatpush1.msra.mxu0 0.0
        %799 = vmatprep.subr.mxu0 0.0
        %800 = vmatpush1.msra.mxu0 0.0
        %801 = vmatprep.subr.mxu0 0.0
        %802 = vmatpush1.msra.mxu0 0.0
        %803 = vmatprep.subr.mxu0 0.0
        %804 = vmatpush1.msra.mxu0 0.0
        %805 = vmatprep.subr.mxu0 0.0
        %806 = vmatpush1.msra.mxu0 0.0
        %807 = vmatprep.subr.mxu0 0.0
        %808 = vmatpush1.msra.mxu0 0.0
        %809 = vmatprep.subr.mxu0 0.0
        %810 = vmatpush1.msra.mxu0 0.0
        %811 = vmatprep.subr.mxu0 0.0
        %812 = vmatpush1.msra.mxu0 0.0
        %813 = vmatprep.subr.mxu0 0.0
        %814 = vmatpush1.msra.mxu0 0.0
        %815 = vmatprep.subr.mxu0 0.0
        %816 = vmatpush1.msra.mxu0 0.0
        %817 = vmatprep.mubr.f32.mxu0 0.0
        %818 = vmatmul.mubr.f32.gmra.mrb[0].mxu0 %v700
        %v819 = vpop.f32.mrb[0].mxu0
        %v820 = vadd.f32 0.0, %v819
        %v821 = vpop.f32.mrb[0].mxu0
        %822 = vdwg.mxu0
        %s823 = scalar_lea.vmem %s3, 16
        %v824 = vld [vmem:[%s823] sm:$0xff]
        %v825 = vld [vmem:[%s823 + $0x8] sm:$0xff]
        %vm826 = vcmp.eq.s32.totalorder %v705, 1
        %vm827 = vcmp.eq.s32.totalorder %v706, 1
        %vm828 = vcmp.eq.s32.totalorder %v707, 1
        %vm829 = vcmp.eq.s32.totalorder %v708, 1
        %vm830 = vcmp.eq.s32.totalorder %v709, 1
        %vm831 = vcmp.eq.s32.totalorder %v710, 1
        %vm832 = vcmp.eq.s32.totalorder %v711, 1
        %vm833 = vcmp.eq.s32.totalorder %v712, 1
        %vm834 = vcmp.eq.s32.totalorder %v713, 1
        %vm835 = vcmp.eq.s32.totalorder %v714, 1
        %vm836 = vcmp.eq.s32.totalorder %v715, 1
        %vm837 = vcmp.eq.s32.totalorder %v716, 1
        %vm838 = vcmp.eq.s32.totalorder %v717, 1
        %vm839 = vcmp.eq.s32.totalorder %v718, 1
        %vm840 = vcmp.eq.s32.totalorder %v719, 1
        %vm841 = vcmp.eq.s32.totalorder %v720, 1
        %v842 = vsel %vm826, 1.0, 0.0
        %v843 = vsel %vm827, 1.0, 0.0
        %v844 = vsel %vm828, 1.0, 0.0
        %v845 = vsel %vm829, 1.0, 0.0
        %v846 = vsel %vm830, 1.0, 0.0
        %v847 = vsel %vm831, 1.0, 0.0
        %v848 = vsel %vm832, 1.0, 0.0
        %v849 = vsel %vm833, 1.0, 0.0
        %v850 = vsel %vm834, 1.0, 0.0
        %v851 = vsel %vm835, 1.0, 0.0
        %v852 = vsel %vm836, 1.0, 0.0
        %v853 = vsel %vm837, 1.0, 0.0
        %v854 = vsel %vm838, 1.0, 0.0
        %v855 = vsel %vm839, 1.0, 0.0
        %v856 = vsel %vm840, 1.0, 0.0
        %v857 = vsel %vm841, 1.0, 0.0
        %858 = vmatprep.subr.mxu0 0.0
        %859 = vmatpush1.msra.mxu0 %v842
        %860 = vmatprep.subr.mxu0 0.0
        %861 = vmatpush1.msra.mxu0 %v843
        %862 = vmatprep.subr.mxu0 0.0
        %863 = vmatpush1.msra.mxu0 %v844
        %864 = vmatprep.subr.mxu0 0.0
        %865 = vmatpush1.msra.mxu0 %v845
        %866 = vmatprep.subr.mxu0 0.0
        %867 = vmatpush1.msra.mxu0 %v846
        %868 = vmatprep.subr.mxu0 0.0
        %869 = vmatpush1.msra.mxu0 %v847
        %870 = vmatprep.subr.mxu0 0.0
        %871 = vmatpush1.msra.mxu0 %v848
        %872 = vmatprep.subr.mxu0 0.0
        %873 = vmatpush1.msra.mxu0 %v849
        %874 = vmatprep.subr.mxu0 0.0
        %875 = vmatpush1.msra.mxu0 %v850
        %876 = vmatprep.subr.mxu0 0.0
        %877 = vmatpush1.msra.mxu0 %v851
        %878 = vmatprep.subr.mxu0 0.0
        %879 = vmatpush1.msra.mxu0 %v852
        %880 = vmatprep.subr.mxu0 0.0
        %881 = vmatpush1.msra.mxu0 %v853
        %882 = vmatprep.subr.mxu0 0.0
        %883 = vmatpush1.msra.mxu0 %v854
        %884 = vmatprep.subr.mxu0 0.0
        %885 = vmatpush1.msra.mxu0 %v855
        %886 = vmatprep.subr.mxu0 0.0
        %887 = vmatpush1.msra.mxu0 %v856
        %888 = vmatprep.subr.mxu0 0.0
        %889 = vmatpush1.msra.mxu0 %v857
        %890 = vmatprep.subr.mxu0 0.0
        %891 = vmatpush1.msra.mxu0 0.0
        %892 = vmatprep.subr.mxu0 0.0
        %893 = vmatpush1.msra.mxu0 0.0
        %894 = vmatprep.subr.mxu0 0.0
        %895 = vmatpush1.msra.mxu0 0.0
        %896 = vmatprep.subr.mxu0 0.0
        %897 = vmatpush1.msra.mxu0 0.0
        %898 = vmatprep.subr.mxu0 0.0
        %899 = vmatpush1.msra.mxu0 0.0
        %900 = vmatprep.subr.mxu0 0.0
        %901 = vmatpush1.msra.mxu0 0.0
        %902 = vmatprep.subr.mxu0 0.0
        %903 = vmatpush1.msra.mxu0 0.0
        %904 = vmatprep.subr.mxu0 0.0
        %905 = vmatpush1.msra.mxu0 0.0
        %906 = vmatprep.subr.mxu0 0.0
        %907 = vmatpush1.msra.mxu0 0.0
        %908 = vmatprep.subr.mxu0 0.0
        %909 = vmatpush1.msra.mxu0 0.0
        %910 = vmatprep.subr.mxu0 0.0
        %911 = vmatpush1.msra.mxu0 0.0
        %912 = vmatprep.subr.mxu0 0.0
        %913 = vmatpush1.msra.mxu0 0.0
        %914 = vmatprep.subr.mxu0 0.0
        %915 = vmatpush1.msra.mxu0 0.0
        %916 = vmatprep.subr.mxu0 0.0
        %917 = vmatpush1.msra.mxu0 0.0
        %918 = vmatprep.subr.mxu0 0.0
        %919 = vmatpush1.msra.mxu0 0.0
        %920 = vmatprep.subr.mxu0 0.0
        %921 = vmatpush1.msra.mxu0 0.0
        %922 = vmatprep.mubr.f32.mxu0 0.0
        %923 = vmatmul.mubr.f32.gmra.mrb[0].mxu0 %v700
        %v924 = vpop.f32.mrb[0].mxu0
        %v925 = vadd.f32 0.0, %v924
        %v926 = vpop.f32.mrb[0].mxu0
        %927 = vdwg.mxu0
        %vm928 = vcmask 64512
        %v930 = vsel %vm928, %v824, 0
        %v933 = vsel %vm928, %v825, 0
        %935 = vmatprep.subr.mxu0 0.0
        %936 = vmatpush1.msra.mxu0 %v925
        %937 = vmatprep.subr.mxu0 0.0
        %938 = vmatpush1.msra.mxu0 0.0
        %939 = vmatprep.subr.mxu0 0.0
        %940 = vmatpush1.msra.mxu0 0.0
        %941 = vmatprep.subr.mxu0 0.0
        %942 = vmatpush1.msra.mxu0 0.0
        %943 = vmatprep.subr.mxu0 0.0
        %944 = vmatpush1.msra.mxu0 0.0
        %945 = vmatprep.subr.mxu0 0.0
        %946 = vmatpush1.msra.mxu0 0.0
        %947 = vmatprep.subr.mxu0 0.0
        %948 = vmatpush1.msra.mxu0 0.0
        %949 = vmatprep.subr.mxu0 0.0
        %950 = vmatpush1.msra.mxu0 0.0
        %951 = vmatprep.subr.mxu0 0.0
        %952 = vmatpush1.msra.mxu0 0.0
        %953 = vmatprep.subr.mxu0 0.0
        %954 = vmatpush1.msra.mxu0 0.0
        %955 = vmatprep.subr.mxu0 0.0
        %956 = vmatpush1.msra.mxu0 0.0
        %957 = vmatprep.subr.mxu0 0.0
        %958 = vmatpush1.msra.mxu0 0.0
        %959 = vmatprep.subr.mxu0 0.0
        %960 = vmatpush1.msra.mxu0 0.0
        %961 = vmatprep.subr.mxu0 0.0
        %962 = vmatpush1.msra.mxu0 0.0
        %963 = vmatprep.subr.mxu0 0.0
        %964 = vmatpush1.msra.mxu0 0.0
        %965 = vmatprep.subr.mxu0 0.0
        %966 = vmatpush1.msra.mxu0 0.0
        %967 = vmatprep.subr.mxu0 0.0
        %968 = vmatpush1.msra.mxu0 0.0
        %969 = vmatprep.subr.mxu0 0.0
        %970 = vmatpush1.msra.mxu0 0.0
        %971 = vmatprep.subr.mxu0 0.0
        %972 = vmatpush1.msra.mxu0 0.0
        %973 = vmatprep.subr.mxu0 0.0
        %974 = vmatpush1.msra.mxu0 0.0
        %975 = vmatprep.subr.mxu0 0.0
        %976 = vmatpush1.msra.mxu0 0.0
        %977 = vmatprep.subr.mxu0 0.0
        %978 = vmatpush1.msra.mxu0 0.0
        %979 = vmatprep.subr.mxu0 0.0
        %980 = vmatpush1.msra.mxu0 0.0
        %981 = vmatprep.subr.mxu0 0.0
        %982 = vmatpush1.msra.mxu0 0.0
        %983 = vmatprep.subr.mxu0 0.0
        %984 = vmatpush1.msra.mxu0 0.0
        %985 = vmatprep.subr.mxu0 0.0
        %986 = vmatpush1.msra.mxu0 0.0
        %987 = vmatprep.subr.mxu0 0.0
        %988 = vmatpush1.msra.mxu0 0.0
        %989 = vmatprep.subr.mxu0 0.0
        %990 = vmatpush1.msra.mxu0 0.0
        %991 = vmatprep.subr.mxu0 0.0
        %992 = vmatpush1.msra.mxu0 0.0
        %993 = vmatprep.subr.mxu0 0.0
        %994 = vmatpush1.msra.mxu0 0.0
        %995 = vmatprep.subr.mxu0 0.0
        %996 = vmatpush1.msra.mxu0 0.0
        %997 = vmatprep.subr.mxu0 0.0
        %998 = vmatpush1.msra.mxu0 0.0
        %999 = vmatprep.mubr.f32.mxu0 0.0
        %1000 = vmatmul.mubr.f32.gmra.mrb[0].mxu0 %v930
        %v1001 = vpop.f32.mrb[0].mxu0
        %v1002 = vadd.f32 0.0, %v1001
        %v1003 = vpop.f32.mrb[0].mxu0
        %1004 = vmatprep.mubr.f32.mxu0 0.0
        %1005 = vmatmul.mubr.f32.gmra.mrb[0].mxu0 %v933
        %v1006 = vpop.f32.mrb[0].mxu0
        %v1007 = vadd.f32 0.0, %v1006
        %v1008 = vpop.f32.mrb[0].mxu0
        %1009 = vdwg.mxu0
        %v1011 = vsel %vm928, %v703, 0
        %v1014 = vsel %vm928, %v704, 0
        %1016 = vmatprep.subr.mxu0 0.0
        %1017 = vmatpush1.msra.mxu0 %v820
        %1018 = vmatprep.subr.mxu0 0.0
        %1019 = vmatpush1.msra.mxu0 0.0
        %1020 = vmatprep.subr.mxu0 0.0
        %1021 = vmatpush1.msra.mxu0 0.0
        %1022 = vmatprep.subr.mxu0 0.0
        %1023 = vmatpush1.msra.mxu0 0.0
        %1024 = vmatprep.subr.mxu0 0.0
        %1025 = vmatpush1.msra.mxu0 0.0
        %1026 = vmatprep.subr.mxu0 0.0
        %1027 = vmatpush1.msra.mxu0 0.0
        %1028 = vmatprep.subr.mxu0 0.0
        %1029 = vmatpush1.msra.mxu0 0.0
        %1030 = vmatprep.subr.mxu0 0.0
        %1031 = vmatpush1.msra.mxu0 0.0
        %1032 = vmatprep.subr.mxu0 0.0
        %1033 = vmatpush1.msra.mxu0 0.0
        %1034 = vmatprep.subr.mxu0 0.0
        %1035 = vmatpush1.msra.mxu0 0.0
        %1036 = vmatprep.subr.mxu0 0.0
        %1037 = vmatpush1.msra.mxu0 0.0
        %1038 = vmatprep.subr.mxu0 0.0
        %1039 = vmatpush1.msra.mxu0 0.0
        %1040 = vmatprep.subr.mxu0 0.0
        %1041 = vmatpush1.msra.mxu0 0.0
        %1042 = vmatprep.subr.mxu0 0.0
        %1043 = vmatpush1.msra.mxu0 0.0
        %1044 = vmatprep.subr.mxu0 0.0
        %1045 = vmatpush1.msra.mxu0 0.0
        %1046 = vmatprep.subr.mxu0 0.0
        %1047 = vmatpush1.msra.mxu0 0.0
        %1048 = vmatprep.subr.mxu0 0.0
        %1049 = vmatpush1.msra.mxu0 0.0
        %1050 = vmatprep.subr.mxu0 0.0
        %1051 = vmatpush1.msra.mxu0 0.0
        %1052 = vmatprep.subr.mxu0 0.0
        %1053 = vmatpush1.msra.mxu0 0.0
        %1054 = vmatprep.subr.mxu0 0.0
        %1055 = vmatpush1.msra.mxu0 0.0
        %1056 = vmatprep.subr.mxu0 0.0
        %1057 = vmatpush1.msra.mxu0 0.0
        %1058 = vmatprep.subr.mxu0 0.0
        %1059 = vmatpush1.msra.mxu0 0.0
        %1060 = vmatprep.subr.mxu0 0.0
        %1061 = vmatpush1.msra.mxu0 0.0
        %1062 = vmatprep.subr.mxu0 0.0
        %1063 = vmatpush1.msra.mxu0 0.0
        %1064 = vmatprep.subr.mxu0 0.0
        %1065 = vmatpush1.msra.mxu0 0.0
        %1066 = vmatprep.subr.mxu0 0.0
        %1067 = vmatpush1.msra.mxu0 0.0
        %1068 = vmatprep.subr.mxu0 0.0
        %1069 = vmatpush1.msra.mxu0 0.0
        %1070 = vmatprep.subr.mxu0 0.0
        %1071 = vmatpush1.msra.mxu0 0.0
        %1072 = vmatprep.subr.mxu0 0.0
        %1073 = vmatpush1.msra.mxu0 0.0
        %1074 = vmatprep.subr.mxu0 0.0
        %1075 = vmatpush1.msra.mxu0 0.0
        %1076 = vmatprep.subr.mxu0 0.0
        %1077 = vmatpush1.msra.mxu0 0.0
        %1078 = vmatprep.subr.mxu0 0.0
        %1079 = vmatpush1.msra.mxu0 0.0
        %1080 = vmatprep.mubr.f32.mxu0 0.0
        %1081 = vmatmul.mubr.f32.gmra.mrb[0].mxu0 %v1011
        %v1082 = vpop.f32.mrb[0].mxu0
        %v1083 = vadd.f32 %v1002, %v1082
        %v1084 = vpop.f32.mrb[0].mxu0
        %1085 = vmatprep.mubr.f32.mxu0 0.0
        %1086 = vmatmul.mubr.f32.gmra.mrb[0].mxu0 %v1014
        %v1087 = vpop.f32.mrb[0].mxu0
        %v1088 = vadd.f32 %v1007, %v1087
        %v1089 = vpop.f32.mrb[0].mxu0
        %1090 = vdwg.mxu0
        %s1091 = scalar_lea.vmem %s3, 32
        %v1092 = vld [vmem:[%s1091] sm:$0xff]
        %v1093 = vld [vmem:[%s1091 + $0x8] sm:$0xff]
        %v1095 = vsel %vm928, %v1092, 0
        %v1098 = vsel %vm928, %v1093, 0
        %1100 = vmatprep.subr.mxu0 0.0
        %1101 = vmatpush1.msra.mxu0 %v700
        %1102 = vmatprep.subr.mxu0 0.0
        %1103 = vmatpush1.msra.mxu0 0.0
        %1104 = vmatprep.subr.mxu0 0.0
        %1105 = vmatpush1.msra.mxu0 0.0
        %1106 = vmatprep.subr.mxu0 0.0
        %1107 = vmatpush1.msra.mxu0 0.0
        %1108 = vmatprep.subr.mxu0 0.0
        %1109 = vmatpush1.msra.mxu0 0.0
        %1110 = vmatprep.subr.mxu0 0.0
        %1111 = vmatpush1.msra.mxu0 0.0
        %1112 = vmatprep.subr.mxu0 0.0
        %1113 = vmatpush1.msra.mxu0 0.0
        %1114 = vmatprep.subr.mxu0 0.0
        %1115 = vmatpush1.msra.mxu0 0.0
        %1116 = vmatprep.subr.mxu0 0.0
        %1117 = vmatpush1.msra.mxu0 0.0
        %1118 = vmatprep.subr.mxu0 0.0
        %1119 = vmatpush1.msra.mxu0 0.0
        %1120 = vmatprep.subr.mxu0 0.0
        %1121 = vmatpush1.msra.mxu0 0.0
        %1122 = vmatprep.subr.mxu0 0.0
        %1123 = vmatpush1.msra.mxu0 0.0
        %1124 = vmatprep.subr.mxu0 0.0
        %1125 = vmatpush1.msra.mxu0 0.0
        %1126 = vmatprep.subr.mxu0 0.0
        %1127 = vmatpush1.msra.mxu0 0.0
        %1128 = vmatprep.subr.mxu0 0.0
        %1129 = vmatpush1.msra.mxu0 0.0
        %1130 = vmatprep.subr.mxu0 0.0
        %1131 = vmatpush1.msra.mxu0 0.0
        %1132 = vmatprep.subr.mxu0 0.0
        %1133 = vmatpush1.msra.mxu0 0.0
        %1134 = vmatprep.subr.mxu0 0.0
        %1135 = vmatpush1.msra.mxu0 0.0
        %1136 = vmatprep.subr.mxu0 0.0
        %1137 = vmatpush1.msra.mxu0 0.0
        %1138 = vmatprep.subr.mxu0 0.0
        %1139 = vmatpush1.msra.mxu0 0.0
        %1140 = vmatprep.subr.mxu0 0.0
        %1141 = vmatpush1.msra.mxu0 0.0
        %1142 = vmatprep.subr.mxu0 0.0
        %1143 = vmatpush1.msra.mxu0 0.0
        %1144 = vmatprep.subr.mxu0 0.0
        %1145 = vmatpush1.msra.mxu0 0.0
        %1146 = vmatprep.subr.mxu0 0.0
        %1147 = vmatpush1.msra.mxu0 0.0
        %1148 = vmatprep.subr.mxu0 0.0
        %1149 = vmatpush1.msra.mxu0 0.0
        %1150 = vmatprep.subr.mxu0 0.0
        %1151 = vmatpush1.msra.mxu0 0.0
        %1152 = vmatprep.subr.mxu0 0.0
        %1153 = vmatpush1.msra.mxu0 0.0
        %1154 = vmatprep.subr.mxu0 0.0
        %1155 = vmatpush1.msra.mxu0 0.0
        %1156 = vmatprep.subr.mxu0 0.0
        %1157 = vmatpush1.msra.mxu0 0.0
        %1158 = vmatprep.subr.mxu0 0.0
        %1159 = vmatpush1.msra.mxu0 0.0
        %1160 = vmatprep.subr.mxu0 0.0
        %1161 = vmatpush1.msra.mxu0 0.0
        %1162 = vmatprep.subr.mxu0 0.0
        %1163 = vmatpush1.msra.mxu0 0.0
        %1164 = vmatprep.mubr.f32.mxu0 0.0
        %1165 = vmatmul.mubr.f32.gmra.mrb[0].mxu0 %v1095
        %v1166 = vpop.f32.mrb[0].mxu0
        %v1167 = vadd.f32 0.0, %v1166
        %v1168 = vpop.f32.mrb[0].mxu0
        %1169 = vmatprep.mubr.f32.mxu0 0.0
        %1170 = vmatmul.mubr.f32.gmra.mrb[0].mxu0 %v1098
        %v1171 = vpop.f32.mrb[0].mxu0
        %v1172 = vadd.f32 0.0, %v1171
        %v1173 = vpop.f32.mrb[0].mxu0
        %1174 = vdwg.mxu0
        %v1175 = vadd.f32 %v1083, %v1167
        %v1176 = vadd.f32 %v1088, %v1172
        %v1177 = vld [vmem:[%s4] sm:$0xff]
        %v1178 = vld [vmem:[%s4 + $0x8] sm:$0xff]
        %1180 = vset.pattern.permute.xlu0 0
        %1181 = vperm.xlu0 %1180, %v1177
        %v1182 = vpop.permute.xlu0 %1181
        %1185 = vset.pattern.permute.xlu0 0
        %1186 = vperm.xlu0 %1185, %v1178
        %v1187 = vpop.permute.xlu0 %1186
        %v1189 = vadd.f32 %v1175, %v1182
        %v1190 = vadd.f32 %v1176, %v1187
        %v1191 = vmax.f32 %v1189, 0.0
        %v1192 = vmax.f32 %v1190, 0.0
        %v1193 = vld [vmem:[%s5] sm:$0xff]
        %v1194 = vld [vmem:[%s5 + $0x8] sm:$0xff]
        %1195 = vmatprep.subr.mxu0 0.0
        %1196 = vmatpush1.msra.mxu0 %v737
        %1197 = vmatprep.subr.mxu0 0.0
        %1198 = vmatpush1.msra.mxu0 %v738
        %1199 = vmatprep.subr.mxu0 0.0
        %1200 = vmatpush1.msra.mxu0 %v739
        %1201 = vmatprep.subr.mxu0 0.0
        %1202 = vmatpush1.msra.mxu0 %v740
        %1203 = vmatprep.subr.mxu0 0.0
        %1204 = vmatpush1.msra.mxu0 %v741
        %1205 = vmatprep.subr.mxu0 0.0
        %1206 = vmatpush1.msra.mxu0 %v742
        %1207 = vmatprep.subr.mxu0 0.0
        %1208 = vmatpush1.msra.mxu0 %v743
        %1209 = vmatprep.subr.mxu0 0.0
        %1210 = vmatpush1.msra.mxu0 %v744
        %1211 = vmatprep.subr.mxu0 0.0
        %1212 = vmatpush1.msra.mxu0 %v745
        %1213 = vmatprep.subr.mxu0 0.0
        %1214 = vmatpush1.msra.mxu0 %v746
        %1215 = vmatprep.subr.mxu0 0.0
        %1216 = vmatpush1.msra.mxu0 %v747
        %1217 = vmatprep.subr.mxu0 0.0
        %1218 = vmatpush1.msra.mxu0 %v748
        %1219 = vmatprep.subr.mxu0 0.0
        %1220 = vmatpush1.msra.mxu0 %v749
        %1221 = vmatprep.subr.mxu0 0.0
        %1222 = vmatpush1.msra.mxu0 %v750
        %1223 = vmatprep.subr.mxu0 0.0
        %1224 = vmatpush1.msra.mxu0 %v751
        %1225 = vmatprep.subr.mxu0 0.0
        %1226 = vmatpush1.msra.mxu0 %v752
        %1227 = vmatprep.subr.mxu0 0.0
        %1228 = vmatpush1.msra.mxu0 0.0
        %1229 = vmatprep.subr.mxu0 0.0
        %1230 = vmatpush1.msra.mxu0 0.0
        %1231 = vmatprep.subr.mxu0 0.0
        %1232 = vmatpush1.msra.mxu0 0.0
        %1233 = vmatprep.subr.mxu0 0.0
        %1234 = vmatpush1.msra.mxu0 0.0
        %1235 = vmatprep.subr.mxu0 0.0
        %1236 = vmatpush1.msra.mxu0 0.0
        %1237 = vmatprep.subr.mxu0 0.0
        %1238 = vmatpush1.msra.mxu0 0.0
        %1239 = vmatprep.subr.mxu0 0.0
        %1240 = vmatpush1.msra.mxu0 0.0
        %1241 = vmatprep.subr.mxu0 0.0
        %1242 = vmatpush1.msra.mxu0 0.0
        %1243 = vmatprep.subr.mxu0 0.0
        %1244 = vmatpush1.msra.mxu0 0.0
        %1245 = vmatprep.subr.mxu0 0.0
        %1246 = vmatpush1.msra.mxu0 0.0
        %1247 = vmatprep.subr.mxu0 0.0
        %1248 = vmatpush1.msra.mxu0 0.0
        %1249 = vmatprep.subr.mxu0 0.0
        %1250 = vmatpush1.msra.mxu0 0.0
        %1251 = vmatprep.subr.mxu0 0.0
        %1252 = vmatpush1.msra.mxu0 0.0
        %1253 = vmatprep.subr.mxu0 0.0
        %1254 = vmatpush1.msra.mxu0 0.0
        %1255 = vmatprep.subr.mxu0 0.0
        %1256 = vmatpush1.msra.mxu0 0.0
        %1257 = vmatprep.subr.mxu0 0.0
        %1258 = vmatpush1.msra.mxu0 0.0
        %1259 = vmatprep.mubr.f32.mxu0 0.0
        %1260 = vmatmul.mubr.f32.gmra.mrb[0].mxu0 %v1191
        %v1261 = vpop.f32.mrb[0].mxu0
        %v1262 = vadd.f32 0.0, %v1261
        %v1263 = vpop.f32.mrb[0].mxu0
        %1264 = vmatprep.mubr.f32.mxu0 0.0
        %1265 = vmatmul.mubr.f32.gmra.mrb[0].mxu0 %v1192
        %v1266 = vpop.f32.mrb[0].mxu0
        %v1267 = vadd.f32 0.0, %v1266
        %v1268 = vpop.f32.mrb[0].mxu0
        %1269 = vdwg.mxu0
        %s1270 = scalar_lea.vmem %s5, 16
        %v1271 = vld [vmem:[%s1270] sm:$0xff]
        %v1272 = vld [vmem:[%s1270 + $0x8] sm:$0xff]
        %1273 = vmatprep.subr.mxu0 0.0
        %1274 = vmatpush1.msra.mxu0 %v842
        %1275 = vmatprep.subr.mxu0 0.0
        %1276 = vmatpush1.msra.mxu0 %v843
        %1277 = vmatprep.subr.mxu0 0.0
        %1278 = vmatpush1.msra.mxu0 %v844
        %1279 = vmatprep.subr.mxu0 0.0
        %1280 = vmatpush1.msra.mxu0 %v845
        %1281 = vmatprep.subr.mxu0 0.0
        %1282 = vmatpush1.msra.mxu0 %v846
        %1283 = vmatprep.subr.mxu0 0.0
        %1284 = vmatpush1.msra.mxu0 %v847
        %1285 = vmatprep.subr.mxu0 0.0
        %1286 = vmatpush1.msra.mxu0 %v848
        %1287 = vmatprep.subr.mxu0 0.0
        %1288 = vmatpush1.msra.mxu0 %v849
        %1289 = vmatprep.subr.mxu0 0.0
        %1290 = vmatpush1.msra.mxu0 %v850
        %1291 = vmatprep.subr.mxu0 0.0
        %1292 = vmatpush1.msra.mxu0 %v851
        %1293 = vmatprep.subr.mxu0 0.0
        %1294 = vmatpush1.msra.mxu0 %v852
        %1295 = vmatprep.subr.mxu0 0.0
        %1296 = vmatpush1.msra.mxu0 %v853
        %1297 = vmatprep.subr.mxu0 0.0
        %1298 = vmatpush1.msra.mxu0 %v854
        %1299 = vmatprep.subr.mxu0 0.0
        %1300 = vmatpush1.msra.mxu0 %v855
        %1301 = vmatprep.subr.mxu0 0.0
        %1302 = vmatpush1.msra.mxu0 %v856
        %1303 = vmatprep.subr.mxu0 0.0
        %1304 = vmatpush1.msra.mxu0 %v857
        %1305 = vmatprep.subr.mxu0 0.0
        %1306 = vmatpush1.msra.mxu0 0.0
        %1307 = vmatprep.subr.mxu0 0.0
        %1308 = vmatpush1.msra.mxu0 0.0
        %1309 = vmatprep.subr.mxu0 0.0
        %1310 = vmatpush1.msra.mxu0 0.0
        %1311 = vmatprep.subr.mxu0 0.0
        %1312 = vmatpush1.msra.mxu0 0.0
        %1313 = vmatprep.subr.mxu0 0.0
        %1314 = vmatpush1.msra.mxu0 0.0
        %1315 = vmatprep.subr.mxu0 0.0
        %1316 = vmatpush1.msra.mxu0 0.0
        %1317 = vmatprep.subr.mxu0 0.0
        %1318 = vmatpush1.msra.mxu0 0.0
        %1319 = vmatprep.subr.mxu0 0.0
        %1320 = vmatpush1.msra.mxu0 0.0
        %1321 = vmatprep.subr.mxu0 0.0
        %1322 = vmatpush1.msra.mxu0 0.0
        %1323 = vmatprep.subr.mxu0 0.0
        %1324 = vmatpush1.msra.mxu0 0.0
        %1325 = vmatprep.subr.mxu0 0.0
        %1326 = vmatpush1.msra.mxu0 0.0
        %1327 = vmatprep.subr.mxu0 0.0
        %1328 = vmatpush1.msra.mxu0 0.0
        %1329 = vmatprep.subr.mxu0 0.0
        %1330 = vmatpush1.msra.mxu0 0.0
        %1331 = vmatprep.subr.mxu0 0.0
        %1332 = vmatpush1.msra.mxu0 0.0
        %1333 = vmatprep.subr.mxu0 0.0
        %1334 = vmatpush1.msra.mxu0 0.0
        %1335 = vmatprep.subr.mxu0 0.0
        %1336 = vmatpush1.msra.mxu0 0.0
        %1337 = vmatprep.mubr.f32.mxu0 0.0
        %1338 = vmatmul.mubr.f32.gmra.mrb[0].mxu0 %v1191
        %v1339 = vpop.f32.mrb[0].mxu0
        %v1340 = vadd.f32 0.0, %v1339
        %v1341 = vpop.f32.mrb[0].mxu0
        %1342 = vmatprep.mubr.f32.mxu0 0.0
        %1343 = vmatmul.mubr.f32.gmra.mrb[0].mxu0 %v1192
        %v1344 = vpop.f32.mrb[0].mxu0
        %v1345 = vadd.f32 0.0, %v1344
        %v1346 = vpop.f32.mrb[0].mxu0
        %1347 = vdwg.mxu0
        %vm1348 = vcmask 130048
        %v1350 = vsel %vm1348, %v1271, 0
        %v1353 = vsel %vm1348, %v1272, 0
        %1355 = vmatprep.subr.mxu0 0.0
        %1356 = vmatpush1.msra.mxu0 %v1340
        %1357 = vmatprep.subr.mxu0 0.0
        %1358 = vmatpush1.msra.mxu0 %v1345
        %1359 = vmatprep.subr.mxu0 0.0
        %1360 = vmatpush1.msra.mxu0 0.0
        %1361 = vmatprep.subr.mxu0 0.0
        %1362 = vmatpush1.msra.mxu0 0.0
        %1363 = vmatprep.subr.mxu0 0.0
        %1364 = vmatpush1.msra.mxu0 0.0
        %1365 = vmatprep.subr.mxu0 0.0
        %1366 = vmatpush1.msra.mxu0 0.0
        %1367 = vmatprep.subr.mxu0 0.0
        %1368 = vmatpush1.msra.mxu0 0.0
        %1369 = vmatprep.subr.mxu0 0.0
        %1370 = vmatpush1.msra.mxu0 0.0
        %1371 = vmatprep.subr.mxu0 0.0
        %1372 = vmatpush1.msra.mxu0 0.0
        %1373 = vmatprep.subr.mxu0 0.0
        %1374 = vmatpush1.msra.mxu0 0.0
        %1375 = vmatprep.subr.mxu0 0.0
        %1376 = vmatpush1.msra.mxu0 0.0
        %1377 = vmatprep.subr.mxu0 0.0
        %1378 = vmatpush1.msra.mxu0 0.0
        %1379 = vmatprep.subr.mxu0 0.0
        %1380 = vmatpush1.msra.mxu0 0.0
        %1381 = vmatprep.subr.mxu0 0.0
        %1382 = vmatpush1.msra.mxu0 0.0
        %1383 = vmatprep.subr.mxu0 0.0
        %1384 = vmatpush1.msra.mxu0 0.0
        %1385 = vmatprep.subr.mxu0 0.0
        %1386 = vmatpush1.msra.mxu0 0.0
        %1387 = vmatprep.subr.mxu0 0.0
        %1388 = vmatpush1.msra.mxu0 0.0
        %1389 = vmatprep.subr.mxu0 0.0
        %1390 = vmatpush1.msra.mxu0 0.0
        %1391 = vmatprep.subr.mxu0 0.0
        %1392 = vmatpush1.msra.mxu0 0.0
        %1393 = vmatprep.subr.mxu0 0.0
        %1394 = vmatpush1.msra.mxu0 0.0
        %1395 = vmatprep.subr.mxu0 0.0
        %1396 = vmatpush1.msra.mxu0 0.0
        %1397 = vmatprep.subr.mxu0 0.0
        %1398 = vmatpush1.msra.mxu0 0.0
        %1399 = vmatprep.subr.mxu0 0.0
        %1400 = vmatpush1.msra.mxu0 0.0
        %1401 = vmatprep.subr.mxu0 0.0
        %1402 = vmatpush1.msra.mxu0 0.0
        %1403 = vmatprep.subr.mxu0 0.0
        %1404 = vmatpush1.msra.mxu0 0.0
        %1405 = vmatprep.subr.mxu0 0.0
        %1406 = vmatpush1.msra.mxu0 0.0
        %1407 = vmatprep.subr.mxu0 0.0
        %1408 = vmatpush1.msra.mxu0 0.0
        %1409 = vmatprep.subr.mxu0 0.0
        %1410 = vmatpush1.msra.mxu0 0.0
        %1411 = vmatprep.subr.mxu0 0.0
        %1412 = vmatpush1.msra.mxu0 0.0
        %1413 = vmatprep.subr.mxu0 0.0
        %1414 = vmatpush1.msra.mxu0 0.0
        %1415 = vmatprep.subr.mxu0 0.0
        %1416 = vmatpush1.msra.mxu0 0.0
        %1417 = vmatprep.subr.mxu0 0.0
        %1418 = vmatpush1.msra.mxu0 0.0
        %1419 = vmatprep.mubr.f32.mxu0 0.0
        %1420 = vmatmul.mubr.f32.gmra.mrb[0].mxu0 %v1350
        %v1421 = vpop.f32.mrb[0].mxu0
        %v1422 = vadd.f32 0.0, %v1421
        %v1423 = vpop.f32.mrb[0].mxu0
        %1424 = vmatprep.mubr.f32.mxu0 0.0
        %1425 = vmatmul.mubr.f32.gmra.mrb[0].mxu0 %v1353
        %v1426 = vpop.f32.mrb[0].mxu0
        %v1427 = vadd.f32 0.0, %v1426
        %v1428 = vpop.f32.mrb[0].mxu0
        %1429 = vdwg.mxu0
        %v1431 = vsel %vm1348, %v1193, 0
        %v1434 = vsel %vm1348, %v1194, 0
        %1436 = vmatprep.subr.mxu0 0.0
        %1437 = vmatpush1.msra.mxu0 %v1262
        %1438 = vmatprep.subr.mxu0 0.0
        %1439 = vmatpush1.msra.mxu0 %v1267
        %1440 = vmatprep.subr.mxu0 0.0
        %1441 = vmatpush1.msra.mxu0 0.0
        %1442 = vmatprep.subr.mxu0 0.0
        %1443 = vmatpush1.msra.mxu0 0.0
        %1444 = vmatprep.subr.mxu0 0.0
        %1445 = vmatpush1.msra.mxu0 0.0
        %1446 = vmatprep.subr.mxu0 0.0
        %1447 = vmatpush1.msra.mxu0 0.0
        %1448 = vmatprep.subr.mxu0 0.0
        %1449 = vmatpush1.msra.mxu0 0.0
        %1450 = vmatprep.subr.mxu0 0.0
        %1451 = vmatpush1.msra.mxu0 0.0
        %1452 = vmatprep.subr.mxu0 0.0
        %1453 = vmatpush1.msra.mxu0 0.0
        %1454 = vmatprep.subr.mxu0 0.0
        %1455 = vmatpush1.msra.mxu0 0.0
        %1456 = vmatprep.subr.mxu0 0.0
        %1457 = vmatpush1.msra.mxu0 0.0
        %1458 = vmatprep.subr.mxu0 0.0
        %1459 = vmatpush1.msra.mxu0 0.0
        %1460 = vmatprep.subr.mxu0 0.0
        %1461 = vmatpush1.msra.mxu0 0.0
        %1462 = vmatprep.subr.mxu0 0.0
        %1463 = vmatpush1.msra.mxu0 0.0
        %1464 = vmatprep.subr.mxu0 0.0
        %1465 = vmatpush1.msra.mxu0 0.0
        %1466 = vmatprep.subr.mxu0 0.0
        %1467 = vmatpush1.msra.mxu0 0.0
        %1468 = vmatprep.subr.mxu0 0.0
        %1469 = vmatpush1.msra.mxu0 0.0
        %1470 = vmatprep.subr.mxu0 0.0
        %1471 = vmatpush1.msra.mxu0 0.0
        %1472 = vmatprep.subr.mxu0 0.0
        %1473 = vmatpush1.msra.mxu0 0.0
        %1474 = vmatprep.subr.mxu0 0.0
        %1475 = vmatpush1.msra.mxu0 0.0
        %1476 = vmatprep.subr.mxu0 0.0
        %1477 = vmatpush1.msra.mxu0 0.0
        %1478 = vmatprep.subr.mxu0 0.0
        %1479 = vmatpush1.msra.mxu0 0.0
        %1480 = vmatprep.subr.mxu0 0.0
        %1481 = vmatpush1.msra.mxu0 0.0
        %1482 = vmatprep.subr.mxu0 0.0
        %1483 = vmatpush1.msra.mxu0 0.0
        %1484 = vmatprep.subr.mxu0 0.0
        %1485 = vmatpush1.msra.mxu0 0.0
        %1486 = vmatprep.subr.mxu0 0.0
        %1487 = vmatpush1.msra.mxu0 0.0
        %1488 = vmatprep.subr.mxu0 0.0
        %1489 = vmatpush1.msra.mxu0 0.0
        %1490 = vmatprep.subr.mxu0 0.0
        %1491 = vmatpush1.msra.mxu0 0.0
        %1492 = vmatprep.subr.mxu0 0.0
        %1493 = vmatpush1.msra.mxu0 0.0
        %1494 = vmatprep.subr.mxu0 0.0
        %1495 = vmatpush1.msra.mxu0 0.0
        %1496 = vmatprep.subr.mxu0 0.0
        %1497 = vmatpush1.msra.mxu0 0.0
        %1498 = vmatprep.subr.mxu0 0.0
        %1499 = vmatpush1.msra.mxu0 0.0
        %1500 = vmatprep.mubr.f32.mxu0 0.0
        %1501 = vmatmul.mubr.f32.gmra.mrb[0].mxu0 %v1431
        %v1502 = vpop.f32.mrb[0].mxu0
        %v1503 = vadd.f32 %v1422, %v1502
        %v1504 = vpop.f32.mrb[0].mxu0
        %1505 = vmatprep.mubr.f32.mxu0 0.0
        %1506 = vmatmul.mubr.f32.gmra.mrb[0].mxu0 %v1434
        %v1507 = vpop.f32.mrb[0].mxu0
        %v1508 = vadd.f32 %v1427, %v1507
        %v1509 = vpop.f32.mrb[0].mxu0
        %1510 = vdwg.mxu0
        %s1511 = scalar_lea.vmem %s5, 32
        %v1512 = vld [vmem:[%s1511] sm:$0xff]
        %v1513 = vld [vmem:[%s1511 + $0x8] sm:$0xff]
        %v1515 = vsel %vm1348, %v1512, 0
        %v1518 = vsel %vm1348, %v1513, 0
        %1520 = vmatprep.subr.mxu0 0.0
        %1521 = vmatpush1.msra.mxu0 %v1191
        %1522 = vmatprep.subr.mxu0 0.0
        %1523 = vmatpush1.msra.mxu0 %v1192
        %1524 = vmatprep.subr.mxu0 0.0
        %1525 = vmatpush1.msra.mxu0 0.0
        %1526 = vmatprep.subr.mxu0 0.0
        %1527 = vmatpush1.msra.mxu0 0.0
        %1528 = vmatprep.subr.mxu0 0.0
        %1529 = vmatpush1.msra.mxu0 0.0
        %1530 = vmatprep.subr.mxu0 0.0
        %1531 = vmatpush1.msra.mxu0 0.0
        %1532 = vmatprep.subr.mxu0 0.0
        %1533 = vmatpush1.msra.mxu0 0.0
        %1534 = vmatprep.subr.mxu0 0.0
        %1535 = vmatpush1.msra.mxu0 0.0
        %1536 = vmatprep.subr.mxu0 0.0
        %1537 = vmatpush1.msra.mxu0 0.0
        %1538 = vmatprep.subr.mxu0 0.0
        %1539 = vmatpush1.msra.mxu0 0.0
        %1540 = vmatprep.subr.mxu0 0.0
        %1541 = vmatpush1.msra.mxu0 0.0
        %1542 = vmatprep.subr.mxu0 0.0
        %1543 = vmatpush1.msra.mxu0 0.0
        %1544 = vmatprep.subr.mxu0 0.0
        %1545 = vmatpush1.msra.mxu0 0.0
        %1546 = vmatprep.subr.mxu0 0.0
        %1547 = vmatpush1.msra.mxu0 0.0
        %1548 = vmatprep.subr.mxu0 0.0
        %1549 = vmatpush1.msra.mxu0 0.0
        %1550 = vmatprep.subr.mxu0 0.0
        %1551 = vmatpush1.msra.mxu0 0.0
        %1552 = vmatprep.subr.mxu0 0.0
        %1553 = vmatpush1.msra.mxu0 0.0
        %1554 = vmatprep.subr.mxu0 0.0
        %1555 = vmatpush1.msra.mxu0 0.0
        %1556 = vmatprep.subr.mxu0 0.0
        %1557 = vmatpush1.msra.mxu0 0.0
        %1558 = vmatprep.subr.mxu0 0.0
        %1559 = vmatpush1.msra.mxu0 0.0
        %1560 = vmatprep.subr.mxu0 0.0
        %1561 = vmatpush1.msra.mxu0 0.0
        %1562 = vmatprep.subr.mxu0 0.0
        %1563 = vmatpush1.msra.mxu0 0.0
        %1564 = vmatprep.subr.mxu0 0.0
        %1565 = vmatpush1.msra.mxu0 0.0
        %1566 = vmatprep.subr.mxu0 0.0
        %1567 = vmatpush1.msra.mxu0 0.0
        %1568 = vmatprep.subr.mxu0 0.0
        %1569 = vmatpush1.msra.mxu0 0.0
        %1570 = vmatprep.subr.mxu0 0.0
        %1571 = vmatpush1.msra.mxu0 0.0
        %1572 = vmatprep.subr.mxu0 0.0
        %1573 = vmatpush1.msra.mxu0 0.0
        %1574 = vmatprep.subr.mxu0 0.0
        %1575 = vmatpush1.msra.mxu0 0.0
        %1576 = vmatprep.subr.mxu0 0.0
        %1577 = vmatpush1.msra.mxu0 0.0
        %1578 = vmatprep.subr.mxu0 0.0
        %1579 = vmatpush1.msra.mxu0 0.0
        %1580 = vmatprep.subr.mxu0 0.0
        %1581 = vmatpush1.msra.mxu0 0.0
        %1582 = vmatprep.subr.mxu0 0.0
        %1583 = vmatpush1.msra.mxu0 0.0
        %1584 = vmatprep.mubr.f32.mxu0 0.0
        %1585 = vmatmul.mubr.f32.gmra.mrb[0].mxu0 %v1515
        %v1586 = vpop.f32.mrb[0].mxu0
        %v1587 = vadd.f32 0.0, %v1586
        %v1588 = vpop.f32.mrb[0].mxu0
        %1589 = vmatprep.mubr.f32.mxu0 0.0
        %1590 = vmatmul.mubr.f32.gmra.mrb[0].mxu0 %v1518
        %v1591 = vpop.f32.mrb[0].mxu0
        %v1592 = vadd.f32 0.0, %v1591
        %v1593 = vpop.f32.mrb[0].mxu0
        %1594 = vdwg.mxu0
        %v1595 = vadd.f32 %v1503, %v1587
        %v1596 = vadd.f32 %v1508, %v1592
        %v1597 = vld [vmem:[%s6] sm:$0xff]
        %v1598 = vld [vmem:[%s6 + $0x8] sm:$0xff]
        %1600 = vset.pattern.permute.xlu0 0
        %1601 = vperm.xlu0 %1600, %v1597
        %v1602 = vpop.permute.xlu0 %1601
        %1605 = vset.pattern.permute.xlu0 0
        %1606 = vperm.xlu0 %1605, %v1598
        %v1607 = vpop.permute.xlu0 %1606
        %v1609 = vadd.f32 %v1595, %v1602
        %v1610 = vadd.f32 %v1596, %v1607
        %v1611 = vmax.f32 %v1609, 0.0
        %v1612 = vmax.f32 %v1610, 0.0
        %v1613 = vld [vmem:[%s7] sm:$0xff]
        %v1614 = vld [vmem:[%s7 + $0x8] sm:$0xff]
        %v1615 = vld [vmem:[%s8] sm:$0xff]
        %v1616 = vld [vmem:[%s8 + $0x8] sm:$0xff]
        %1618 = vset.pattern.permute.xlu0 0
        %1619 = vperm.xlu0 %1618, %v1615
        %v1620 = vpop.permute.xlu0 %1619
        %1623 = vset.pattern.permute.xlu0 0
        %1624 = vperm.xlu0 %1623, %v1616
        %v1625 = vpop.permute.xlu0 %1624
        %v1628 = vsel %vm928, %v1613, 0
        %v1631 = vsel %vm928, %v1614, 0
        %1633 = vmatprep.subr.mxu0 0.0
        %1634 = vmatpush1.msra.mxu0 %v700
        %1635 = vmatprep.subr.mxu0 0.0
        %1636 = vmatpush1.msra.mxu0 0.0
        %1637 = vmatprep.subr.mxu0 0.0
        %1638 = vmatpush1.msra.mxu0 0.0
        %1639 = vmatprep.subr.mxu0 0.0
        %1640 = vmatpush1.msra.mxu0 0.0
        %1641 = vmatprep.subr.mxu0 0.0
        %1642 = vmatpush1.msra.mxu0 0.0
        %1643 = vmatprep.subr.mxu0 0.0
        %1644 = vmatpush1.msra.mxu0 0.0
        %1645 = vmatprep.subr.mxu0 0.0
        %1646 = vmatpush1.msra.mxu0 0.0
        %1647 = vmatprep.subr.mxu0 0.0
        %1648 = vmatpush1.msra.mxu0 0.0
        %1649 = vmatprep.subr.mxu0 0.0
        %1650 = vmatpush1.msra.mxu0 0.0
        %1651 = vmatprep.subr.mxu0 0.0
        %1652 = vmatpush1.msra.mxu0 0.0
        %1653 = vmatprep.subr.mxu0 0.0
        %1654 = vmatpush1.msra.mxu0 0.0
        %1655 = vmatprep.subr.mxu0 0.0
        %1656 = vmatpush1.msra.mxu0 0.0
        %1657 = vmatprep.subr.mxu0 0.0
        %1658 = vmatpush1.msra.mxu0 0.0
        %1659 = vmatprep.subr.mxu0 0.0
        %1660 = vmatpush1.msra.mxu0 0.0
        %1661 = vmatprep.subr.mxu0 0.0
        %1662 = vmatpush1.msra.mxu0 0.0
        %1663 = vmatprep.subr.mxu0 0.0
        %1664 = vmatpush1.msra.mxu0 0.0
        %1665 = vmatprep.subr.mxu0 0.0
        %1666 = vmatpush1.msra.mxu0 0.0
        %1667 = vmatprep.subr.mxu0 0.0
        %1668 = vmatpush1.msra.mxu0 0.0
        %1669 = vmatprep.subr.mxu0 0.0
        %1670 = vmatpush1.msra.mxu0 0.0
        %1671 = vmatprep.subr.mxu0 0.0
        %1672 = vmatpush1.msra.mxu0 0.0
        %1673 = vmatprep.subr.mxu0 0.0
        %1674 = vmatpush1.msra.mxu0 0.0
        %1675 = vmatprep.subr.mxu0 0.0
        %1676 = vmatpush1.msra.mxu0 0.0
        %1677 = vmatprep.subr.mxu0 0.0
        %1678 = vmatpush1.msra.mxu0 0.0
        %1679 = vmatprep.subr.mxu0 0.0
        %1680 = vmatpush1.msra.mxu0 0.0
        %1681 = vmatprep.subr.mxu0 0.0
        %1682 = vmatpush1.msra.mxu0 0.0
        %1683 = vmatprep.subr.mxu0 0.0
        %1684 = vmatpush1.msra.mxu0 0.0
        %1685 = vmatprep.subr.mxu0 0.0
        %1686 = vmatpush1.msra.mxu0 0.0
        %1687 = vmatprep.subr.mxu0 0.0
        %1688 = vmatpush1.msra.mxu0 0.0
        %1689 = vmatprep.subr.mxu0 0.0
        %1690 = vmatpush1.msra.mxu0 0.0
        %1691 = vmatprep.subr.mxu0 0.0
        %1692 = vmatpush1.msra.mxu0 0.0
        %1693 = vmatprep.subr.mxu0 0.0
        %1694 = vmatpush1.msra.mxu0 0.0
        %1695 = vmatprep.subr.mxu0 0.0
        %1696 = vmatpush1.msra.mxu0 0.0
        %1697 = vmatprep.mubr.f32.mxu0 0.0
        %1698 = vmatmul.mubr.f32.gmra.mrb[0].mxu0 %v1628
        %v1699 = vpop.f32.mrb[0].mxu0
        %v1700 = vadd.f32 %v1620, %v1699
        %v1701 = vpop.f32.mrb[0].mxu0
        %1702 = vmatprep.mubr.f32.mxu0 0.0
        %1703 = vmatmul.mubr.f32.gmra.mrb[0].mxu0 %v1631
        %v1704 = vpop.f32.mrb[0].mxu0
        %v1705 = vadd.f32 %v1625, %v1704
        %v1706 = vpop.f32.mrb[0].mxu0
        %1707 = vdwg.mxu0
        %v1708 = vadd.f32 %v1611, %v1700
        %v1709 = vadd.f32 %v1612, %v1705
        %v1710 = vmax.f32 %v1708, 0.0
        %v1711 = vmax.f32 %v1709, 0.0
        %v1712 = vld [vmem:[%s9] sm:$0xff]
        %v1713 = vld [vmem:[%s9 + $0x8] sm:$0xff]
        %vm1714 = vcmp.eq.s32.totalorder %v705, 4
        %vm1715 = vcmp.eq.s32.totalorder %v706, 4
        %vm1716 = vcmp.eq.s32.totalorder %v707, 4
        %vm1717 = vcmp.eq.s32.totalorder %v708, 4
        %vm1718 = vcmp.eq.s32.totalorder %v709, 4
        %vm1719 = vcmp.eq.s32.totalorder %v710, 4
        %vm1720 = vcmp.eq.s32.totalorder %v711, 4
        %vm1721 = vcmp.eq.s32.totalorder %v712, 4
        %vm1722 = vcmp.eq.s32.totalorder %v713, 4
        %vm1723 = vcmp.eq.s32.totalorder %v714, 4
        %vm1724 = vcmp.eq.s32.totalorder %v715, 4
        %vm1725 = vcmp.eq.s32.totalorder %v716, 4
        %vm1726 = vcmp.eq.s32.totalorder %v717, 4
        %vm1727 = vcmp.eq.s32.totalorder %v718, 4
        %vm1728 = vcmp.eq.s32.totalorder %v719, 4
        %vm1729 = vcmp.eq.s32.totalorder %v720, 4
        %v1730 = vsel %vm1714, 1.0, 0.0
        %v1731 = vsel %vm1715, 1.0, 0.0
        %v1732 = vsel %vm1716, 1.0, 0.0
        %v1733 = vsel %vm1717, 1.0, 0.0
        %v1734 = vsel %vm1718, 1.0, 0.0
        %v1735 = vsel %vm1719, 1.0, 0.0
        %v1736 = vsel %vm1720, 1.0, 0.0
        %v1737 = vsel %vm1721, 1.0, 0.0
        %v1738 = vsel %vm1722, 1.0, 0.0
        %v1739 = vsel %vm1723, 1.0, 0.0
        %v1740 = vsel %vm1724, 1.0, 0.0
        %v1741 = vsel %vm1725, 1.0, 0.0
        %v1742 = vsel %vm1726, 1.0, 0.0
        %v1743 = vsel %vm1727, 1.0, 0.0
        %v1744 = vsel %vm1728, 1.0, 0.0
        %v1745 = vsel %vm1729, 1.0, 0.0
        %1746 = vmatprep.subr.mxu0 0.0
        %1747 = vmatpush1.msra.mxu0 %v1730
        %1748 = vmatprep.subr.mxu0 0.0
        %1749 = vmatpush1.msra.mxu0 %v1731
        %1750 = vmatprep.subr.mxu0 0.0
        %1751 = vmatpush1.msra.mxu0 %v1732
        %1752 = vmatprep.subr.mxu0 0.0
        %1753 = vmatpush1.msra.mxu0 %v1733
        %1754 = vmatprep.subr.mxu0 0.0
        %1755 = vmatpush1.msra.mxu0 %v1734
        %1756 = vmatprep.subr.mxu0 0.0
        %1757 = vmatpush1.msra.mxu0 %v1735
        %1758 = vmatprep.subr.mxu0 0.0
        %1759 = vmatpush1.msra.mxu0 %v1736
        %1760 = vmatprep.subr.mxu0 0.0
        %1761 = vmatpush1.msra.mxu0 %v1737
        %1762 = vmatprep.subr.mxu0 0.0
        %1763 = vmatpush1.msra.mxu0 %v1738
        %1764 = vmatprep.subr.mxu0 0.0
        %1765 = vmatpush1.msra.mxu0 %v1739
        %1766 = vmatprep.subr.mxu0 0.0
        %1767 = vmatpush1.msra.mxu0 %v1740
        %1768 = vmatprep.subr.mxu0 0.0
        %1769 = vmatpush1.msra.mxu0 %v1741
        %1770 = vmatprep.subr.mxu0 0.0
        %1771 = vmatpush1.msra.mxu0 %v1742
        %1772 = vmatprep.subr.mxu0 0.0
        %1773 = vmatpush1.msra.mxu0 %v1743
        %1774 = vmatprep.subr.mxu0 0.0
        %1775 = vmatpush1.msra.mxu0 %v1744
        %1776 = vmatprep.subr.mxu0 0.0
        %1777 = vmatpush1.msra.mxu0 %v1745
        %1778 = vmatprep.subr.mxu0 0.0
        %1779 = vmatpush1.msra.mxu0 0.0
        %1780 = vmatprep.subr.mxu0 0.0
        %1781 = vmatpush1.msra.mxu0 0.0
        %1782 = vmatprep.subr.mxu0 0.0
        %1783 = vmatpush1.msra.mxu0 0.0
        %1784 = vmatprep.subr.mxu0 0.0
        %1785 = vmatpush1.msra.mxu0 0.0
        %1786 = vmatprep.subr.mxu0 0.0
        %1787 = vmatpush1.msra.mxu0 0.0
        %1788 = vmatprep.subr.mxu0 0.0
        %1789 = vmatpush1.msra.mxu0 0.0
        %1790 = vmatprep.subr.mxu0 0.0
        %1791 = vmatpush1.msra.mxu0 0.0
        %1792 = vmatprep.subr.mxu0 0.0
        %1793 = vmatpush1.msra.mxu0 0.0
        %1794 = vmatprep.subr.mxu0 0.0
        %1795 = vmatpush1.msra.mxu0 0.0
        %1796 = vmatprep.subr.mxu0 0.0
        %1797 = vmatpush1.msra.mxu0 0.0
        %1798 = vmatprep.subr.mxu0 0.0
        %1799 = vmatpush1.msra.mxu0 0.0
        %1800 = vmatprep.subr.mxu0 0.0
        %1801 = vmatpush1.msra.mxu0 0.0
        %1802 = vmatprep.subr.mxu0 0.0
        %1803 = vmatpush1.msra.mxu0 0.0
        %1804 = vmatprep.subr.mxu0 0.0
        %1805 = vmatpush1.msra.mxu0 0.0
        %1806 = vmatprep.subr.mxu0 0.0
        %1807 = vmatpush1.msra.mxu0 0.0
        %1808 = vmatprep.subr.mxu0 0.0
        %1809 = vmatpush1.msra.mxu0 0.0
        %1810 = vmatprep.mubr.f32.mxu0 0.0
        %1811 = vmatmul.mubr.f32.gmra.mrb[0].mxu0 %v1710
        %v1812 = vpop.f32.mrb[0].mxu0
        %v1813 = vadd.f32 0.0, %v1812
        %v1814 = vpop.f32.mrb[0].mxu0
        %1815 = vmatprep.mubr.f32.mxu0 0.0
        %1816 = vmatmul.mubr.f32.gmra.mrb[0].mxu0 %v1711
        %v1817 = vpop.f32.mrb[0].mxu0
        %v1818 = vadd.f32 0.0, %v1817
        %v1819 = vpop.f32.mrb[0].mxu0
        %1820 = vdwg.mxu0
        %s1821 = scalar_lea.vmem %s9, 16
        %v1822 = vld [vmem:[%s1821] sm:$0xff]
        %v1823 = vld [vmem:[%s1821 + $0x8] sm:$0xff]
        %1824 = vmatprep.subr.mxu0 0.0
        %1825 = vmatpush1.msra.mxu0 %v737
        %1826 = vmatprep.subr.mxu0 0.0
        %1827 = vmatpush1.msra.mxu0 %v738
        %1828 = vmatprep.subr.mxu0 0.0
        %1829 = vmatpush1.msra.mxu0 %v739
        %1830 = vmatprep.subr.mxu0 0.0
        %1831 = vmatpush1.msra.mxu0 %v740
        %1832 = vmatprep.subr.mxu0 0.0
        %1833 = vmatpush1.msra.mxu0 %v741
        %1834 = vmatprep.subr.mxu0 0.0
        %1835 = vmatpush1.msra.mxu0 %v742
        %1836 = vmatprep.subr.mxu0 0.0
        %1837 = vmatpush1.msra.mxu0 %v743
        %1838 = vmatprep.subr.mxu0 0.0
        %1839 = vmatpush1.msra.mxu0 %v744
        %1840 = vmatprep.subr.mxu0 0.0
        %1841 = vmatpush1.msra.mxu0 %v745
        %1842 = vmatprep.subr.mxu0 0.0
        %1843 = vmatpush1.msra.mxu0 %v746
        %1844 = vmatprep.subr.mxu0 0.0
        %1845 = vmatpush1.msra.mxu0 %v747
        %1846 = vmatprep.subr.mxu0 0.0
        %1847 = vmatpush1.msra.mxu0 %v748
        %1848 = vmatprep.subr.mxu0 0.0
        %1849 = vmatpush1.msra.mxu0 %v749
        %1850 = vmatprep.subr.mxu0 0.0
        %1851 = vmatpush1.msra.mxu0 %v750
        %1852 = vmatprep.subr.mxu0 0.0
        %1853 = vmatpush1.msra.mxu0 %v751
        %1854 = vmatprep.subr.mxu0 0.0
        %1855 = vmatpush1.msra.mxu0 %v752
        %1856 = vmatprep.subr.mxu0 0.0
        %1857 = vmatpush1.msra.mxu0 0.0
        %1858 = vmatprep.subr.mxu0 0.0
        %1859 = vmatpush1.msra.mxu0 0.0
        %1860 = vmatprep.subr.mxu0 0.0
        %1861 = vmatpush1.msra.mxu0 0.0
        %1862 = vmatprep.subr.mxu0 0.0
        %1863 = vmatpush1.msra.mxu0 0.0
        %1864 = vmatprep.subr.mxu0 0.0
        %1865 = vmatpush1.msra.mxu0 0.0
        %1866 = vmatprep.subr.mxu0 0.0
        %1867 = vmatpush1.msra.mxu0 0.0
        %1868 = vmatprep.subr.mxu0 0.0
        %1869 = vmatpush1.msra.mxu0 0.0
        %1870 = vmatprep.subr.mxu0 0.0
        %1871 = vmatpush1.msra.mxu0 0.0
        %1872 = vmatprep.subr.mxu0 0.0
        %1873 = vmatpush1.msra.mxu0 0.0
        %1874 = vmatprep.subr.mxu0 0.0
        %1875 = vmatpush1.msra.mxu0 0.0
        %1876 = vmatprep.subr.mxu0 0.0
        %1877 = vmatpush1.msra.mxu0 0.0
        %1878 = vmatprep.subr.mxu0 0.0
        %1879 = vmatpush1.msra.mxu0 0.0
        %1880 = vmatprep.subr.mxu0 0.0
        %1881 = vmatpush1.msra.mxu0 0.0
        %1882 = vmatprep.subr.mxu0 0.0
        %1883 = vmatpush1.msra.mxu0 0.0
        %1884 = vmatprep.subr.mxu0 0.0
        %1885 = vmatpush1.msra.mxu0 0.0
        %1886 = vmatprep.subr.mxu0 0.0
        %1887 = vmatpush1.msra.mxu0 0.0
        %1888 = vmatprep.mubr.f32.mxu0 0.0
        %1889 = vmatmul.mubr.f32.gmra.mrb[0].mxu0 %v1710
        %v1890 = vpop.f32.mrb[0].mxu0
        %v1891 = vadd.f32 0.0, %v1890
        %v1892 = vpop.f32.mrb[0].mxu0
        %1893 = vmatprep.mubr.f32.mxu0 0.0
        %1894 = vmatmul.mubr.f32.gmra.mrb[0].mxu0 %v1711
        %v1895 = vpop.f32.mrb[0].mxu0
        %v1896 = vadd.f32 0.0, %v1895
        %v1897 = vpop.f32.mrb[0].mxu0
        %1898 = vdwg.mxu0
        %v1900 = vsel %vm1348, %v1822, 0
        %v1903 = vsel %vm1348, %v1823, 0
        %1905 = vmatprep.subr.mxu0 0.0
        %1906 = vmatpush1.msra.mxu0 %v1891
        %1907 = vmatprep.subr.mxu0 0.0
        %1908 = vmatpush1.msra.mxu0 %v1896
        %1909 = vmatprep.subr.mxu0 0.0
        %1910 = vmatpush1.msra.mxu0 0.0
        %1911 = vmatprep.subr.mxu0 0.0
        %1912 = vmatpush1.msra.mxu0 0.0
        %1913 = vmatprep.subr.mxu0 0.0
        %1914 = vmatpush1.msra.mxu0 0.0
        %1915 = vmatprep.subr.mxu0 0.0
        %1916 = vmatpush1.msra.mxu0 0.0
        %1917 = vmatprep.subr.mxu0 0.0
        %1918 = vmatpush1.msra.mxu0 0.0
        %1919 = vmatprep.subr.mxu0 0.0
        %1920 = vmatpush1.msra.mxu0 0.0
        %1921 = vmatprep.subr.mxu0 0.0
        %1922 = vmatpush1.msra.mxu0 0.0
        %1923 = vmatprep.subr.mxu0 0.0
        %1924 = vmatpush1.msra.mxu0 0.0
        %1925 = vmatprep.subr.mxu0 0.0
        %1926 = vmatpush1.msra.mxu0 0.0
        %1927 = vmatprep.subr.mxu0 0.0
        %1928 = vmatpush1.msra.mxu0 0.0
        %1929 = vmatprep.subr.mxu0 0.0
        %1930 = vmatpush1.msra.mxu0 0.0
        %1931 = vmatprep.subr.mxu0 0.0
        %1932 = vmatpush1.msra.mxu0 0.0
        %1933 = vmatprep.subr.mxu0 0.0
        %1934 = vmatpush1.msra.mxu0 0.0
        %1935 = vmatprep.subr.mxu0 0.0
        %1936 = vmatpush1.msra.mxu0 0.0
        %1937 = vmatprep.subr.mxu0 0.0
        %1938 = vmatpush1.msra.mxu0 0.0
        %1939 = vmatprep.subr.mxu0 0.0
        %1940 = vmatpush1.msra.mxu0 0.0
        %1941 = vmatprep.subr.mxu0 0.0
        %1942 = vmatpush1.msra.mxu0 0.0
        %1943 = vmatprep.subr.mxu0 0.0
        %1944 = vmatpush1.msra.mxu0 0.0
        %1945 = vmatprep.subr.mxu0 0.0
        %1946 = vmatpush1.msra.mxu0 0.0
        %1947 = vmatprep.subr.mxu0 0.0
        %1948 = vmatpush1.msra.mxu0 0.0
        %1949 = vmatprep.subr.mxu0 0.0
        %1950 = vmatpush1.msra.mxu0 0.0
        %1951 = vmatprep.subr.mxu0 0.0
        %1952 = vmatpush1.msra.mxu0 0.0
        %1953 = vmatprep.subr.mxu0 0.0
        %1954 = vmatpush1.msra.mxu0 0.0
        %1955 = vmatprep.subr.mxu0 0.0
        %1956 = vmatpush1.msra.mxu0 0.0
        %1957 = vmatprep.subr.mxu0 0.0
        %1958 = vmatpush1.msra.mxu0 0.0
        %1959 = vmatprep.subr.mxu0 0.0
        %1960 = vmatpush1.msra.mxu0 0.0
        %1961 = vmatprep.subr.mxu0 0.0
        %1962 = vmatpush1.msra.mxu0 0.0
        %1963 = vmatprep.subr.mxu0 0.0
        %1964 = vmatpush1.msra.mxu0 0.0
        %1965 = vmatprep.subr.mxu0 0.0
        %1966 = vmatpush1.msra.mxu0 0.0
        %1967 = vmatprep.subr.mxu0 0.0
        %1968 = vmatpush1.msra.mxu0 0.0
        %1969 = vmatprep.mubr.f32.mxu0 0.0
        %1970 = vmatmul.mubr.f32.gmra.mrb[0].mxu0 %v1900
        %v1971 = vpop.f32.mrb[0].mxu0
        %v1972 = vadd.f32 0.0, %v1971
        %v1973 = vpop.f32.mrb[0].mxu0
        %1974 = vmatprep.mubr.f32.mxu0 0.0
        %1975 = vmatmul.mubr.f32.gmra.mrb[0].mxu0 %v1903
        %v1976 = vpop.f32.mrb[0].mxu0
        %v1977 = vadd.f32 0.0, %v1976
        %v1978 = vpop.f32.mrb[0].mxu0
        %1979 = vdwg.mxu0
        %v1981 = vsel %vm1348, %v1712, 0
        %v1984 = vsel %vm1348, %v1713, 0
        %1986 = vmatprep.subr.mxu0 0.0
        %1987 = vmatpush1.msra.mxu0 %v1813
        %1988 = vmatprep.subr.mxu0 0.0
        %1989 = vmatpush1.msra.mxu0 %v1818
        %1990 = vmatprep.subr.mxu0 0.0
        %1991 = vmatpush1.msra.mxu0 0.0
        %1992 = vmatprep.subr.mxu0 0.0
        %1993 = vmatpush1.msra.mxu0 0.0
        %1994 = vmatprep.subr.mxu0 0.0
        %1995 = vmatpush1.msra.mxu0 0.0
        %1996 = vmatprep.subr.mxu0 0.0
        %1997 = vmatpush1.msra.mxu0 0.0
        %1998 = vmatprep.subr.mxu0 0.0
        %1999 = vmatpush1.msra.mxu0 0.0
        %2000 = vmatprep.subr.mxu0 0.0
        %2001 = vmatpush1.msra.mxu0 0.0
        %2002 = vmatprep.subr.mxu0 0.0
        %2003 = vmatpush1.msra.mxu0 0.0
        %2004 = vmatprep.subr.mxu0 0.0
        %2005 = vmatpush1.msra.mxu0 0.0
        %2006 = vmatprep.subr.mxu0 0.0
        %2007 = vmatpush1.msra.mxu0 0.0
        %2008 = vmatprep.subr.mxu0 0.0
        %2009 = vmatpush1.msra.mxu0 0.0
        %2010 = vmatprep.subr.mxu0 0.0
        %2011 = vmatpush1.msra.mxu0 0.0
        %2012 = vmatprep.subr.mxu0 0.0
        %2013 = vmatpush1.msra.mxu0 0.0
        %2014 = vmatprep.subr.mxu0 0.0
        %2015 = vmatpush1.msra.mxu0 0.0
        %2016 = vmatprep.subr.mxu0 0.0
        %2017 = vmatpush1.msra.mxu0 0.0
        %2018 = vmatprep.subr.mxu0 0.0
        %2019 = vmatpush1.msra.mxu0 0.0
        %2020 = vmatprep.subr.mxu0 0.0
        %2021 = vmatpush1.msra.mxu0 0.0
        %2022 = vmatprep.subr.mxu0 0.0
        %2023 = vmatpush1.msra.mxu0 0.0
        %2024 = vmatprep.subr.mxu0 0.0
        %2025 = vmatpush1.msra.mxu0 0.0
        %2026 = vmatprep.subr.mxu0 0.0
        %2027 = vmatpush1.msra.mxu0 0.0
        %2028 = vmatprep.subr.mxu0 0.0
        %2029 = vmatpush1.msra.mxu0 0.0
        %2030 = vmatprep.subr.mxu0 0.0
        %2031 = vmatpush1.msra.mxu0 0.0
        %2032 = vmatprep.subr.mxu0 0.0
        %2033 = vmatpush1.msra.mxu0 0.0
        %2034 = vmatprep.subr.mxu0 0.0
        %2035 = vmatpush1.msra.mxu0 0.0
        %2036 = vmatprep.subr.mxu0 0.0
        %2037 = vmatpush1.msra.mxu0 0.0
        %2038 = vmatprep.subr.mxu0 0.0
        %2039 = vmatpush1.msra.mxu0 0.0
        %2040 = vmatprep.subr.mxu0 0.0
        %2041 = vmatpush1.msra.mxu0 0.0
        %2042 = vmatprep.subr.mxu0 0.0
        %2043 = vmatpush1.msra.mxu0 0.0
        %2044 = vmatprep.subr.mxu0 0.0
        %2045 = vmatpush1.msra.mxu0 0.0
        %2046 = vmatprep.subr.mxu0 0.0
        %2047 = vmatpush1.msra.mxu0 0.0
        %2048 = vmatprep.subr.mxu0 0.0
        %2049 = vmatpush1.msra.mxu0 0.0
        %2050 = vmatprep.mubr.f32.mxu0 0.0
        %2051 = vmatmul.mubr.f32.gmra.mrb[0].mxu0 %v1981
        %v2052 = vpop.f32.mrb[0].mxu0
        %v2053 = vadd.f32 %v1972, %v2052
        %v2054 = vpop.f32.mrb[0].mxu0
        %2055 = vmatprep.mubr.f32.mxu0 0.0
        %2056 = vmatmul.mubr.f32.gmra.mrb[0].mxu0 %v1984
        %v2057 = vpop.f32.mrb[0].mxu0
        %v2058 = vadd.f32 %v1977, %v2057
        %v2059 = vpop.f32.mrb[0].mxu0
        %2060 = vdwg.mxu0
        %s2061 = scalar_lea.vmem %s9, 32
        %v2062 = vld [vmem:[%s2061] sm:$0xff]
        %v2063 = vld [vmem:[%s2061 + $0x8] sm:$0xff]
        %v2065 = vsel %vm1348, %v2062, 0
        %v2068 = vsel %vm1348, %v2063, 0
        %2070 = vmatprep.subr.mxu0 0.0
        %2071 = vmatpush1.msra.mxu0 %v1710
        %2072 = vmatprep.subr.mxu0 0.0
        %2073 = vmatpush1.msra.mxu0 %v1711
        %2074 = vmatprep.subr.mxu0 0.0
        %2075 = vmatpush1.msra.mxu0 0.0
        %2076 = vmatprep.subr.mxu0 0.0
        %2077 = vmatpush1.msra.mxu0 0.0
        %2078 = vmatprep.subr.mxu0 0.0
        %2079 = vmatpush1.msra.mxu0 0.0
        %2080 = vmatprep.subr.mxu0 0.0
        %2081 = vmatpush1.msra.mxu0 0.0
        %2082 = vmatprep.subr.mxu0 0.0
        %2083 = vmatpush1.msra.mxu0 0.0
        %2084 = vmatprep.subr.mxu0 0.0
        %2085 = vmatpush1.msra.mxu0 0.0
        %2086 = vmatprep.subr.mxu0 0.0
        %2087 = vmatpush1.msra.mxu0 0.0
        %2088 = vmatprep.subr.mxu0 0.0
        %2089 = vmatpush1.msra.mxu0 0.0
        %2090 = vmatprep.subr.mxu0 0.0
        %2091 = vmatpush1.msra.mxu0 0.0
        %2092 = vmatprep.subr.mxu0 0.0
        %2093 = vmatpush1.msra.mxu0 0.0
        %2094 = vmatprep.subr.mxu0 0.0
        %2095 = vmatpush1.msra.mxu0 0.0
        %2096 = vmatprep.subr.mxu0 0.0
        %2097 = vmatpush1.msra.mxu0 0.0
        %2098 = vmatprep.subr.mxu0 0.0
        %2099 = vmatpush1.msra.mxu0 0.0
        %2100 = vmatprep.subr.mxu0 0.0
        %2101 = vmatpush1.msra.mxu0 0.0
        %2102 = vmatprep.subr.mxu0 0.0
        %2103 = vmatpush1.msra.mxu0 0.0
        %2104 = vmatprep.subr.mxu0 0.0
        %2105 = vmatpush1.msra.mxu0 0.0
        %2106 = vmatprep.subr.mxu0 0.0
        %2107 = vmatpush1.msra.mxu0 0.0
        %2108 = vmatprep.subr.mxu0 0.0
        %2109 = vmatpush1.msra.mxu0 0.0
        %2110 = vmatprep.subr.mxu0 0.0
        %2111 = vmatpush1.msra.mxu0 0.0
        %2112 = vmatprep.subr.mxu0 0.0
        %2113 = vmatpush1.msra.mxu0 0.0
        %2114 = vmatprep.subr.mxu0 0.0
        %2115 = vmatpush1.msra.mxu0 0.0
        %2116 = vmatprep.subr.mxu0 0.0
        %2117 = vmatpush1.msra.mxu0 0.0
        %2118 = vmatprep.subr.mxu0 0.0
        %2119 = vmatpush1.msra.mxu0 0.0
        %2120 = vmatprep.subr.mxu0 0.0
        %2121 = vmatpush1.msra.mxu0 0.0
        %2122 = vmatprep.subr.mxu0 0.0
        %2123 = vmatpush1.msra.mxu0 0.0
        %2124 = vmatprep.subr.mxu0 0.0
        %2125 = vmatpush1.msra.mxu0 0.0
        %2126 = vmatprep.subr.mxu0 0.0
        %2127 = vmatpush1.msra.mxu0 0.0
        %2128 = vmatprep.subr.mxu0 0.0
        %2129 = vmatpush1.msra.mxu0 0.0
        %2130 = vmatprep.subr.mxu0 0.0
        %2131 = vmatpush1.msra.mxu0 0.0
        %2132 = vmatprep.subr.mxu0 0.0
        %2133 = vmatpush1.msra.mxu0 0.0
        %2134 = vmatprep.mubr.f32.mxu0 0.0
        %2135 = vmatmul.mubr.f32.gmra.mrb[0].mxu0 %v2065
        %v2136 = vpop.f32.mrb[0].mxu0
        %v2137 = vadd.f32 0.0, %v2136
        %v2138 = vpop.f32.mrb[0].mxu0
        %2139 = vmatprep.mubr.f32.mxu0 0.0
        %2140 = vmatmul.mubr.f32.gmra.mrb[0].mxu0 %v2068
        %v2141 = vpop.f32.mrb[0].mxu0
        %v2142 = vadd.f32 0.0, %v2141
        %v2143 = vpop.f32.mrb[0].mxu0
        %2144 = vdwg.mxu0
        %v2145 = vadd.f32 %v2053, %v2137
        %v2146 = vadd.f32 %v2058, %v2142
        %v2147 = vld [vmem:[%s10] sm:$0xff]
        %v2148 = vld [vmem:[%s10 + $0x8] sm:$0xff]
        %2150 = vset.pattern.permute.xlu0 0
        %2151 = vperm.xlu0 %2150, %v2147
        %v2152 = vpop.permute.xlu0 %2151
        %2155 = vset.pattern.permute.xlu0 0
        %2156 = vperm.xlu0 %2155, %v2148
        %v2157 = vpop.permute.xlu0 %2156
        %v2159 = vadd.f32 %v2145, %v2152
        %v2160 = vadd.f32 %v2146, %v2157
        %v2161 = vmax.f32 %v2159, 0.0
        %v2162 = vmax.f32 %v2160, 0.0
        %v2163 = vld [vmem:[%s11] sm:$0xff]
        %v2164 = vld [vmem:[%s11 + $0x8] sm:$0xff]
        %2165 = vmatprep.subr.mxu0 0.0
        %2166 = vmatpush1.msra.mxu0 %v1730
        %2167 = vmatprep.subr.mxu0 0.0
        %2168 = vmatpush1.msra.mxu0 %v1731
        %2169 = vmatprep.subr.mxu0 0.0
        %2170 = vmatpush1.msra.mxu0 %v1732
        %2171 = vmatprep.subr.mxu0 0.0
        %2172 = vmatpush1.msra.mxu0 %v1733
        %2173 = vmatprep.subr.mxu0 0.0
        %2174 = vmatpush1.msra.mxu0 %v1734
        %2175 = vmatprep.subr.mxu0 0.0
        %2176 = vmatpush1.msra.mxu0 %v1735
        %2177 = vmatprep.subr.mxu0 0.0
        %2178 = vmatpush1.msra.mxu0 %v1736
        %2179 = vmatprep.subr.mxu0 0.0
        %2180 = vmatpush1.msra.mxu0 %v1737
        %2181 = vmatprep.subr.mxu0 0.0
        %2182 = vmatpush1.msra.mxu0 %v1738
        %2183 = vmatprep.subr.mxu0 0.0
        %2184 = vmatpush1.msra.mxu0 %v1739
        %2185 = vmatprep.subr.mxu0 0.0
        %2186 = vmatpush1.msra.mxu0 %v1740
        %2187 = vmatprep.subr.mxu0 0.0
        %2188 = vmatpush1.msra.mxu0 %v1741
        %2189 = vmatprep.subr.mxu0 0.0
        %2190 = vmatpush1.msra.mxu0 %v1742
        %2191 = vmatprep.subr.mxu0 0.0
        %2192 = vmatpush1.msra.mxu0 %v1743
        %2193 = vmatprep.subr.mxu0 0.0
        %2194 = vmatpush1.msra.mxu0 %v1744
        %2195 = vmatprep.subr.mxu0 0.0
        %2196 = vmatpush1.msra.mxu0 %v1745
        %2197 = vmatprep.subr.mxu0 0.0
        %2198 = vmatpush1.msra.mxu0 0.0
        %2199 = vmatprep.subr.mxu0 0.0
        %2200 = vmatpush1.msra.mxu0 0.0
        %2201 = vmatprep.subr.mxu0 0.0
        %2202 = vmatpush1.msra.mxu0 0.0
        %2203 = vmatprep.subr.mxu0 0.0
        %2204 = vmatpush1.msra.mxu0 0.0
        %2205 = vmatprep.subr.mxu0 0.0
        %2206 = vmatpush1.msra.mxu0 0.0
        %2207 = vmatprep.subr.mxu0 0.0
        %2208 = vmatpush1.msra.mxu0 0.0
        %2209 = vmatprep.subr.mxu0 0.0
        %2210 = vmatpush1.msra.mxu0 0.0
        %2211 = vmatprep.subr.mxu0 0.0
        %2212 = vmatpush1.msra.mxu0 0.0
        %2213 = vmatprep.subr.mxu0 0.0
        %2214 = vmatpush1.msra.mxu0 0.0
        %2215 = vmatprep.subr.mxu0 0.0
        %2216 = vmatpush1.msra.mxu0 0.0
        %2217 = vmatprep.subr.mxu0 0.0
        %2218 = vmatpush1.msra.mxu0 0.0
        %2219 = vmatprep.subr.mxu0 0.0
        %2220 = vmatpush1.msra.mxu0 0.0
        %2221 = vmatprep.subr.mxu0 0.0
        %2222 = vmatpush1.msra.mxu0 0.0
        %2223 = vmatprep.subr.mxu0 0.0
        %2224 = vmatpush1.msra.mxu0 0.0
        %2225 = vmatprep.subr.mxu0 0.0
        %2226 = vmatpush1.msra.mxu0 0.0
        %2227 = vmatprep.subr.mxu0 0.0
        %2228 = vmatpush1.msra.mxu0 0.0
        %2229 = vmatprep.mubr.f32.mxu0 0.0
        %2230 = vmatmul.mubr.f32.gmra.mrb[0].mxu0 %v2161
        %v2231 = vpop.f32.mrb[0].mxu0
        %v2232 = vadd.f32 0.0, %v2231
        %v2233 = vpop.f32.mrb[0].mxu0
        %2234 = vmatprep.mubr.f32.mxu0 0.0
        %2235 = vmatmul.mubr.f32.gmra.mrb[0].mxu0 %v2162
        %v2236 = vpop.f32.mrb[0].mxu0
        %v2237 = vadd.f32 0.0, %v2236
        %v2238 = vpop.f32.mrb[0].mxu0
        %2239 = vdwg.mxu0
        %s2240 = scalar_lea.vmem %s11, 16
        %v2241 = vld [vmem:[%s2240] sm:$0xff]
        %v2242 = vld [vmem:[%s2240 + $0x8] sm:$0xff]
        %2243 = vmatprep.subr.mxu0 0.0
        %2244 = vmatpush1.msra.mxu0 %v737
        %2245 = vmatprep.subr.mxu0 0.0
        %2246 = vmatpush1.msra.mxu0 %v738
        %2247 = vmatprep.subr.mxu0 0.0
        %2248 = vmatpush1.msra.mxu0 %v739
        %2249 = vmatprep.subr.mxu0 0.0
        %2250 = vmatpush1.msra.mxu0 %v740
        %2251 = vmatprep.subr.mxu0 0.0
        %2252 = vmatpush1.msra.mxu0 %v741
        %2253 = vmatprep.subr.mxu0 0.0
        %2254 = vmatpush1.msra.mxu0 %v742
        %2255 = vmatprep.subr.mxu0 0.0
        %2256 = vmatpush1.msra.mxu0 %v743
        %2257 = vmatprep.subr.mxu0 0.0
        %2258 = vmatpush1.msra.mxu0 %v744
        %2259 = vmatprep.subr.mxu0 0.0
        %2260 = vmatpush1.msra.mxu0 %v745
        %2261 = vmatprep.subr.mxu0 0.0
        %2262 = vmatpush1.msra.mxu0 %v746
        %2263 = vmatprep.subr.mxu0 0.0
        %2264 = vmatpush1.msra.mxu0 %v747
        %2265 = vmatprep.subr.mxu0 0.0
        %2266 = vmatpush1.msra.mxu0 %v748
        %2267 = vmatprep.subr.mxu0 0.0
        %2268 = vmatpush1.msra.mxu0 %v749
        %2269 = vmatprep.subr.mxu0 0.0
        %2270 = vmatpush1.msra.mxu0 %v750
        %2271 = vmatprep.subr.mxu0 0.0
        %2272 = vmatpush1.msra.mxu0 %v751
        %2273 = vmatprep.subr.mxu0 0.0
        %2274 = vmatpush1.msra.mxu0 %v752
        %2275 = vmatprep.subr.mxu0 0.0
        %2276 = vmatpush1.msra.mxu0 0.0
        %2277 = vmatprep.subr.mxu0 0.0
        %2278 = vmatpush1.msra.mxu0 0.0
        %2279 = vmatprep.subr.mxu0 0.0
        %2280 = vmatpush1.msra.mxu0 0.0
        %2281 = vmatprep.subr.mxu0 0.0
        %2282 = vmatpush1.msra.mxu0 0.0
        %2283 = vmatprep.subr.mxu0 0.0
        %2284 = vmatpush1.msra.mxu0 0.0
        %2285 = vmatprep.subr.mxu0 0.0
        %2286 = vmatpush1.msra.mxu0 0.0
        %2287 = vmatprep.subr.mxu0 0.0
        %2288 = vmatpush1.msra.mxu0 0.0
        %2289 = vmatprep.subr.mxu0 0.0
        %2290 = vmatpush1.msra.mxu0 0.0
        %2291 = vmatprep.subr.mxu0 0.0
        %2292 = vmatpush1.msra.mxu0 0.0
        %2293 = vmatprep.subr.mxu0 0.0
        %2294 = vmatpush1.msra.mxu0 0.0
        %2295 = vmatprep.subr.mxu0 0.0
        %2296 = vmatpush1.msra.mxu0 0.0
        %2297 = vmatprep.subr.mxu0 0.0
        %2298 = vmatpush1.msra.mxu0 0.0
        %2299 = vmatprep.subr.mxu0 0.0
        %2300 = vmatpush1.msra.mxu0 0.0
        %2301 = vmatprep.subr.mxu0 0.0
        %2302 = vmatpush1.msra.mxu0 0.0
        %2303 = vmatprep.subr.mxu0 0.0
        %2304 = vmatpush1.msra.mxu0 0.0
        %2305 = vmatprep.subr.mxu0 0.0
        %2306 = vmatpush1.msra.mxu0 0.0
        %2307 = vmatprep.mubr.f32.mxu0 0.0
        %2308 = vmatmul.mubr.f32.gmra.mrb[0].mxu0 %v2161
        %v2309 = vpop.f32.mrb[0].mxu0
        %v2310 = vadd.f32 0.0, %v2309
        %v2311 = vpop.f32.mrb[0].mxu0
        %2312 = vmatprep.mubr.f32.mxu0 0.0
        %2313 = vmatmul.mubr.f32.gmra.mrb[0].mxu0 %v2162
        %v2314 = vpop.f32.mrb[0].mxu0
        %v2315 = vadd.f32 0.0, %v2314
        %v2316 = vpop.f32.mrb[0].mxu0
        %2317 = vdwg.mxu0
        %v2319 = vsel %vm1348, %v2241, 0
        %v2322 = vsel %vm1348, %v2242, 0
        %2324 = vmatprep.subr.mxu0 0.0
        %2325 = vmatpush1.msra.mxu0 %v2310
        %2326 = vmatprep.subr.mxu0 0.0
        %2327 = vmatpush1.msra.mxu0 %v2315
        %2328 = vmatprep.subr.mxu0 0.0
        %2329 = vmatpush1.msra.mxu0 0.0
        %2330 = vmatprep.subr.mxu0 0.0
        %2331 = vmatpush1.msra.mxu0 0.0
        %2332 = vmatprep.subr.mxu0 0.0
        %2333 = vmatpush1.msra.mxu0 0.0
        %2334 = vmatprep.subr.mxu0 0.0
        %2335 = vmatpush1.msra.mxu0 0.0
        %2336 = vmatprep.subr.mxu0 0.0
        %2337 = vmatpush1.msra.mxu0 0.0
        %2338 = vmatprep.subr.mxu0 0.0
        %2339 = vmatpush1.msra.mxu0 0.0
        %2340 = vmatprep.subr.mxu0 0.0
        %2341 = vmatpush1.msra.mxu0 0.0
        %2342 = vmatprep.subr.mxu0 0.0
        %2343 = vmatpush1.msra.mxu0 0.0
        %2344 = vmatprep.subr.mxu0 0.0
        %2345 = vmatpush1.msra.mxu0 0.0
        %2346 = vmatprep.subr.mxu0 0.0
        %2347 = vmatpush1.msra.mxu0 0.0
        %2348 = vmatprep.subr.mxu0 0.0
        %2349 = vmatpush1.msra.mxu0 0.0
        %2350 = vmatprep.subr.mxu0 0.0
        %2351 = vmatpush1.msra.mxu0 0.0
        %2352 = vmatprep.subr.mxu0 0.0
        %2353 = vmatpush1.msra.mxu0 0.0
        %2354 = vmatprep.subr.mxu0 0.0
        %2355 = vmatpush1.msra.mxu0 0.0
        %2356 = vmatprep.subr.mxu0 0.0
        %2357 = vmatpush1.msra.mxu0 0.0
        %2358 = vmatprep.subr.mxu0 0.0
        %2359 = vmatpush1.msra.mxu0 0.0
        %2360 = vmatprep.subr.mxu0 0.0
        %2361 = vmatpush1.msra.mxu0 0.0
        %2362 = vmatprep.subr.mxu0 0.0
        %2363 = vmatpush1.msra.mxu0 0.0
        %2364 = vmatprep.subr.mxu0 0.0
        %2365 = vmatpush1.msra.mxu0 0.0
        %2366 = vmatprep.subr.mxu0 0.0
        %2367 = vmatpush1.msra.mxu0 0.0
        %2368 = vmatprep.subr.mxu0 0.0
        %2369 = vmatpush1.msra.mxu0 0.0
        %2370 = vmatprep.subr.mxu0 0.0
        %2371 = vmatpush1.msra.mxu0 0.0
        %2372 = vmatprep.subr.mxu0 0.0
        %2373 = vmatpush1.msra.mxu0 0.0
        %2374 = vmatprep.subr.mxu0 0.0
        %2375 = vmatpush1.msra.mxu0 0.0
        %2376 = vmatprep.subr.mxu0 0.0
        %2377 = vmatpush1.msra.mxu0 0.0
        %2378 = vmatprep.subr.mxu0 0.0
        %2379 = vmatpush1.msra.mxu0 0.0
        %2380 = vmatprep.subr.mxu0 0.0
        %2381 = vmatpush1.msra.mxu0 0.0
        %2382 = vmatprep.subr.mxu0 0.0
        %2383 = vmatpush1.msra.mxu0 0.0
        %2384 = vmatprep.subr.mxu0 0.0
        %2385 = vmatpush1.msra.mxu0 0.0
        %2386 = vmatprep.subr.mxu0 0.0
        %2387 = vmatpush1.msra.mxu0 0.0
        %2388 = vmatprep.mubr.f32.mxu0 0.0
        %2389 = vmatmul.mubr.f32.gmra.mrb[0].mxu0 %v2319
        %v2390 = vpop.f32.mrb[0].mxu0
        %v2391 = vadd.f32 0.0, %v2390
        %v2392 = vpop.f32.mrb[0].mxu0
        %2393 = vmatprep.mubr.f32.mxu0 0.0
        %2394 = vmatmul.mubr.f32.gmra.mrb[0].mxu0 %v2322
        %v2395 = vpop.f32.mrb[0].mxu0
        %v2396 = vadd.f32 0.0, %v2395
        %v2397 = vpop.f32.mrb[0].mxu0
        %2398 = vdwg.mxu0
        %v2400 = vsel %vm1348, %v2163, 0
        %v2403 = vsel %vm1348, %v2164, 0
        %2405 = vmatprep.subr.mxu0 0.0
        %2406 = vmatpush1.msra.mxu0 %v2232
        %2407 = vmatprep.subr.mxu0 0.0
        %2408 = vmatpush1.msra.mxu0 %v2237
        %2409 = vmatprep.subr.mxu0 0.0
        %2410 = vmatpush1.msra.mxu0 0.0
        %2411 = vmatprep.subr.mxu0 0.0
        %2412 = vmatpush1.msra.mxu0 0.0
        %2413 = vmatprep.subr.mxu0 0.0
        %2414 = vmatpush1.msra.mxu0 0.0
        %2415 = vmatprep.subr.mxu0 0.0
        %2416 = vmatpush1.msra.mxu0 0.0
        %2417 = vmatprep.subr.mxu0 0.0
        %2418 = vmatpush1.msra.mxu0 0.0
        %2419 = vmatprep.subr.mxu0 0.0
        %2420 = vmatpush1.msra.mxu0 0.0
        %2421 = vmatprep.subr.mxu0 0.0
        %2422 = vmatpush1.msra.mxu0 0.0
        %2423 = vmatprep.subr.mxu0 0.0
        %2424 = vmatpush1.msra.mxu0 0.0
        %2425 = vmatprep.subr.mxu0 0.0
        %2426 = vmatpush1.msra.mxu0 0.0
        %2427 = vmatprep.subr.mxu0 0.0
        %2428 = vmatpush1.msra.mxu0 0.0
        %2429 = vmatprep.subr.mxu0 0.0
        %2430 = vmatpush1.msra.mxu0 0.0
        %2431 = vmatprep.subr.mxu0 0.0
        %2432 = vmatpush1.msra.mxu0 0.0
        %2433 = vmatprep.subr.mxu0 0.0
        %2434 = vmatpush1.msra.mxu0 0.0
        %2435 = vmatprep.subr.mxu0 0.0
        %2436 = vmatpush1.msra.mxu0 0.0
        %2437 = vmatprep.subr.mxu0 0.0
        %2438 = vmatpush1.msra.mxu0 0.0
        %2439 = vmatprep.subr.mxu0 0.0
        %2440 = vmatpush1.msra.mxu0 0.0
        %2441 = vmatprep.subr.mxu0 0.0
        %2442 = vmatpush1.msra.mxu0 0.0
        %2443 = vmatprep.subr.mxu0 0.0
        %2444 = vmatpush1.msra.mxu0 0.0
        %2445 = vmatprep.subr.mxu0 0.0
        %2446 = vmatpush1.msra.mxu0 0.0
        %2447 = vmatprep.subr.mxu0 0.0
        %2448 = vmatpush1.msra.mxu0 0.0
        %2449 = vmatprep.subr.mxu0 0.0
        %2450 = vmatpush1.msra.mxu0 0.0
        %2451 = vmatprep.subr.mxu0 0.0
        %2452 = vmatpush1.msra.mxu0 0.0
        %2453 = vmatprep.subr.mxu0 0.0
        %2454 = vmatpush1.msra.mxu0 0.0
        %2455 = vmatprep.subr.mxu0 0.0
        %2456 = vmatpush1.msra.mxu0 0.0
        %2457 = vmatprep.subr.mxu0 0.0
        %2458 = vmatpush1.msra.mxu0 0.0
        %2459 = vmatprep.subr.mxu0 0.0
        %2460 = vmatpush1.msra.mxu0 0.0
        %2461 = vmatprep.subr.mxu0 0.0
        %2462 = vmatpush1.msra.mxu0 0.0
        %2463 = vmatprep.subr.mxu0 0.0
        %2464 = vmatpush1.msra.mxu0 0.0
        %2465 = vmatprep.subr.mxu0 0.0
        %2466 = vmatpush1.msra.mxu0 0.0
        %2467 = vmatprep.subr.mxu0 0.0
        %2468 = vmatpush1.msra.mxu0 0.0
        %2469 = vmatprep.mubr.f32.mxu0 0.0
        %2470 = vmatmul.mubr.f32.gmra.mrb[0].mxu0 %v2400
        %v2471 = vpop.f32.mrb[0].mxu0
        %v2472 = vadd.f32 %v2391, %v2471
        %v2473 = vpop.f32.mrb[0].mxu0
        %2474 = vmatprep.mubr.f32.mxu0 0.0
        %2475 = vmatmul.mubr.f32.gmra.mrb[0].mxu0 %v2403
        %v2476 = vpop.f32.mrb[0].mxu0
        %v2477 = vadd.f32 %v2396, %v2476
        %v2478 = vpop.f32.mrb[0].mxu0
        %2479 = vdwg.mxu0
        %s2480 = scalar_lea.vmem %s11, 32
        %v2481 = vld [vmem:[%s2480] sm:$0xff]
        %v2482 = vld [vmem:[%s2480 + $0x8] sm:$0xff]
        %v2484 = vsel %vm1348, %v2481, 0
        %v2487 = vsel %vm1348, %v2482, 0
        %2489 = vmatprep.subr.mxu0 0.0
        %2490 = vmatpush1.msra.mxu0 %v2161
        %2491 = vmatprep.subr.mxu0 0.0
        %2492 = vmatpush1.msra.mxu0 %v2162
        %2493 = vmatprep.subr.mxu0 0.0
        %2494 = vmatpush1.msra.mxu0 0.0
        %2495 = vmatprep.subr.mxu0 0.0
        %2496 = vmatpush1.msra.mxu0 0.0
        %2497 = vmatprep.subr.mxu0 0.0
        %2498 = vmatpush1.msra.mxu0 0.0
        %2499 = vmatprep.subr.mxu0 0.0
        %2500 = vmatpush1.msra.mxu0 0.0
        %2501 = vmatprep.subr.mxu0 0.0
        %2502 = vmatpush1.msra.mxu0 0.0
        %2503 = vmatprep.subr.mxu0 0.0
        %2504 = vmatpush1.msra.mxu0 0.0
        %2505 = vmatprep.subr.mxu0 0.0
        %2506 = vmatpush1.msra.mxu0 0.0
        %2507 = vmatprep.subr.mxu0 0.0
        %2508 = vmatpush1.msra.mxu0 0.0
        %2509 = vmatprep.subr.mxu0 0.0
        %2510 = vmatpush1.msra.mxu0 0.0
        %2511 = vmatprep.subr.mxu0 0.0
        %2512 = vmatpush1.msra.mxu0 0.0
        %2513 = vmatprep.subr.mxu0 0.0
        %2514 = vmatpush1.msra.mxu0 0.0
        %2515 = vmatprep.subr.mxu0 0.0
        %2516 = vmatpush1.msra.mxu0 0.0
        %2517 = vmatprep.subr.mxu0 0.0
        %2518 = vmatpush1.msra.mxu0 0.0
        %2519 = vmatprep.subr.mxu0 0.0
        %2520 = vmatpush1.msra.mxu0 0.0
        %2521 = vmatprep.subr.mxu0 0.0
        %2522 = vmatpush1.msra.mxu0 0.0
        %2523 = vmatprep.subr.mxu0 0.0
        %2524 = vmatpush1.msra.mxu0 0.0
        %2525 = vmatprep.subr.mxu0 0.0
        %2526 = vmatpush1.msra.mxu0 0.0
        %2527 = vmatprep.subr.mxu0 0.0
        %2528 = vmatpush1.msra.mxu0 0.0
        %2529 = vmatprep.subr.mxu0 0.0
        %2530 = vmatpush1.msra.mxu0 0.0
        %2531 = vmatprep.subr.mxu0 0.0
        %2532 = vmatpush1.msra.mxu0 0.0
        %2533 = vmatprep.subr.mxu0 0.0
        %2534 = vmatpush1.msra.mxu0 0.0
        %2535 = vmatprep.subr.mxu0 0.0
        %2536 = vmatpush1.msra.mxu0 0.0
        %2537 = vmatprep.subr.mxu0 0.0
        %2538 = vmatpush1.msra.mxu0 0.0
        %2539 = vmatprep.subr.mxu0 0.0
        %2540 = vmatpush1.msra.mxu0 0.0
        %2541 = vmatprep.subr.mxu0 0.0
        %2542 = vmatpush1.msra.mxu0 0.0
        %2543 = vmatprep.subr.mxu0 0.0
        %2544 = vmatpush1.msra.mxu0 0.0
        %2545 = vmatprep.subr.mxu0 0.0
        %2546 = vmatpush1.msra.mxu0 0.0
        %2547 = vmatprep.subr.mxu0 0.0
        %2548 = vmatpush1.msra.mxu0 0.0
        %2549 = vmatprep.subr.mxu0 0.0
        %2550 = vmatpush1.msra.mxu0 0.0
        %2551 = vmatprep.subr.mxu0 0.0
        %2552 = vmatpush1.msra.mxu0 0.0
        %2553 = vmatprep.mubr.f32.mxu0 0.0
        %2554 = vmatmul.mubr.f32.gmra.mrb[0].mxu0 %v2484
        %v2555 = vpop.f32.mrb[0].mxu0
        %v2556 = vadd.f32 0.0, %v2555
        %v2557 = vpop.f32.mrb[0].mxu0
        %2558 = vmatprep.mubr.f32.mxu0 0.0
        %2559 = vmatmul.mubr.f32.gmra.mrb[0].mxu0 %v2487
        %v2560 = vpop.f32.mrb[0].mxu0
        %v2561 = vadd.f32 0.0, %v2560
        %v2562 = vpop.f32.mrb[0].mxu0
        %2563 = vdwg.mxu0
        %v2564 = vadd.f32 %v2472, %v2556
        %v2565 = vadd.f32 %v2477, %v2561
        %v2566 = vld [vmem:[%s12] sm:$0xff]
        %v2567 = vld [vmem:[%s12 + $0x8] sm:$0xff]
        %2569 = vset.pattern.permute.xlu0 0
        %2570 = vperm.xlu0 %2569, %v2566
        %v2571 = vpop.permute.xlu0 %2570
        %2574 = vset.pattern.permute.xlu0 0
        %2575 = vperm.xlu0 %2574, %v2567
        %v2576 = vpop.permute.xlu0 %2575
        %v2578 = vadd.f32 %v2564, %v2571
        %v2579 = vadd.f32 %v2565, %v2576
        %v2580 = vmax.f32 %v2578, 0.0
        %v2581 = vmax.f32 %v2579, 0.0
        %v2582 = vadd.f32 %v2580, %v1710
        %v2583 = vadd.f32 %v2581, %v1711
        %v2584 = vmax.f32 %v2582, 0.0
        %v2585 = vmax.f32 %v2583, 0.0
        %v2586 = vld [vmem:[%s13] sm:$0xff]
        %v2587 = vld [vmem:[%s13 + $0x8] sm:$0xff]
        %v2588 = vld [vmem:[%s13 + $0x10] sm:$0xff]
        %v2589 = vld [vmem:[%s13 + $0x18] sm:$0xff]
        %v2590 = vld [vmem:[%s13 + $0x20] sm:$0xff]
        %v2591 = vld [vmem:[%s13 + $0x28] sm:$0xff]
        %v2592 = vld [vmem:[%s13 + $0x30] sm:$0xff]
        %v2593 = vld [vmem:[%s13 + $0x38] sm:$0xff]
        %v2594 = vld [vmem:[%s13 + $0x40] sm:$0xff]
        %v2595 = vld [vmem:[%s13 + $0x48] sm:$0xff]
        %v2596 = vld [vmem:[%s13 + $0x50] sm:$0xff]
        %v2597 = vld [vmem:[%s13 + $0x58] sm:$0xff]
        %v2598 = vld [vmem:[%s13 + $0x60] sm:$0xff]
        %v2599 = vld [vmem:[%s13 + $0x68] sm:$0xff]
        %v2600 = vld [vmem:[%s13 + $0x70] sm:$0xff]
        %v2601 = vld [vmem:[%s13 + $0x78] sm:$0xff]
        %vm2602 = vcmp.eq.s32.totalorder %v705, 8
        %vm2603 = vcmp.eq.s32.totalorder %v706, 8
        %vm2604 = vcmp.eq.s32.totalorder %v707, 8
        %vm2605 = vcmp.eq.s32.totalorder %v708, 8
        %vm2606 = vcmp.eq.s32.totalorder %v709, 8
        %vm2607 = vcmp.eq.s32.totalorder %v710, 8
        %vm2608 = vcmp.eq.s32.totalorder %v711, 8
        %vm2609 = vcmp.eq.s32.totalorder %v712, 8
        %vm2610 = vcmp.eq.s32.totalorder %v713, 8
        %vm2611 = vcmp.eq.s32.totalorder %v714, 8
        %vm2612 = vcmp.eq.s32.totalorder %v715, 8
        %vm2613 = vcmp.eq.s32.totalorder %v716, 8
        %vm2614 = vcmp.eq.s32.totalorder %v717, 8
        %vm2615 = vcmp.eq.s32.totalorder %v718, 8
        %vm2616 = vcmp.eq.s32.totalorder %v719, 8
        %vm2617 = vcmp.eq.s32.totalorder %v720, 8
        %v2618 = vsel %vm2602, 1.0, 0.0
        %v2619 = vsel %vm2603, 1.0, 0.0
        %v2620 = vsel %vm2604, 1.0, 0.0
        %v2621 = vsel %vm2605, 1.0, 0.0
        %v2622 = vsel %vm2606, 1.0, 0.0
        %v2623 = vsel %vm2607, 1.0, 0.0
        %v2624 = vsel %vm2608, 1.0, 0.0
        %v2625 = vsel %vm2609, 1.0, 0.0
        %v2626 = vsel %vm2610, 1.0, 0.0
        %v2627 = vsel %vm2611, 1.0, 0.0
        %v2628 = vsel %vm2612, 1.0, 0.0
        %v2629 = vsel %vm2613, 1.0, 0.0
        %v2630 = vsel %vm2614, 1.0, 0.0
        %v2631 = vsel %vm2615, 1.0, 0.0
        %v2632 = vsel %vm2616, 1.0, 0.0
        %v2633 = vsel %vm2617, 1.0, 0.0
        %2634 = vmatprep.subr.mxu0 0.0
        %2635 = vmatpush1.msra.mxu0 %v2618
        %2636 = vmatprep.subr.mxu0 0.0
        %2637 = vmatpush1.msra.mxu0 %v2619
        %2638 = vmatprep.subr.mxu0 0.0
        %2639 = vmatpush1.msra.mxu0 %v2620
        %2640 = vmatprep.subr.mxu0 0.0
        %2641 = vmatpush1.msra.mxu0 %v2621
        %2642 = vmatprep.subr.mxu0 0.0
        %2643 = vmatpush1.msra.mxu0 %v2622
        %2644 = vmatprep.subr.mxu0 0.0
        %2645 = vmatpush1.msra.mxu0 %v2623
        %2646 = vmatprep.subr.mxu0 0.0
        %2647 = vmatpush1.msra.mxu0 %v2624
        %2648 = vmatprep.subr.mxu0 0.0
        %2649 = vmatpush1.msra.mxu0 %v2625
        %2650 = vmatprep.subr.mxu0 0.0
        %2651 = vmatpush1.msra.mxu0 %v2626
        %2652 = vmatprep.subr.mxu0 0.0
        %2653 = vmatpush1.msra.mxu0 %v2627
        %2654 = vmatprep.subr.mxu0 0.0
        %2655 = vmatpush1.msra.mxu0 %v2628
        %2656 = vmatprep.subr.mxu0 0.0
        %2657 = vmatpush1.msra.mxu0 %v2629
        %2658 = vmatprep.subr.mxu0 0.0
        %2659 = vmatpush1.msra.mxu0 %v2630
        %2660 = vmatprep.subr.mxu0 0.0
        %2661 = vmatpush1.msra.mxu0 %v2631
        %2662 = vmatprep.subr.mxu0 0.0
        %2663 = vmatpush1.msra.mxu0 %v2632
        %2664 = vmatprep.subr.mxu0 0.0
        %2665 = vmatpush1.msra.mxu0 %v2633
        %2666 = vmatprep.subr.mxu0 0.0
        %2667 = vmatpush1.msra.mxu0 0.0
        %2668 = vmatprep.subr.mxu0 0.0
        %2669 = vmatpush1.msra.mxu0 0.0
        %2670 = vmatprep.subr.mxu0 0.0
        %2671 = vmatpush1.msra.mxu0 0.0
        %2672 = vmatprep.subr.mxu0 0.0
        %2673 = vmatpush1.msra.mxu0 0.0
        %2674 = vmatprep.subr.mxu0 0.0
        %2675 = vmatpush1.msra.mxu0 0.0
        %2676 = vmatprep.subr.mxu0 0.0
        %2677 = vmatpush1.msra.mxu0 0.0
        %2678 = vmatprep.subr.mxu0 0.0
        %2679 = vmatpush1.msra.mxu0 0.0
        %2680 = vmatprep.subr.mxu0 0.0
        %2681 = vmatpush1.msra.mxu0 0.0
        %2682 = vmatprep.subr.mxu0 0.0
        %2683 = vmatpush1.msra.mxu0 0.0
        %2684 = vmatprep.subr.mxu0 0.0
        %2685 = vmatpush1.msra.mxu0 0.0
        %2686 = vmatprep.subr.mxu0 0.0
        %2687 = vmatpush1.msra.mxu0 0.0
        %2688 = vmatprep.subr.mxu0 0.0
        %2689 = vmatpush1.msra.mxu0 0.0
        %2690 = vmatprep.subr.mxu0 0.0
        %2691 = vmatpush1.msra.mxu0 0.0
        %2692 = vmatprep.subr.mxu0 0.0
        %2693 = vmatpush1.msra.mxu0 0.0
        %2694 = vmatprep.subr.mxu0 0.0
        %2695 = vmatpush1.msra.mxu0 0.0
        %2696 = vmatprep.subr.mxu0 0.0
        %2697 = vmatpush1.msra.mxu0 0.0
        %2698 = vmatprep.mubr.f32.mxu0 0.0
        %2699 = vmatmul.mubr.f32.gmra.mrb[0].mxu0 %v2584
        %v2700 = vpop.f32.mrb[0].mxu0
        %v2701 = vadd.f32 0.0, %v2700
        %v2702 = vpop.f32.mrb[0].mxu0
        %2703 = vmatprep.mubr.f32.mxu0 0.0
        %2704 = vmatmul.mubr.f32.gmra.mrb[0].mxu0 %v2585
        %v2705 = vpop.f32.mrb[0].mxu0
        %v2706 = vadd.f32 0.0, %v2705
        %v2707 = vpop.f32.mrb[0].mxu0
        %2708 = vdwg.mxu0
        %s2709 = scalar_lea.vmem %s13, 128
        %v2710 = vld [vmem:[%s2709] sm:$0xff]
        %v2711 = vld [vmem:[%s2709 + $0x8] sm:$0xff]
        %v2712 = vld [vmem:[%s2709 + $0x10] sm:$0xff]
        %v2713 = vld [vmem:[%s2709 + $0x18] sm:$0xff]
        %v2714 = vld [vmem:[%s2709 + $0x20] sm:$0xff]
        %v2715 = vld [vmem:[%s2709 + $0x28] sm:$0xff]
        %v2716 = vld [vmem:[%s2709 + $0x30] sm:$0xff]
        %v2717 = vld [vmem:[%s2709 + $0x38] sm:$0xff]
        %v2718 = vld [vmem:[%s2709 + $0x40] sm:$0xff]
        %v2719 = vld [vmem:[%s2709 + $0x48] sm:$0xff]
        %v2720 = vld [vmem:[%s2709 + $0x50] sm:$0xff]
        %v2721 = vld [vmem:[%s2709 + $0x58] sm:$0xff]
        %v2722 = vld [vmem:[%s2709 + $0x60] sm:$0xff]
        %v2723 = vld [vmem:[%s2709 + $0x68] sm:$0xff]
        %v2724 = vld [vmem:[%s2709 + $0x70] sm:$0xff]
        %v2725 = vld [vmem:[%s2709 + $0x78] sm:$0xff]
        %2726 = vmatprep.subr.mxu0 0.0
        %2727 = vmatpush1.msra.mxu0 %v1730
        %2728 = vmatprep.subr.mxu0 0.0
        %2729 = vmatpush1.msra.mxu0 %v1731
        %2730 = vmatprep.subr.mxu0 0.0
        %2731 = vmatpush1.msra.mxu0 %v1732
        %2732 = vmatprep.subr.mxu0 0.0
        %2733 = vmatpush1.msra.mxu0 %v1733
        %2734 = vmatprep.subr.mxu0 0.0
        %2735 = vmatpush1.msra.mxu0 %v1734
        %2736 = vmatprep.subr.mxu0 0.0
        %2737 = vmatpush1.msra.mxu0 %v1735
        %2738 = vmatprep.subr.mxu0 0.0
        %2739 = vmatpush1.msra.mxu0 %v1736
        %2740 = vmatprep.subr.mxu0 0.0
        %2741 = vmatpush1.msra.mxu0 %v1737
        %2742 = vmatprep.subr.mxu0 0.0
        %2743 = vmatpush1.msra.mxu0 %v1738
        %2744 = vmatprep.subr.mxu0 0.0
        %2745 = vmatpush1.msra.mxu0 %v1739
        %2746 = vmatprep.subr.mxu0 0.0
        %2747 = vmatpush1.msra.mxu0 %v1740
        %2748 = vmatprep.subr.mxu0 0.0
        %2749 = vmatpush1.msra.mxu0 %v1741
        %2750 = vmatprep.subr.mxu0 0.0
        %2751 = vmatpush1.msra.mxu0 %v1742
        %2752 = vmatprep.subr.mxu0 0.0
        %2753 = vmatpush1.msra.mxu0 %v1743
        %2754 = vmatprep.subr.mxu0 0.0
        %2755 = vmatpush1.msra.mxu0 %v1744
        %2756 = vmatprep.subr.mxu0 0.0
        %2757 = vmatpush1.msra.mxu0 %v1745
        %2758 = vmatprep.subr.mxu0 0.0
        %2759 = vmatpush1.msra.mxu0 0.0
        %2760 = vmatprep.subr.mxu0 0.0
        %2761 = vmatpush1.msra.mxu0 0.0
        %2762 = vmatprep.subr.mxu0 0.0
        %2763 = vmatpush1.msra.mxu0 0.0
        %2764 = vmatprep.subr.mxu0 0.0
        %2765 = vmatpush1.msra.mxu0 0.0
        %2766 = vmatprep.subr.mxu0 0.0
        %2767 = vmatpush1.msra.mxu0 0.0
        %2768 = vmatprep.subr.mxu0 0.0
        %2769 = vmatpush1.msra.mxu0 0.0
        %2770 = vmatprep.subr.mxu0 0.0
        %2771 = vmatpush1.msra.mxu0 0.0
        %2772 = vmatprep.subr.mxu0 0.0
        %2773 = vmatpush1.msra.mxu0 0.0
        %2774 = vmatprep.subr.mxu0 0.0
        %2775 = vmatpush1.msra.mxu0 0.0
        %2776 = vmatprep.subr.mxu0 0.0
        %2777 = vmatpush1.msra.mxu0 0.0
        %2778 = vmatprep.subr.mxu0 0.0
        %2779 = vmatpush1.msra.mxu0 0.0
        %2780 = vmatprep.subr.mxu0 0.0
        %2781 = vmatpush1.msra.mxu0 0.0
        %2782 = vmatprep.subr.mxu0 0.0
        %2783 = vmatpush1.msra.mxu0 0.0
        %2784 = vmatprep.subr.mxu0 0.0
        %2785 = vmatpush1.msra.mxu0 0.0
        %2786 = vmatprep.subr.mxu0 0.0
        %2787 = vmatpush1.msra.mxu0 0.0
        %2788 = vmatprep.subr.mxu0 0.0
        %2789 = vmatpush1.msra.mxu0 0.0
        %2790 = vmatprep.mubr.f32.mxu0 0.0
        %2791 = vmatmul.mubr.f32.gmra.mrb[0].mxu0 %v2584
        %v2792 = vpop.f32.mrb[0].mxu0
        %v2793 = vadd.f32 0.0, %v2792
        %v2794 = vpop.f32.mrb[0].mxu0
        %2795 = vmatprep.mubr.f32.mxu0 0.0
        %2796 = vmatmul.mubr.f32.gmra.mrb[0].mxu0 %v2585
        %v2797 = vpop.f32.mrb[0].mxu0
        %v2798 = vadd.f32 0.0, %v2797
        %v2799 = vpop.f32.mrb[0].mxu0
        %2800 = vdwg.mxu0
        %v2802 = vsel %vm1348, %v2710, 0
        %v2805 = vsel %vm1348, %v2711, 0
        %v2808 = vsel %vm1348, %v2712, 0
        %v2811 = vsel %vm1348, %v2713, 0
        %v2814 = vsel %vm1348, %v2714, 0
        %v2817 = vsel %vm1348, %v2715, 0
        %v2820 = vsel %vm1348, %v2716, 0
        %v2823 = vsel %vm1348, %v2717, 0
        %v2826 = vsel %vm1348, %v2718, 0
        %v2829 = vsel %vm1348, %v2719, 0
        %v2832 = vsel %vm1348, %v2720, 0
        %v2835 = vsel %vm1348, %v2721, 0
        %v2838 = vsel %vm1348, %v2722, 0
        %v2841 = vsel %vm1348, %v2723, 0
        %v2844 = vsel %vm1348, %v2724, 0
        %v2847 = vsel %vm1348, %v2725, 0
        %2849 = vmatprep.subr.mxu0 0.0
        %2850 = vmatpush1.msra.mxu0 %v2793
        %2851 = vmatprep.subr.mxu0 0.0
        %2852 = vmatpush1.msra.mxu0 %v2798
        %2853 = vmatprep.subr.mxu0 0.0
        %2854 = vmatpush1.msra.mxu0 0.0
        %2855 = vmatprep.subr.mxu0 0.0
        %2856 = vmatpush1.msra.mxu0 0.0
        %2857 = vmatprep.subr.mxu0 0.0
        %2858 = vmatpush1.msra.mxu0 0.0
        %2859 = vmatprep.subr.mxu0 0.0
        %2860 = vmatpush1.msra.mxu0 0.0
        %2861 = vmatprep.subr.mxu0 0.0
        %2862 = vmatpush1.msra.mxu0 0.0
        %2863 = vmatprep.subr.mxu0 0.0
        %2864 = vmatpush1.msra.mxu0 0.0
        %2865 = vmatprep.subr.mxu0 0.0
        %2866 = vmatpush1.msra.mxu0 0.0
        %2867 = vmatprep.subr.mxu0 0.0
        %2868 = vmatpush1.msra.mxu0 0.0
        %2869 = vmatprep.subr.mxu0 0.0
        %2870 = vmatpush1.msra.mxu0 0.0
        %2871 = vmatprep.subr.mxu0 0.0
        %2872 = vmatpush1.msra.mxu0 0.0
        %2873 = vmatprep.subr.mxu0 0.0
        %2874 = vmatpush1.msra.mxu0 0.0
        %2875 = vmatprep.subr.mxu0 0.0
        %2876 = vmatpush1.msra.mxu0 0.0
        %2877 = vmatprep.subr.mxu0 0.0
        %2878 = vmatpush1.msra.mxu0 0.0
        %2879 = vmatprep.subr.mxu0 0.0
        %2880 = vmatpush1.msra.mxu0 0.0
        %2881 = vmatprep.subr.mxu0 0.0
        %2882 = vmatpush1.msra.mxu0 0.0
        %2883 = vmatprep.subr.mxu0 0.0
        %2884 = vmatpush1.msra.mxu0 0.0
        %2885 = vmatprep.subr.mxu0 0.0
        %2886 = vmatpush1.msra.mxu0 0.0
        %2887 = vmatprep.subr.mxu0 0.0
        %2888 = vmatpush1.msra.mxu0 0.0
        %2889 = vmatprep.subr.mxu0 0.0
        %2890 = vmatpush1.msra.mxu0 0.0
        %2891 = vmatprep.subr.mxu0 0.0
        %2892 = vmatpush1.msra.mxu0 0.0
        %2893 = vmatprep.subr.mxu0 0.0
        %2894 = vmatpush1.msra.mxu0 0.0
        %2895 = vmatprep.subr.mxu0 0.0
        %2896 = vmatpush1.msra.mxu0 0.0
        %2897 = vmatprep.subr.mxu0 0.0
        %2898 = vmatpush1.msra.mxu0 0.0
        %2899 = vmatprep.subr.mxu0 0.0
        %2900 = vmatpush1.msra.mxu0 0.0
        %2901 = vmatprep.subr.mxu0 0.0
        %2902 = vmatpush1.msra.mxu0 0.0
        %2903 = vmatprep.subr.mxu0 0.0
        %2904 = vmatpush1.msra.mxu0 0.0
        %2905 = vmatprep.subr.mxu0 0.0
        %2906 = vmatpush1.msra.mxu0 0.0
        %2907 = vmatprep.subr.mxu0 0.0
        %2908 = vmatpush1.msra.mxu0 0.0
        %2909 = vmatprep.subr.mxu0 0.0
        %2910 = vmatpush1.msra.mxu0 0.0
        %2911 = vmatprep.subr.mxu0 0.0
        %2912 = vmatpush1.msra.mxu0 0.0
        %2913 = vmatprep.mubr.f32.mxu0 0.0
        %2914 = vmatmul.mubr.f32.gmra.mrb[0].mxu0 %v2802
        %v2915 = vpop.f32.mrb[0].mxu0
        %v2916 = vadd.f32 0.0, %v2915
        %v2917 = vpop.f32.mrb[0].mxu0
        %2918 = vmatprep.mubr.f32.mxu0 0.0
        %2919 = vmatmul.mubr.f32.gmra.mrb[0].mxu0 %v2805
        %v2920 = vpop.f32.mrb[0].mxu0
        %v2921 = vadd.f32 0.0, %v2920
        %v2922 = vpop.f32.mrb[0].mxu0
        %2923 = vmatprep.mubr.f32.mxu0 0.0
        %2924 = vmatmul.mubr.f32.gmra.mrb[0].mxu0 %v2808
        %v2925 = vpop.f32.mrb[0].mxu0
        %v2926 = vadd.f32 0.0, %v2925
        %v2927 = vpop.f32.mrb[0].mxu0
        %2928 = vmatprep.mubr.f32.mxu0 0.0
        %2929 = vmatmul.mubr.f32.gmra.mrb[0].mxu0 %v2811
        %v2930 = vpop.f32.mrb[0].mxu0
        %v2931 = vadd.f32 0.0, %v2930
        %v2932 = vpop.f32.mrb[0].mxu0
        %2933 = vmatprep.mubr.f32.mxu0 0.0
        %2934 = vmatmul.mubr.f32.gmra.mrb[0].mxu0 %v2814
        %v2935 = vpop.f32.mrb[0].mxu0
        %v2936 = vadd.f32 0.0, %v2935
        %v2937 = vpop.f32.mrb[0].mxu0
        %2938 = vmatprep.mubr.f32.mxu0 0.0
        %2939 = vmatmul.mubr.f32.gmra.mrb[0].mxu0 %v2817
        %v2940 = vpop.f32.mrb[0].mxu0
        %v2941 = vadd.f32 0.0, %v2940
        %v2942 = vpop.f32.mrb[0].mxu0
        %2943 = vmatprep.mubr.f32.mxu0 0.0
        %2944 = vmatmul.mubr.f32.gmra.mrb[0].mxu0 %v2820
        %v2945 = vpop.f32.mrb[0].mxu0
        %v2946 = vadd.f32 0.0, %v2945
        %v2947 = vpop.f32.mrb[0].mxu0
        %2948 = vmatprep.mubr.f32.mxu0 0.0
        %2949 = vmatmul.mubr.f32.gmra.mrb[0].mxu0 %v2823
        %v2950 = vpop.f32.mrb[0].mxu0
        %v2951 = vadd.f32 0.0, %v2950
        %v2952 = vpop.f32.mrb[0].mxu0
        %2953 = vmatprep.mubr.f32.mxu0 0.0
        %2954 = vmatmul.mubr.f32.gmra.mrb[0].mxu0 %v2826
        %v2955 = vpop.f32.mrb[0].mxu0
        %v2956 = vadd.f32 0.0, %v2955
        %v2957 = vpop.f32.mrb[0].mxu0
        %2958 = vmatprep.mubr.f32.mxu0 0.0
        %2959 = vmatmul.mubr.f32.gmra.mrb[0].mxu0 %v2829
        %v2960 = vpop.f32.mrb[0].mxu0
        %v2961 = vadd.f32 0.0, %v2960
        %v2962 = vpop.f32.mrb[0].mxu0
        %2963 = vmatprep.mubr.f32.mxu0 0.0
        %2964 = vmatmul.mubr.f32.gmra.mrb[0].mxu0 %v2832
        %v2965 = vpop.f32.mrb[0].mxu0
        %v2966 = vadd.f32 0.0, %v2965
        %v2967 = vpop.f32.mrb[0].mxu0
        %2968 = vmatprep.mubr.f32.mxu0 0.0
        %2969 = vmatmul.mubr.f32.gmra.mrb[0].mxu0 %v2835
        %v2970 = vpop.f32.mrb[0].mxu0
        %v2971 = vadd.f32 0.0, %v2970
        %v2972 = vpop.f32.mrb[0].mxu0
        %2973 = vmatprep.mubr.f32.mxu0 0.0
        %2974 = vmatmul.mubr.f32.gmra.mrb[0].mxu0 %v2838
        %v2975 = vpop.f32.mrb[0].mxu0
        %v2976 = vadd.f32 0.0, %v2975
        %v2977 = vpop.f32.mrb[0].mxu0
        %2978 = vmatprep.mubr.f32.mxu0 0.0
        %2979 = vmatmul.mubr.f32.gmra.mrb[0].mxu0 %v2841
        %v2980 = vpop.f32.mrb[0].mxu0
        %v2981 = vadd.f32 0.0, %v2980
        %v2982 = vpop.f32.mrb[0].mxu0
        %2983 = vmatprep.mubr.f32.mxu0 0.0
        %2984 = vmatmul.mubr.f32.gmra.mrb[0].mxu0 %v2844
        %v2985 = vpop.f32.mrb[0].mxu0
        %v2986 = vadd.f32 0.0, %v2985
        %v2987 = vpop.f32.mrb[0].mxu0
        %2988 = vmatprep.mubr.f32.mxu0 0.0
        %2989 = vmatmul.mubr.f32.gmra.mrb[0].mxu0 %v2847
        %v2990 = vpop.f32.mrb[0].mxu0
        %v2991 = vadd.f32 0.0, %v2990
        %v2992 = vpop.f32.mrb[0].mxu0
        %2993 = vdwg.mxu0
        %v2995 = vsel %vm1348, %v2586, 0
        %v2998 = vsel %vm1348, %v2587, 0
        %v3001 = vsel %vm1348, %v2588, 0
        %v3004 = vsel %vm1348, %v2589, 0
        %v3007 = vsel %vm1348, %v2590, 0
        %v3010 = vsel %vm1348, %v2591, 0
        %v3013 = vsel %vm1348, %v2592, 0
        %v3016 = vsel %vm1348, %v2593, 0
        %v3019 = vsel %vm1348, %v2594, 0
        %v3022 = vsel %vm1348, %v2595, 0
        %v3025 = vsel %vm1348, %v2596, 0
        %v3028 = vsel %vm1348, %v2597, 0
        %v3031 = vsel %vm1348, %v2598, 0
        %v3034 = vsel %vm1348, %v2599, 0
        %v3037 = vsel %vm1348, %v2600, 0
        %v3040 = vsel %vm1348, %v2601, 0
        %3042 = vmatprep.subr.mxu0 0.0
        %3043 = vmatpush1.msra.mxu0 %v2701
        %3044 = vmatprep.subr.mxu0 0.0
        %3045 = vmatpush1.msra.mxu0 %v2706
        %3046 = vmatprep.subr.mxu0 0.0
        %3047 = vmatpush1.msra.mxu0 0.0
        %3048 = vmatprep.subr.mxu0 0.0
        %3049 = vmatpush1.msra.mxu0 0.0
        %3050 = vmatprep.subr.mxu0 0.0
        %3051 = vmatpush1.msra.mxu0 0.0
        %3052 = vmatprep.subr.mxu0 0.0
        %3053 = vmatpush1.msra.mxu0 0.0
        %3054 = vmatprep.subr.mxu0 0.0
        %3055 = vmatpush1.msra.mxu0 0.0
        %3056 = vmatprep.subr.mxu0 0.0
        %3057 = vmatpush1.msra.mxu0 0.0
        %3058 = vmatprep.subr.mxu0 0.0
        %3059 = vmatpush1.msra.mxu0 0.0
        %3060 = vmatprep.subr.mxu0 0.0
        %3061 = vmatpush1.msra.mxu0 0.0
        %3062 = vmatprep.subr.mxu0 0.0
        %3063 = vmatpush1.msra.mxu0 0.0
        %3064 = vmatprep.subr.mxu0 0.0
        %3065 = vmatpush1.msra.mxu0 0.0
        %3066 = vmatprep.subr.mxu0 0.0
        %3067 = vmatpush1.msra.mxu0 0.0
        %3068 = vmatprep.subr.mxu0 0.0
        %3069 = vmatpush1.msra.mxu0 0.0
        %3070 = vmatprep.subr.mxu0 0.0
        %3071 = vmatpush1.msra.mxu0 0.0
        %3072 = vmatprep.subr.mxu0 0.0
        %3073 = vmatpush1.msra.mxu0 0.0
        %3074 = vmatprep.subr.mxu0 0.0
        %3075 = vmatpush1.msra.mxu0 0.0
        %3076 = vmatprep.subr.mxu0 0.0
        %3077 = vmatpush1.msra.mxu0 0.0
        %3078 = vmatprep.subr.mxu0 0.0
        %3079 = vmatpush1.msra.mxu0 0.0
        %3080 = vmatprep.subr.mxu0 0.0
        %3081 = vmatpush1.msra.mxu0 0.0
        %3082 = vmatprep.subr.mxu0 0.0
        %3083 = vmatpush1.msra.mxu0 0.0
        %3084 = vmatprep.subr.mxu0 0.0
        %3085 = vmatpush1.msra.mxu0 0.0
        %3086 = vmatprep.subr.mxu0 0.0
        %3087 = vmatpush1.msra.mxu0 0.0
        %3088 = vmatprep.subr.mxu0 0.0
        %3089 = vmatpush1.msra.mxu0 0.0
        %3090 = vmatprep.subr.mxu0 0.0
        %3091 = vmatpush1.msra.mxu0 0.0
        %3092 = vmatprep.subr.mxu0 0.0
        %3093 = vmatpush1.msra.mxu0 0.0
        %3094 = vmatprep.subr.mxu0 0.0
        %3095 = vmatpush1.msra.mxu0 0.0
        %3096 = vmatprep.subr.mxu0 0.0
        %3097 = vmatpush1.msra.mxu0 0.0
        %3098 = vmatprep.subr.mxu0 0.0
        %3099 = vmatpush1.msra.mxu0 0.0
        %3100 = vmatprep.subr.mxu0 0.0
        %3101 = vmatpush1.msra.mxu0 0.0
        %3102 = vmatprep.subr.mxu0 0.0
        %3103 = vmatpush1.msra.mxu0 0.0
        %3104 = vmatprep.subr.mxu0 0.0
        %3105 = vmatpush1.msra.mxu0 0.0
        %3106 = vmatprep.mubr.f32.mxu0 0.0
        %3107 = vmatmul.mubr.f32.gmra.mrb[0].mxu0 %v2995
        %v3108 = vpop.f32.mrb[0].mxu0
        %v3109 = vadd.f32 %v2916, %v3108
        %v3110 = vpop.f32.mrb[0].mxu0
        %3111 = vmatprep.mubr.f32.mxu0 0.0
        %3112 = vmatmul.mubr.f32.gmra.mrb[0].mxu0 %v2998
        %v3113 = vpop.f32.mrb[0].mxu0
        %v3114 = vadd.f32 %v2921, %v3113
        %v3115 = vpop.f32.mrb[0].mxu0
        %3116 = vmatprep.mubr.f32.mxu0 0.0
        %3117 = vmatmul.mubr.f32.gmra.mrb[0].mxu0 %v3001
        %v3118 = vpop.f32.mrb[0].mxu0
        %v3119 = vadd.f32 %v2926, %v3118
        %v3120 = vpop.f32.mrb[0].mxu0
        %3121 = vmatprep.mubr.f32.mxu0 0.0
        %3122 = vmatmul.mubr.f32.gmra.mrb[0].mxu0 %v3004
        %v3123 = vpop.f32.mrb[0].mxu0
        %v3124 = vadd.f32 %v2931, %v3123
        %v3125 = vpop.f32.mrb[0].mxu0
        %3126 = vmatprep.mubr.f32.mxu0 0.0
        %3127 = vmatmul.mubr.f32.gmra.mrb[0].mxu0 %v3007
        %v3128 = vpop.f32.mrb[0].mxu0
        %v3129 = vadd.f32 %v2936, %v3128
        %v3130 = vpop.f32.mrb[0].mxu0
        %3131 = vmatprep.mubr.f32.mxu0 0.0
        %3132 = vmatmul.mubr.f32.gmra.mrb[0].mxu0 %v3010
        %v3133 = vpop.f32.mrb[0].mxu0
        %v3134 = vadd.f32 %v2941, %v3133
        %v3135 = vpop.f32.mrb[0].mxu0
        %3136 = vmatprep.mubr.f32.mxu0 0.0
        %3137 = vmatmul.mubr.f32.gmra.mrb[0].mxu0 %v3013
        %v3138 = vpop.f32.mrb[0].mxu0
        %v3139 = vadd.f32 %v2946, %v3138
        %v3140 = vpop.f32.mrb[0].mxu0
        %3141 = vmatprep.mubr.f32.mxu0 0.0
        %3142 = vmatmul.mubr.f32.gmra.mrb[0].mxu0 %v3016
        %v3143 = vpop.f32.mrb[0].mxu0
        %v3144 = vadd.f32 %v2951, %v3143
        %v3145 = vpop.f32.mrb[0].mxu0
        %3146 = vmatprep.mubr.f32.mxu0 0.0
        %3147 = vmatmul.mubr.f32.gmra.mrb[0].mxu0 %v3019
        %v3148 = vpop.f32.mrb[0].mxu0
        %v3149 = vadd.f32 %v2956, %v3148
        %v3150 = vpop.f32.mrb[0].mxu0
        %3151 = vmatprep.mubr.f32.mxu0 0.0
        %3152 = vmatmul.mubr.f32.gmra.mrb[0].mxu0 %v3022
        %v3153 = vpop.f32.mrb[0].mxu0
        %v3154 = vadd.f32 %v2961, %v3153
        %v3155 = vpop.f32.mrb[0].mxu0
        %3156 = vmatprep.mubr.f32.mxu0 0.0
        %3157 = vmatmul.mubr.f32.gmra.mrb[0].mxu0 %v3025
        %v3158 = vpop.f32.mrb[0].mxu0
        %v3159 = vadd.f32 %v2966, %v3158
        %v3160 = vpop.f32.mrb[0].mxu0
        %3161 = vmatprep.mubr.f32.mxu0 0.0
        %3162 = vmatmul.mubr.f32.gmra.mrb[0].mxu0 %v3028
        %v3163 = vpop.f32.mrb[0].mxu0
        %v3164 = vadd.f32 %v2971, %v3163
        %v3165 = vpop.f32.mrb[0].mxu0
        %3166 = vmatprep.mubr.f32.mxu0 0.0
        %3167 = vmatmul.mubr.f32.gmra.mrb[0].mxu0 %v3031
        %v3168 = vpop.f32.mrb[0].mxu0
        %v3169 = vadd.f32 %v2976, %v3168
        %v3170 = vpop.f32.mrb[0].mxu0
        %3171 = vmatprep.mubr.f32.mxu0 0.0
        %3172 = vmatmul.mubr.f32.gmra.mrb[0].mxu0 %v3034
        %v3173 = vpop.f32.mrb[0].mxu0
        %v3174 = vadd.f32 %v2981, %v3173
        %v3175 = vpop.f32.mrb[0].mxu0
        %3176 = vmatprep.mubr.f32.mxu0 0.0
        %3177 = vmatmul.mubr.f32.gmra.mrb[0].mxu0 %v3037
        %v3178 = vpop.f32.mrb[0].mxu0
        %v3179 = vadd.f32 %v2986, %v3178
        %v3180 = vpop.f32.mrb[0].mxu0
        %3181 = vmatprep.mubr.f32.mxu0 0.0
        %3182 = vmatmul.mubr.f32.gmra.mrb[0].mxu0 %v3040
        %v3183 = vpop.f32.mrb[0].mxu0
        %v3184 = vadd.f32 %v2991, %v3183
        %v3185 = vpop.f32.mrb[0].mxu0
        %3186 = vdwg.mxu0
        %s3187 = scalar_lea.vmem %s13, 256
        %v3188 = vld [vmem:[%s3187] sm:$0xff]
        %v3189 = vld [vmem:[%s3187 + $0x8] sm:$0xff]
        %v3190 = vld [vmem:[%s3187 + $0x10] sm:$0xff]
        %v3191 = vld [vmem:[%s3187 + $0x18] sm:$0xff]
        %v3192 = vld [vmem:[%s3187 + $0x20] sm:$0xff]
        %v3193 = vld [vmem:[%s3187 + $0x28] sm:$0xff]
        %v3194 = vld [vmem:[%s3187 + $0x30] sm:$0xff]
        %v3195 = vld [vmem:[%s3187 + $0x38] sm:$0xff]
        %v3196 = vld [vmem:[%s3187 + $0x40] sm:$0xff]
        %v3197 = vld [vmem:[%s3187 + $0x48] sm:$0xff]
        %v3198 = vld [vmem:[%s3187 + $0x50] sm:$0xff]
        %v3199 = vld [vmem:[%s3187 + $0x58] sm:$0xff]
        %v3200 = vld [vmem:[%s3187 + $0x60] sm:$0xff]
        %v3201 = vld [vmem:[%s3187 + $0x68] sm:$0xff]
        %v3202 = vld [vmem:[%s3187 + $0x70] sm:$0xff]
        %v3203 = vld [vmem:[%s3187 + $0x78] sm:$0xff]
        %v3205 = vsel %vm1348, %v3188, 0
        %v3208 = vsel %vm1348, %v3189, 0
        %v3211 = vsel %vm1348, %v3190, 0
        %v3214 = vsel %vm1348, %v3191, 0
        %v3217 = vsel %vm1348, %v3192, 0
        %v3220 = vsel %vm1348, %v3193, 0
        %v3223 = vsel %vm1348, %v3194, 0
        %v3226 = vsel %vm1348, %v3195, 0
        %v3229 = vsel %vm1348, %v3196, 0
        %v3232 = vsel %vm1348, %v3197, 0
        %v3235 = vsel %vm1348, %v3198, 0
        %v3238 = vsel %vm1348, %v3199, 0
        %v3241 = vsel %vm1348, %v3200, 0
        %v3244 = vsel %vm1348, %v3201, 0
        %v3247 = vsel %vm1348, %v3202, 0
        %v3250 = vsel %vm1348, %v3203, 0
        %3252 = vmatprep.subr.mxu0 0.0
        %3253 = vmatpush1.msra.mxu0 %v2584
        %3254 = vmatprep.subr.mxu0 0.0
        %3255 = vmatpush1.msra.mxu0 %v2585
        %3256 = vmatprep.subr.mxu0 0.0
        %3257 = vmatpush1.msra.mxu0 0.0
        %3258 = vmatprep.subr.mxu0 0.0
        %3259 = vmatpush1.msra.mxu0 0.0
        %3260 = vmatprep.subr.mxu0 0.0
        %3261 = vmatpush1.msra.mxu0 0.0
        %3262 = vmatprep.subr.mxu0 0.0
        %3263 = vmatpush1.msra.mxu0 0.0
        %3264 = vmatprep.subr.mxu0 0.0
        %3265 = vmatpush1.msra.mxu0 0.0
        %3266 = vmatprep.subr.mxu0 0.0
        %3267 = vmatpush1.msra.mxu0 0.0
        %3268 = vmatprep.subr.mxu0 0.0
        %3269 = vmatpush1.msra.mxu0 0.0
        %3270 = vmatprep.subr.mxu0 0.0
        %3271 = vmatpush1.msra.mxu0 0.0
        %3272 = vmatprep.subr.mxu0 0.0
        %3273 = vmatpush1.msra.mxu0 0.0
        %3274 = vmatprep.subr.mxu0 0.0
        %3275 = vmatpush1.msra.mxu0 0.0
        %3276 = vmatprep.subr.mxu0 0.0
        %3277 = vmatpush1.msra.mxu0 0.0
        %3278 = vmatprep.subr.mxu0 0.0
        %3279 = vmatpush1.msra.mxu0 0.0
        %3280 = vmatprep.subr.mxu0 0.0
        %3281 = vmatpush1.msra.mxu0 0.0
        %3282 = vmatprep.subr.mxu0 0.0
        %3283 = vmatpush1.msra.mxu0 0.0
        %3284 = vmatprep.subr.mxu0 0.0
        %3285 = vmatpush1.msra.mxu0 0.0
        %3286 = vmatprep.subr.mxu0 0.0
        %3287 = vmatpush1.msra.mxu0 0.0
        %3288 = vmatprep.subr.mxu0 0.0
        %3289 = vmatpush1.msra.mxu0 0.0
        %3290 = vmatprep.subr.mxu0 0.0
        %3291 = vmatpush1.msra.mxu0 0.0
        %3292 = vmatprep.subr.mxu0 0.0
        %3293 = vmatpush1.msra.mxu0 0.0
        %3294 = vmatprep.subr.mxu0 0.0
        %3295 = vmatpush1.msra.mxu0 0.0
        %3296 = vmatprep.subr.mxu0 0.0
        %3297 = vmatpush1.msra.mxu0 0.0
        %3298 = vmatprep.subr.mxu0 0.0
        %3299 = vmatpush1.msra.mxu0 0.0
        %3300 = vmatprep.subr.mxu0 0.0
        %3301 = vmatpush1.msra.mxu0 0.0
        %3302 = vmatprep.subr.mxu0 0.0
        %3303 = vmatpush1.msra.mxu0 0.0
        %3304 = vmatprep.subr.mxu0 0.0
        %3305 = vmatpush1.msra.mxu0 0.0
        %3306 = vmatprep.subr.mxu0 0.0
        %3307 = vmatpush1.msra.mxu0 0.0
        %3308 = vmatprep.subr.mxu0 0.0
        %3309 = vmatpush1.msra.mxu0 0.0
        %3310 = vmatprep.subr.mxu0 0.0
        %3311 = vmatpush1.msra.mxu0 0.0
        %3312 = vmatprep.subr.mxu0 0.0
        %3313 = vmatpush1.msra.mxu0 0.0
        %3314 = vmatprep.subr.mxu0 0.0
        %3315 = vmatpush1.msra.mxu0 0.0
        %3316 = vmatprep.mubr.f32.mxu0 0.0
        %3317 = vmatmul.mubr.f32.gmra.mrb[0].mxu0 %v3205
        %v3318 = vpop.f32.mrb[0].mxu0
        %v3319 = vadd.f32 0.0, %v3318
        %v3320 = vpop.f32.mrb[0].mxu0
        %3321 = vmatprep.mubr.f32.mxu0 0.0
        %3322 = vmatmul.mubr.f32.gmra.mrb[0].mxu0 %v3208
        %v3323 = vpop.f32.mrb[0].mxu0
        %v3324 = vadd.f32 0.0, %v3323
        %v3325 = vpop.f32.mrb[0].mxu0
        %3326 = vmatprep.mubr.f32.mxu0 0.0
        %3327 = vmatmul.mubr.f32.gmra.mrb[0].mxu0 %v3211
        %v3328 = vpop.f32.mrb[0].mxu0
        %v3329 = vadd.f32 0.0, %v3328
        %v3330 = vpop.f32.mrb[0].mxu0
        %3331 = vmatprep.mubr.f32.mxu0 0.0
        %3332 = vmatmul.mubr.f32.gmra.mrb[0].mxu0 %v3214
        %v3333 = vpop.f32.mrb[0].mxu0
        %v3334 = vadd.f32 0.0, %v3333
        %v3335 = vpop.f32.mrb[0].mxu0
        %3336 = vmatprep.mubr.f32.mxu0 0.0
        %3337 = vmatmul.mubr.f32.gmra.mrb[0].mxu0 %v3217
        %v3338 = vpop.f32.mrb[0].mxu0
        %v3339 = vadd.f32 0.0, %v3338
        %v3340 = vpop.f32.mrb[0].mxu0
        %3341 = vmatprep.mubr.f32.mxu0 0.0
        %3342 = vmatmul.mubr.f32.gmra.mrb[0].mxu0 %v3220
        %v3343 = vpop.f32.mrb[0].mxu0
        %v3344 = vadd.f32 0.0, %v3343
        %v3345 = vpop.f32.mrb[0].mxu0
        %3346 = vmatprep.mubr.f32.mxu0 0.0
        %3347 = vmatmul.mubr.f32.gmra.mrb[0].mxu0 %v3223
        %v3348 = vpop.f32.mrb[0].mxu0
        %v3349 = vadd.f32 0.0, %v3348
        %v3350 = vpop.f32.mrb[0].mxu0
        %3351 = vmatprep.mubr.f32.mxu0 0.0
        %3352 = vmatmul.mubr.f32.gmra.mrb[0].mxu0 %v3226
        %v3353 = vpop.f32.mrb[0].mxu0
        %v3354 = vadd.f32 0.0, %v3353
        %v3355 = vpop.f32.mrb[0].mxu0
        %3356 = vmatprep.mubr.f32.mxu0 0.0
        %3357 = vmatmul.mubr.f32.gmra.mrb[0].mxu0 %v3229
        %v3358 = vpop.f32.mrb[0].mxu0
        %v3359 = vadd.f32 0.0, %v3358
        %v3360 = vpop.f32.mrb[0].mxu0
        %3361 = vmatprep.mubr.f32.mxu0 0.0
        %3362 = vmatmul.mubr.f32.gmra.mrb[0].mxu0 %v3232
        %v3363 = vpop.f32.mrb[0].mxu0
        %v3364 = vadd.f32 0.0, %v3363
        %v3365 = vpop.f32.mrb[0].mxu0
        %3366 = vmatprep.mubr.f32.mxu0 0.0
        %3367 = vmatmul.mubr.f32.gmra.mrb[0].mxu0 %v3235
        %v3368 = vpop.f32.mrb[0].mxu0
        %v3369 = vadd.f32 0.0, %v3368
        %v3370 = vpop.f32.mrb[0].mxu0
        %3371 = vmatprep.mubr.f32.mxu0 0.0
        %3372 = vmatmul.mubr.f32.gmra.mrb[0].mxu0 %v3238
        %v3373 = vpop.f32.mrb[0].mxu0
        %v3374 = vadd.f32 0.0, %v3373
        %v3375 = vpop.f32.mrb[0].mxu0
        %3376 = vmatprep.mubr.f32.mxu0 0.0
        %3377 = vmatmul.mubr.f32.gmra.mrb[0].mxu0 %v3241
        %v3378 = vpop.f32.mrb[0].mxu0
        %v3379 = vadd.f32 0.0, %v3378
        %v3380 = vpop.f32.mrb[0].mxu0
        %3381 = vmatprep.mubr.f32.mxu0 0.0
        %3382 = vmatmul.mubr.f32.gmra.mrb[0].mxu0 %v3244
        %v3383 = vpop.f32.mrb[0].mxu0
        %v3384 = vadd.f32 0.0, %v3383
        %v3385 = vpop.f32.mrb[0].mxu0
        %3386 = vmatprep.mubr.f32.mxu0 0.0
        %3387 = vmatmul.mubr.f32.gmra.mrb[0].mxu0 %v3247
        %v3388 = vpop.f32.mrb[0].mxu0
        %v3389 = vadd.f32 0.0, %v3388
        %v3390 = vpop.f32.mrb[0].mxu0
        %3391 = vmatprep.mubr.f32.mxu0 0.0
        %3392 = vmatmul.mubr.f32.gmra.mrb[0].mxu0 %v3250
        %v3393 = vpop.f32.mrb[0].mxu0
        %v3394 = vadd.f32 0.0, %v3393
        %v3395 = vpop.f32.mrb[0].mxu0
        %3396 = vdwg.mxu0
        %v3397 = vadd.f32 %v3109, %v3319
        %v3398 = vadd.f32 %v3114, %v3324
        %v3399 = vadd.f32 %v3119, %v3329
        %v3400 = vadd.f32 %v3124, %v3334
        %v3401 = vadd.f32 %v3129, %v3339
        %v3402 = vadd.f32 %v3134, %v3344
        %v3403 = vadd.f32 %v3139, %v3349
        %v3404 = vadd.f32 %v3144, %v3354
        %v3405 = vadd.f32 %v3149, %v3359
        %v3406 = vadd.f32 %v3154, %v3364
        %v3407 = vadd.f32 %v3159, %v3369
        %v3408 = vadd.f32 %v3164, %v3374
        %v3409 = vadd.f32 %v3169, %v3379
        %v3410 = vadd.f32 %v3174, %v3384
        %v3411 = vadd.f32 %v3179, %v3389
        %v3412 = vadd.f32 %v3184, %v3394
        %v3413 = vld [vmem:[%s14] sm:$0xff]
        %v3414 = vld [vmem:[%s14 + $0x8] sm:$0xff]
        %v3415 = vld [vmem:[%s14 + $0x10] sm:$0xff]
        %v3416 = vld [vmem:[%s14 + $0x18] sm:$0xff]
        %v3417 = vld [vmem:[%s14 + $0x20] sm:$0xff]
        %v3418 = vld [vmem:[%s14 + $0x28] sm:$0xff]
        %v3419 = vld [vmem:[%s14 + $0x30] sm:$0xff]
        %v3420 = vld [vmem:[%s14 + $0x38] sm:$0xff]
        %v3421 = vld [vmem:[%s14 + $0x40] sm:$0xff]
        %v3422 = vld [vmem:[%s14 + $0x48] sm:$0xff]
        %v3423 = vld [vmem:[%s14 + $0x50] sm:$0xff]
        %v3424 = vld [vmem:[%s14 + $0x58] sm:$0xff]
        %v3425 = vld [vmem:[%s14 + $0x60] sm:$0xff]
        %v3426 = vld [vmem:[%s14 + $0x68] sm:$0xff]
        %v3427 = vld [vmem:[%s14 + $0x70] sm:$0xff]
        %v3428 = vld [vmem:[%s14 + $0x78] sm:$0xff]
        %3430 = vset.pattern.permute.xlu0 0
        %3431 = vperm.xlu0 %3430, %v3413
        %v3432 = vpop.permute.xlu0 %3431
        %3435 = vset.pattern.permute.xlu0 0
        %3436 = vperm.xlu0 %3435, %v3414
        %v3437 = vpop.permute.xlu0 %3436
        %3440 = vset.pattern.permute.xlu0 0
        %3441 = vperm.xlu0 %3440, %v3415
        %v3442 = vpop.permute.xlu0 %3441
        %3445 = vset.pattern.permute.xlu0 0
        %3446 = vperm.xlu0 %3445, %v3416
        %v3447 = vpop.permute.xlu0 %3446
        %3450 = vset.pattern.permute.xlu0 0
        %3451 = vperm.xlu0 %3450, %v3417
        %v3452 = vpop.permute.xlu0 %3451
        %3455 = vset.pattern.permute.xlu0 0
        %3456 = vperm.xlu0 %3455, %v3418
        %v3457 = vpop.permute.xlu0 %3456
        %3460 = vset.pattern.permute.xlu0 0
        %3461 = vperm.xlu0 %3460, %v3419
        %v3462 = vpop.permute.xlu0 %3461
        %3465 = vset.pattern.permute.xlu0 0
        %3466 = vperm.xlu0 %3465, %v3420
        %v3467 = vpop.permute.xlu0 %3466
        %3470 = vset.pattern.permute.xlu0 0
        %3471 = vperm.xlu0 %3470, %v3421
        %v3472 = vpop.permute.xlu0 %3471
        %3475 = vset.pattern.permute.xlu0 0
        %3476 = vperm.xlu0 %3475, %v3422
        %v3477 = vpop.permute.xlu0 %3476
        %3480 = vset.pattern.permute.xlu0 0
        %3481 = vperm.xlu0 %3480, %v3423
        %v3482 = vpop.permute.xlu0 %3481
        %3485 = vset.pattern.permute.xlu0 0
        %3486 = vperm.xlu0 %3485, %v3424
        %v3487 = vpop.permute.xlu0 %3486
        %3490 = vset.pattern.permute.xlu0 0
        %3491 = vperm.xlu0 %3490, %v3425
        %v3492 = vpop.permute.xlu0 %3491
        %3495 = vset.pattern.permute.xlu0 0
        %3496 = vperm.xlu0 %3495, %v3426
        %v3497 = vpop.permute.xlu0 %3496
        %3500 = vset.pattern.permute.xlu0 0
        %3501 = vperm.xlu0 %3500, %v3427
        %v3502 = vpop.permute.xlu0 %3501
        %3505 = vset.pattern.permute.xlu0 0
        %3506 = vperm.xlu0 %3505, %v3428
        %v3507 = vpop.permute.xlu0 %3506
        %v3509 = vadd.f32 %v3397, %v3432
        %v3510 = vadd.f32 %v3398, %v3437
        %v3511 = vadd.f32 %v3399, %v3442
        %v3512 = vadd.f32 %v3400, %v3447
        %v3513 = vadd.f32 %v3401, %v3452
        %v3514 = vadd.f32 %v3402, %v3457
        %v3515 = vadd.f32 %v3403, %v3462
        %v3516 = vadd.f32 %v3404, %v3467
        %v3517 = vadd.f32 %v3405, %v3472
        %v3518 = vadd.f32 %v3406, %v3477
        %v3519 = vadd.f32 %v3407, %v3482
        %v3520 = vadd.f32 %v3408, %v3487
        %v3521 = vadd.f32 %v3409, %v3492
        %v3522 = vadd.f32 %v3410, %v3497
        %v3523 = vadd.f32 %v3411, %v3502
        %v3524 = vadd.f32 %v3412, %v3507
        %v3525 = vmax.f32 %v3509, 0.0
        %v3526 = vmax.f32 %v3510, 0.0
        %v3527 = vmax.f32 %v3511, 0.0
        %v3528 = vmax.f32 %v3512, 0.0
        %v3529 = vmax.f32 %v3513, 0.0
        %v3530 = vmax.f32 %v3514, 0.0
        %v3531 = vmax.f32 %v3515, 0.0
        %v3532 = vmax.f32 %v3516, 0.0
        %v3533 = vmax.f32 %v3517, 0.0
        %v3534 = vmax.f32 %v3518, 0.0
        %v3535 = vmax.f32 %v3519, 0.0
        %v3536 = vmax.f32 %v3520, 0.0
        %v3537 = vmax.f32 %v3521, 0.0
        %v3538 = vmax.f32 %v3522, 0.0
        %v3539 = vmax.f32 %v3523, 0.0
        %v3540 = vmax.f32 %v3524, 0.0
        %v3541 = vld [vmem:[%s15] sm:$0xff]
        %v3542 = vld [vmem:[%s15 + $0x8] sm:$0xff]
        %v3543 = vld [vmem:[%s15 + $0x10] sm:$0xff]
        %v3544 = vld [vmem:[%s15 + $0x18] sm:$0xff]
        %v3545 = vld [vmem:[%s15 + $0x20] sm:$0xff]
        %v3546 = vld [vmem:[%s15 + $0x28] sm:$0xff]
        %v3547 = vld [vmem:[%s15 + $0x30] sm:$0xff]
        %v3548 = vld [vmem:[%s15 + $0x38] sm:$0xff]
        %v3549 = vld [vmem:[%s15 + $0x40] sm:$0xff]
        %v3550 = vld [vmem:[%s15 + $0x48] sm:$0xff]
        %v3551 = vld [vmem:[%s15 + $0x50] sm:$0xff]
        %v3552 = vld [vmem:[%s15 + $0x58] sm:$0xff]
        %v3553 = vld [vmem:[%s15 + $0x60] sm:$0xff]
        %v3554 = vld [vmem:[%s15 + $0x68] sm:$0xff]
        %v3555 = vld [vmem:[%s15 + $0x70] sm:$0xff]
        %v3556 = vld [vmem:[%s15 + $0x78] sm:$0xff]
        %3557 = vmatprep.subr.mxu0 0.0
        %3558 = vmatpush1.msra.mxu0 %v2618
        %3559 = vmatprep.subr.mxu0 0.0
        %3560 = vmatpush1.msra.mxu0 %v2619
        %3561 = vmatprep.subr.mxu0 0.0
        %3562 = vmatpush1.msra.mxu0 %v2620
        %3563 = vmatprep.subr.mxu0 0.0
        %3564 = vmatpush1.msra.mxu0 %v2621
        %3565 = vmatprep.subr.mxu0 0.0
        %3566 = vmatpush1.msra.mxu0 %v2622
        %3567 = vmatprep.subr.mxu0 0.0
        %3568 = vmatpush1.msra.mxu0 %v2623
        %3569 = vmatprep.subr.mxu0 0.0
        %3570 = vmatpush1.msra.mxu0 %v2624
        %3571 = vmatprep.subr.mxu0 0.0
        %3572 = vmatpush1.msra.mxu0 %v2625
        %3573 = vmatprep.subr.mxu0 0.0
        %3574 = vmatpush1.msra.mxu0 %v2626
        %3575 = vmatprep.subr.mxu0 0.0
        %3576 = vmatpush1.msra.mxu0 %v2627
        %3577 = vmatprep.subr.mxu0 0.0
        %3578 = vmatpush1.msra.mxu0 %v2628
        %3579 = vmatprep.subr.mxu0 0.0
        %3580 = vmatpush1.msra.mxu0 %v2629
        %3581 = vmatprep.subr.mxu0 0.0
        %3582 = vmatpush1.msra.mxu0 %v2630
        %3583 = vmatprep.subr.mxu0 0.0
        %3584 = vmatpush1.msra.mxu0 %v2631
        %3585 = vmatprep.subr.mxu0 0.0
        %3586 = vmatpush1.msra.mxu0 %v2632
        %3587 = vmatprep.subr.mxu0 0.0
        %3588 = vmatpush1.msra.mxu0 %v2633
        %3589 = vmatprep.subr.mxu0 0.0
        %3590 = vmatpush1.msra.mxu0 0.0
        %3591 = vmatprep.subr.mxu0 0.0
        %3592 = vmatpush1.msra.mxu0 0.0
        %3593 = vmatprep.subr.mxu0 0.0
        %3594 = vmatpush1.msra.mxu0 0.0
        %3595 = vmatprep.subr.mxu0 0.0
        %3596 = vmatpush1.msra.mxu0 0.0
        %3597 = vmatprep.subr.mxu0 0.0
        %3598 = vmatpush1.msra.mxu0 0.0
        %3599 = vmatprep.subr.mxu0 0.0
        %3600 = vmatpush1.msra.mxu0 0.0
        %3601 = vmatprep.subr.mxu0 0.0
        %3602 = vmatpush1.msra.mxu0 0.0
        %3603 = vmatprep.subr.mxu0 0.0
        %3604 = vmatpush1.msra.mxu0 0.0
        %3605 = vmatprep.subr.mxu0 0.0
        %3606 = vmatpush1.msra.mxu0 0.0
        %3607 = vmatprep.subr.mxu0 0.0
        %3608 = vmatpush1.msra.mxu0 0.0
        %3609 = vmatprep.subr.mxu0 0.0
        %3610 = vmatpush1.msra.mxu0 0.0
        %3611 = vmatprep.subr.mxu0 0.0
        %3612 = vmatpush1.msra.mxu0 0.0
        %3613 = vmatprep.subr.mxu0 0.0
        %3614 = vmatpush1.msra.mxu0 0.0
        %3615 = vmatprep.subr.mxu0 0.0
        %3616 = vmatpush1.msra.mxu0 0.0
        %3617 = vmatprep.subr.mxu0 0.0
        %3618 = vmatpush1.msra.mxu0 0.0
        %3619 = vmatprep.subr.mxu0 0.0
        %3620 = vmatpush1.msra.mxu0 0.0
        %3621 = vmatprep.mubr.f32.mxu0 0.0
        %3622 = vmatmul.mubr.f32.gmra.mrb[0].mxu0 %v3525
        %v3623 = vpop.f32.mrb[0].mxu0
        %v3624 = vadd.f32 0.0, %v3623
        %v3625 = vpop.f32.mrb[0].mxu0
        %3626 = vmatprep.mubr.f32.mxu0 0.0
        %3627 = vmatmul.mubr.f32.gmra.mrb[0].mxu0 %v3526
        %v3628 = vpop.f32.mrb[0].mxu0
        %v3629 = vadd.f32 0.0, %v3628
        %v3630 = vpop.f32.mrb[0].mxu0
        %3631 = vmatprep.mubr.f32.mxu0 0.0
        %3632 = vmatmul.mubr.f32.gmra.mrb[0].mxu0 %v3527
        %v3633 = vpop.f32.mrb[0].mxu0
        %v3634 = vadd.f32 0.0, %v3633
        %v3635 = vpop.f32.mrb[0].mxu0
        %3636 = vmatprep.mubr.f32.mxu0 0.0
        %3637 = vmatmul.mubr.f32.gmra.mrb[0].mxu0 %v3528
        %v3638 = vpop.f32.mrb[0].mxu0
        %v3639 = vadd.f32 0.0, %v3638
        %v3640 = vpop.f32.mrb[0].mxu0
        %3641 = vmatprep.mubr.f32.mxu0 0.0
        %3642 = vmatmul.mubr.f32.gmra.mrb[0].mxu0 %v3529
        %v3643 = vpop.f32.mrb[0].mxu0
        %v3644 = vadd.f32 0.0, %v3643
        %v3645 = vpop.f32.mrb[0].mxu0
        %3646 = vmatprep.mubr.f32.mxu0 0.0
        %3647 = vmatmul.mubr.f32.gmra.mrb[0].mxu0 %v3530
        %v3648 = vpop.f32.mrb[0].mxu0
        %v3649 = vadd.f32 0.0, %v3648
        %v3650 = vpop.f32.mrb[0].mxu0
        %3651 = vmatprep.mubr.f32.mxu0 0.0
        %3652 = vmatmul.mubr.f32.gmra.mrb[0].mxu0 %v3531
        %v3653 = vpop.f32.mrb[0].mxu0
        %v3654 = vadd.f32 0.0, %v3653
        %v3655 = vpop.f32.mrb[0].mxu0
        %3656 = vmatprep.mubr.f32.mxu0 0.0
        %3657 = vmatmul.mubr.f32.gmra.mrb[0].mxu0 %v3532
        %v3658 = vpop.f32.mrb[0].mxu0
        %v3659 = vadd.f32 0.0, %v3658
        %v3660 = vpop.f32.mrb[0].mxu0
        %3661 = vmatprep.mubr.f32.mxu0 0.0
        %3662 = vmatmul.mubr.f32.gmra.mrb[0].mxu0 %v3533
        %v3663 = vpop.f32.mrb[0].mxu0
        %v3664 = vadd.f32 0.0, %v3663
        %v3665 = vpop.f32.mrb[0].mxu0
        %3666 = vmatprep.mubr.f32.mxu0 0.0
        %3667 = vmatmul.mubr.f32.gmra.mrb[0].mxu0 %v3534
        %v3668 = vpop.f32.mrb[0].mxu0
        %v3669 = vadd.f32 0.0, %v3668
        %v3670 = vpop.f32.mrb[0].mxu0
        %3671 = vmatprep.mubr.f32.mxu0 0.0
        %3672 = vmatmul.mubr.f32.gmra.mrb[0].mxu0 %v3535
        %v3673 = vpop.f32.mrb[0].mxu0
        %v3674 = vadd.f32 0.0, %v3673
        %v3675 = vpop.f32.mrb[0].mxu0
        %3676 = vmatprep.mubr.f32.mxu0 0.0
        %3677 = vmatmul.mubr.f32.gmra.mrb[0].mxu0 %v3536
        %v3678 = vpop.f32.mrb[0].mxu0
        %v3679 = vadd.f32 0.0, %v3678
        %v3680 = vpop.f32.mrb[0].mxu0
        %3681 = vmatprep.mubr.f32.mxu0 0.0
        %3682 = vmatmul.mubr.f32.gmra.mrb[0].mxu0 %v3537
        %v3683 = vpop.f32.mrb[0].mxu0
        %v3684 = vadd.f32 0.0, %v3683
        %v3685 = vpop.f32.mrb[0].mxu0
        %3686 = vmatprep.mubr.f32.mxu0 0.0
        %3687 = vmatmul.mubr.f32.gmra.mrb[0].mxu0 %v3538
        %v3688 = vpop.f32.mrb[0].mxu0
        %v3689 = vadd.f32 0.0, %v3688
        %v3690 = vpop.f32.mrb[0].mxu0
        %3691 = vmatprep.mubr.f32.mxu0 0.0
        %3692 = vmatmul.mubr.f32.gmra.mrb[0].mxu0 %v3539
        %v3693 = vpop.f32.mrb[0].mxu0
        %v3694 = vadd.f32 0.0, %v3693
        %v3695 = vpop.f32.mrb[0].mxu0
        %3696 = vmatprep.mubr.f32.mxu0 0.0
        %3697 = vmatmul.mubr.f32.gmra.mrb[0].mxu0 %v3540
        %v3698 = vpop.f32.mrb[0].mxu0
        %v3699 = vadd.f32 0.0, %v3698
        %v3700 = vpop.f32.mrb[0].mxu0
        %3701 = vdwg.mxu0
        %s3702 = scalar_lea.vmem %s15, 128
        %v3703 = vld [vmem:[%s3702] sm:$0xff]
        %v3704 = vld [vmem:[%s3702 + $0x8] sm:$0xff]
        %v3705 = vld [vmem:[%s3702 + $0x10] sm:$0xff]
        %v3706 = vld [vmem:[%s3702 + $0x18] sm:$0xff]
        %v3707 = vld [vmem:[%s3702 + $0x20] sm:$0xff]
        %v3708 = vld [vmem:[%s3702 + $0x28] sm:$0xff]
        %v3709 = vld [vmem:[%s3702 + $0x30] sm:$0xff]
        %v3710 = vld [vmem:[%s3702 + $0x38] sm:$0xff]
        %v3711 = vld [vmem:[%s3702 + $0x40] sm:$0xff]
        %v3712 = vld [vmem:[%s3702 + $0x48] sm:$0xff]
        %v3713 = vld [vmem:[%s3702 + $0x50] sm:$0xff]
        %v3714 = vld [vmem:[%s3702 + $0x58] sm:$0xff]
        %v3715 = vld [vmem:[%s3702 + $0x60] sm:$0xff]
        %v3716 = vld [vmem:[%s3702 + $0x68] sm:$0xff]
        %v3717 = vld [vmem:[%s3702 + $0x70] sm:$0xff]
        %v3718 = vld [vmem:[%s3702 + $0x78] sm:$0xff]
        %3719 = vmatprep.subr.mxu0 0.0
        %3720 = vmatpush1.msra.mxu0 %v1730
        %3721 = vmatprep.subr.mxu0 0.0
        %3722 = vmatpush1.msra.mxu0 %v1731
        %3723 = vmatprep.subr.mxu0 0.0
        %3724 = vmatpush1.msra.mxu0 %v1732
        %3725 = vmatprep.subr.mxu0 0.0
        %3726 = vmatpush1.msra.mxu0 %v1733
        %3727 = vmatprep.subr.mxu0 0.0
        %3728 = vmatpush1.msra.mxu0 %v1734
        %3729 = vmatprep.subr.mxu0 0.0
        %3730 = vmatpush1.msra.mxu0 %v1735
        %3731 = vmatprep.subr.mxu0 0.0
        %3732 = vmatpush1.msra.mxu0 %v1736
        %3733 = vmatprep.subr.mxu0 0.0
        %3734 = vmatpush1.msra.mxu0 %v1737
        %3735 = vmatprep.subr.mxu0 0.0
        %3736 = vmatpush1.msra.mxu0 %v1738
        %3737 = vmatprep.subr.mxu0 0.0
        %3738 = vmatpush1.msra.mxu0 %v1739
        %3739 = vmatprep.subr.mxu0 0.0
        %3740 = vmatpush1.msra.mxu0 %v1740
        %3741 = vmatprep.subr.mxu0 0.0
        %3742 = vmatpush1.msra.mxu0 %v1741
        %3743 = vmatprep.subr.mxu0 0.0
        %3744 = vmatpush1.msra.mxu0 %v1742
        %3745 = vmatprep.subr.mxu0 0.0
        %3746 = vmatpush1.msra.mxu0 %v1743
        %3747 = vmatprep.subr.mxu0 0.0
        %3748 = vmatpush1.msra.mxu0 %v1744
        %3749 = vmatprep.subr.mxu0 0.0
        %3750 = vmatpush1.msra.mxu0 %v1745
        %3751 = vmatprep.subr.mxu0 0.0
        %3752 = vmatpush1.msra.mxu0 0.0
        %3753 = vmatprep.subr.mxu0 0.0
        %3754 = vmatpush1.msra.mxu0 0.0
        %3755 = vmatprep.subr.mxu0 0.0
        %3756 = vmatpush1.msra.mxu0 0.0
        %3757 = vmatprep.subr.mxu0 0.0
        %3758 = vmatpush1.msra.mxu0 0.0
        %3759 = vmatprep.subr.mxu0 0.0
        %3760 = vmatpush1.msra.mxu0 0.0
        %3761 = vmatprep.subr.mxu0 0.0
        %3762 = vmatpush1.msra.mxu0 0.0
        %3763 = vmatprep.subr.mxu0 0.0
        %3764 = vmatpush1.msra.mxu0 0.0
        %3765 = vmatprep.subr.mxu0 0.0
        %3766 = vmatpush1.msra.mxu0 0.0
        %3767 = vmatprep.subr.mxu0 0.0
        %3768 = vmatpush1.msra.mxu0 0.0
        %3769 = vmatprep.subr.mxu0 0.0
        %3770 = vmatpush1.msra.mxu0 0.0
        %3771 = vmatprep.subr.mxu0 0.0
        %3772 = vmatpush1.msra.mxu0 0.0
        %3773 = vmatprep.subr.mxu0 0.0
        %3774 = vmatpush1.msra.mxu0 0.0
        %3775 = vmatprep.subr.mxu0 0.0
        %3776 = vmatpush1.msra.mxu0 0.0
        %3777 = vmatprep.subr.mxu0 0.0
        %3778 = vmatpush1.msra.mxu0 0.0
        %3779 = vmatprep.subr.mxu0 0.0
        %3780 = vmatpush1.msra.mxu0 0.0
        %3781 = vmatprep.subr.mxu0 0.0
        %3782 = vmatpush1.msra.mxu0 0.0
        %3783 = vmatprep.mubr.f32.mxu0 0.0
        %3784 = vmatmul.mubr.f32.gmra.mrb[0].mxu0 %v3525
        %v3785 = vpop.f32.mrb[0].mxu0
        %v3786 = vadd.f32 0.0, %v3785
        %v3787 = vpop.f32.mrb[0].mxu0
        %3788 = vmatprep.mubr.f32.mxu0 0.0
        %3789 = vmatmul.mubr.f32.gmra.mrb[0].mxu0 %v3526
        %v3790 = vpop.f32.mrb[0].mxu0
        %v3791 = vadd.f32 0.0, %v3790
        %v3792 = vpop.f32.mrb[0].mxu0
        %3793 = vmatprep.mubr.f32.mxu0 0.0
        %3794 = vmatmul.mubr.f32.gmra.mrb[0].mxu0 %v3527
        %v3795 = vpop.f32.mrb[0].mxu0
        %v3796 = vadd.f32 0.0, %v3795
        %v3797 = vpop.f32.mrb[0].mxu0
        %3798 = vmatprep.mubr.f32.mxu0 0.0
        %3799 = vmatmul.mubr.f32.gmra.mrb[0].mxu0 %v3528
        %v3800 = vpop.f32.mrb[0].mxu0
        %v3801 = vadd.f32 0.0, %v3800
        %v3802 = vpop.f32.mrb[0].mxu0
        %3803 = vmatprep.mubr.f32.mxu0 0.0
        %3804 = vmatmul.mubr.f32.gmra.mrb[0].mxu0 %v3529
        %v3805 = vpop.f32.mrb[0].mxu0
        %v3806 = vadd.f32 0.0, %v3805
        %v3807 = vpop.f32.mrb[0].mxu0
        %3808 = vmatprep.mubr.f32.mxu0 0.0
        %3809 = vmatmul.mubr.f32.gmra.mrb[0].mxu0 %v3530
        %v3810 = vpop.f32.mrb[0].mxu0
        %v3811 = vadd.f32 0.0, %v3810
        %v3812 = vpop.f32.mrb[0].mxu0
        %3813 = vmatprep.mubr.f32.mxu0 0.0
        %3814 = vmatmul.mubr.f32.gmra.mrb[0].mxu0 %v3531
        %v3815 = vpop.f32.mrb[0].mxu0
        %v3816 = vadd.f32 0.0, %v3815
        %v3817 = vpop.f32.mrb[0].mxu0
        %3818 = vmatprep.mubr.f32.mxu0 0.0
        %3819 = vmatmul.mubr.f32.gmra.mrb[0].mxu0 %v3532
        %v3820 = vpop.f32.mrb[0].mxu0
        %v3821 = vadd.f32 0.0, %v3820
        %v3822 = vpop.f32.mrb[0].mxu0
        %3823 = vmatprep.mubr.f32.mxu0 0.0
        %3824 = vmatmul.mubr.f32.gmra.mrb[0].mxu0 %v3533
        %v3825 = vpop.f32.mrb[0].mxu0
        %v3826 = vadd.f32 0.0, %v3825
        %v3827 = vpop.f32.mrb[0].mxu0
        %3828 = vmatprep.mubr.f32.mxu0 0.0
        %3829 = vmatmul.mubr.f32.gmra.mrb[0].mxu0 %v3534
        %v3830 = vpop.f32.mrb[0].mxu0
        %v3831 = vadd.f32 0.0, %v3830
        %v3832 = vpop.f32.mrb[0].mxu0
        %3833 = vmatprep.mubr.f32.mxu0 0.0
        %3834 = vmatmul.mubr.f32.gmra.mrb[0].mxu0 %v3535
        %v3835 = vpop.f32.mrb[0].mxu0
        %v3836 = vadd.f32 0.0, %v3835
        %v3837 = vpop.f32.mrb[0].mxu0
        %3838 = vmatprep.mubr.f32.mxu0 0.0
        %3839 = vmatmul.mubr.f32.gmra.mrb[0].mxu0 %v3536
        %v3840 = vpop.f32.mrb[0].mxu0
        %v3841 = vadd.f32 0.0, %v3840
        %v3842 = vpop.f32.mrb[0].mxu0
        %3843 = vmatprep.mubr.f32.mxu0 0.0
        %3844 = vmatmul.mubr.f32.gmra.mrb[0].mxu0 %v3537
        %v3845 = vpop.f32.mrb[0].mxu0
        %v3846 = vadd.f32 0.0, %v3845
        %v3847 = vpop.f32.mrb[0].mxu0
        %3848 = vmatprep.mubr.f32.mxu0 0.0
        %3849 = vmatmul.mubr.f32.gmra.mrb[0].mxu0 %v3538
        %v3850 = vpop.f32.mrb[0].mxu0
        %v3851 = vadd.f32 0.0, %v3850
        %v3852 = vpop.f32.mrb[0].mxu0
        %3853 = vmatprep.mubr.f32.mxu0 0.0
        %3854 = vmatmul.mubr.f32.gmra.mrb[0].mxu0 %v3539
        %v3855 = vpop.f32.mrb[0].mxu0
        %v3856 = vadd.f32 0.0, %v3855
        %v3857 = vpop.f32.mrb[0].mxu0
        %3858 = vmatprep.mubr.f32.mxu0 0.0
        %3859 = vmatmul.mubr.f32.gmra.mrb[0].mxu0 %v3540
        %v3860 = vpop.f32.mrb[0].mxu0
        %v3861 = vadd.f32 0.0, %v3860
        %v3862 = vpop.f32.mrb[0].mxu0
        %3863 = vdwg.mxu0
        %3864 = vmatprep.subr.mxu0 0.0
        %3865 = vmatpush1.msra.mxu0 %v3786
        %3866 = vmatprep.subr.mxu0 0.0
        %3867 = vmatpush1.msra.mxu0 %v3791
        %3868 = vmatprep.subr.mxu0 0.0
        %3869 = vmatpush1.msra.mxu0 %v3796
        %3870 = vmatprep.subr.mxu0 0.0
        %3871 = vmatpush1.msra.mxu0 %v3801
        %3872 = vmatprep.subr.mxu0 0.0
        %3873 = vmatpush1.msra.mxu0 %v3806
        %3874 = vmatprep.subr.mxu0 0.0
        %3875 = vmatpush1.msra.mxu0 %v3811
        %3876 = vmatprep.subr.mxu0 0.0
        %3877 = vmatpush1.msra.mxu0 %v3816
        %3878 = vmatprep.subr.mxu0 0.0
        %3879 = vmatpush1.msra.mxu0 %v3821
        %3880 = vmatprep.subr.mxu0 0.0
        %3881 = vmatpush1.msra.mxu0 %v3826
        %3882 = vmatprep.subr.mxu0 0.0
        %3883 = vmatpush1.msra.mxu0 %v3831
        %3884 = vmatprep.subr.mxu0 0.0
        %3885 = vmatpush1.msra.mxu0 %v3836
        %3886 = vmatprep.subr.mxu0 0.0
        %3887 = vmatpush1.msra.mxu0 %v3841
        %3888 = vmatprep.subr.mxu0 0.0
        %3889 = vmatpush1.msra.mxu0 %v3846
        %3890 = vmatprep.subr.mxu0 0.0
        %3891 = vmatpush1.msra.mxu0 %v3851
        %3892 = vmatprep.subr.mxu0 0.0
        %3893 = vmatpush1.msra.mxu0 %v3856
        %3894 = vmatprep.subr.mxu0 0.0
        %3895 = vmatpush1.msra.mxu0 %v3861
        %3896 = vmatprep.subr.mxu0 0.0
        %3897 = vmatpush1.msra.mxu0 0.0
        %3898 = vmatprep.subr.mxu0 0.0
        %3899 = vmatpush1.msra.mxu0 0.0
        %3900 = vmatprep.subr.mxu0 0.0
        %3901 = vmatpush1.msra.mxu0 0.0
        %3902 = vmatprep.subr.mxu0 0.0
        %3903 = vmatpush1.msra.mxu0 0.0
        %3904 = vmatprep.subr.mxu0 0.0
        %3905 = vmatpush1.msra.mxu0 0.0
        %3906 = vmatprep.subr.mxu0 0.0
        %3907 = vmatpush1.msra.mxu0 0.0
        %3908 = vmatprep.subr.mxu0 0.0
        %3909 = vmatpush1.msra.mxu0 0.0
        %3910 = vmatprep.subr.mxu0 0.0
        %3911 = vmatpush1.msra.mxu0 0.0
        %3912 = vmatprep.subr.mxu0 0.0
        %3913 = vmatpush1.msra.mxu0 0.0
        %3914 = vmatprep.subr.mxu0 0.0
        %3915 = vmatpush1.msra.mxu0 0.0
        %3916 = vmatprep.subr.mxu0 0.0
        %3917 = vmatpush1.msra.mxu0 0.0
        %3918 = vmatprep.subr.mxu0 0.0
        %3919 = vmatpush1.msra.mxu0 0.0
        %3920 = vmatprep.subr.mxu0 0.0
        %3921 = vmatpush1.msra.mxu0 0.0
        %3922 = vmatprep.subr.mxu0 0.0
        %3923 = vmatpush1.msra.mxu0 0.0
        %3924 = vmatprep.subr.mxu0 0.0
        %3925 = vmatpush1.msra.mxu0 0.0
        %3926 = vmatprep.subr.mxu0 0.0
        %3927 = vmatpush1.msra.mxu0 0.0
        %3928 = vmatprep.mubr.f32.mxu0 0.0
        %3929 = vmatmul.mubr.f32.gmra.mrb[0].mxu0 %v3703
        %v3930 = vpop.f32.mrb[0].mxu0
        %v3931 = vadd.f32 0.0, %v3930
        %v3932 = vpop.f32.mrb[0].mxu0
        %3933 = vmatprep.mubr.f32.mxu0 0.0
        %3934 = vmatmul.mubr.f32.gmra.mrb[0].mxu0 %v3704
        %v3935 = vpop.f32.mrb[0].mxu0
        %v3936 = vadd.f32 0.0, %v3935
        %v3937 = vpop.f32.mrb[0].mxu0
        %3938 = vmatprep.mubr.f32.mxu0 0.0
        %3939 = vmatmul.mubr.f32.gmra.mrb[0].mxu0 %v3705
        %v3940 = vpop.f32.mrb[0].mxu0
        %v3941 = vadd.f32 0.0, %v3940
        %v3942 = vpop.f32.mrb[0].mxu0
        %3943 = vmatprep.mubr.f32.mxu0 0.0
        %3944 = vmatmul.mubr.f32.gmra.mrb[0].mxu0 %v3706
        %v3945 = vpop.f32.mrb[0].mxu0
        %v3946 = vadd.f32 0.0, %v3945
        %v3947 = vpop.f32.mrb[0].mxu0
        %3948 = vmatprep.mubr.f32.mxu0 0.0
        %3949 = vmatmul.mubr.f32.gmra.mrb[0].mxu0 %v3707
        %v3950 = vpop.f32.mrb[0].mxu0
        %v3951 = vadd.f32 0.0, %v3950
        %v3952 = vpop.f32.mrb[0].mxu0
        %3953 = vmatprep.mubr.f32.mxu0 0.0
        %3954 = vmatmul.mubr.f32.gmra.mrb[0].mxu0 %v3708
        %v3955 = vpop.f32.mrb[0].mxu0
        %v3956 = vadd.f32 0.0, %v3955
        %v3957 = vpop.f32.mrb[0].mxu0
        %3958 = vmatprep.mubr.f32.mxu0 0.0
        %3959 = vmatmul.mubr.f32.gmra.mrb[0].mxu0 %v3709
        %v3960 = vpop.f32.mrb[0].mxu0
        %v3961 = vadd.f32 0.0, %v3960
        %v3962 = vpop.f32.mrb[0].mxu0
        %3963 = vmatprep.mubr.f32.mxu0 0.0
        %3964 = vmatmul.mubr.f32.gmra.mrb[0].mxu0 %v3710
        %v3965 = vpop.f32.mrb[0].mxu0
        %v3966 = vadd.f32 0.0, %v3965
        %v3967 = vpop.f32.mrb[0].mxu0
        %3968 = vmatprep.mubr.f32.mxu0 0.0
        %3969 = vmatmul.mubr.f32.gmra.mrb[0].mxu0 %v3711
        %v3970 = vpop.f32.mrb[0].mxu0
        %v3971 = vadd.f32 0.0, %v3970
        %v3972 = vpop.f32.mrb[0].mxu0
        %3973 = vmatprep.mubr.f32.mxu0 0.0
        %3974 = vmatmul.mubr.f32.gmra.mrb[0].mxu0 %v3712
        %v3975 = vpop.f32.mrb[0].mxu0
        %v3976 = vadd.f32 0.0, %v3975
        %v3977 = vpop.f32.mrb[0].mxu0
        %3978 = vmatprep.mubr.f32.mxu0 0.0
        %3979 = vmatmul.mubr.f32.gmra.mrb[0].mxu0 %v3713
        %v3980 = vpop.f32.mrb[0].mxu0
        %v3981 = vadd.f32 0.0, %v3980
        %v3982 = vpop.f32.mrb[0].mxu0
        %3983 = vmatprep.mubr.f32.mxu0 0.0
        %3984 = vmatmul.mubr.f32.gmra.mrb[0].mxu0 %v3714
        %v3985 = vpop.f32.mrb[0].mxu0
        %v3986 = vadd.f32 0.0, %v3985
        %v3987 = vpop.f32.mrb[0].mxu0
        %3988 = vmatprep.mubr.f32.mxu0 0.0
        %3989 = vmatmul.mubr.f32.gmra.mrb[0].mxu0 %v3715
        %v3990 = vpop.f32.mrb[0].mxu0
        %v3991 = vadd.f32 0.0, %v3990
        %v3992 = vpop.f32.mrb[0].mxu0
        %3993 = vmatprep.mubr.f32.mxu0 0.0
        %3994 = vmatmul.mubr.f32.gmra.mrb[0].mxu0 %v3716
        %v3995 = vpop.f32.mrb[0].mxu0
        %v3996 = vadd.f32 0.0, %v3995
        %v3997 = vpop.f32.mrb[0].mxu0
        %3998 = vmatprep.mubr.f32.mxu0 0.0
        %3999 = vmatmul.mubr.f32.gmra.mrb[0].mxu0 %v3717
        %v4000 = vpop.f32.mrb[0].mxu0
        %v4001 = vadd.f32 0.0, %v4000
        %v4002 = vpop.f32.mrb[0].mxu0
        %4003 = vmatprep.mubr.f32.mxu0 0.0
        %4004 = vmatmul.mubr.f32.gmra.mrb[0].mxu0 %v3718
        %v4005 = vpop.f32.mrb[0].mxu0
        %v4006 = vadd.f32 0.0, %v4005
        %v4007 = vpop.f32.mrb[0].mxu0
        %4008 = vdwg.mxu0
        %4009 = vmatprep.subr.mxu0 0.0
        %4010 = vmatpush1.msra.mxu0 %v3624
        %4011 = vmatprep.subr.mxu0 0.0
        %4012 = vmatpush1.msra.mxu0 %v3629
        %4013 = vmatprep.subr.mxu0 0.0
        %4014 = vmatpush1.msra.mxu0 %v3634
        %4015 = vmatprep.subr.mxu0 0.0
        %4016 = vmatpush1.msra.mxu0 %v3639
        %4017 = vmatprep.subr.mxu0 0.0
        %4018 = vmatpush1.msra.mxu0 %v3644
        %4019 = vmatprep.subr.mxu0 0.0
        %4020 = vmatpush1.msra.mxu0 %v3649
        %4021 = vmatprep.subr.mxu0 0.0
        %4022 = vmatpush1.msra.mxu0 %v3654
        %4023 = vmatprep.subr.mxu0 0.0
        %4024 = vmatpush1.msra.mxu0 %v3659
        %4025 = vmatprep.subr.mxu0 0.0
        %4026 = vmatpush1.msra.mxu0 %v3664
        %4027 = vmatprep.subr.mxu0 0.0
        %4028 = vmatpush1.msra.mxu0 %v3669
        %4029 = vmatprep.subr.mxu0 0.0
        %4030 = vmatpush1.msra.mxu0 %v3674
        %4031 = vmatprep.subr.mxu0 0.0
        %4032 = vmatpush1.msra.mxu0 %v3679
        %4033 = vmatprep.subr.mxu0 0.0
        %4034 = vmatpush1.msra.mxu0 %v3684
        %4035 = vmatprep.subr.mxu0 0.0
        %4036 = vmatpush1.msra.mxu0 %v3689
        %4037 = vmatprep.subr.mxu0 0.0
        %4038 = vmatpush1.msra.mxu0 %v3694
        %4039 = vmatprep.subr.mxu0 0.0
        %4040 = vmatpush1.msra.mxu0 %v3699
        %4041 = vmatprep.subr.mxu0 0.0
        %4042 = vmatpush1.msra.mxu0 0.0
        %4043 = vmatprep.subr.mxu0 0.0
        %4044 = vmatpush1.msra.mxu0 0.0
        %4045 = vmatprep.subr.mxu0 0.0
        %4046 = vmatpush1.msra.mxu0 0.0
        %4047 = vmatprep.subr.mxu0 0.0
        %4048 = vmatpush1.msra.mxu0 0.0
        %4049 = vmatprep.subr.mxu0 0.0
        %4050 = vmatpush1.msra.mxu0 0.0
        %4051 = vmatprep.subr.mxu0 0.0
        %4052 = vmatpush1.msra.mxu0 0.0
        %4053 = vmatprep.subr.mxu0 0.0
        %4054 = vmatpush1.msra.mxu0 0.0
        %4055 = vmatprep.subr.mxu0 0.0
        %4056 = vmatpush1.msra.mxu0 0.0
        %4057 = vmatprep.subr.mxu0 0.0
        %4058 = vmatpush1.msra.mxu0 0.0
        %4059 = vmatprep.subr.mxu0 0.0
        %4060 = vmatpush1.msra.mxu0 0.0
        %4061 = vmatprep.subr.mxu0 0.0
        %4062 = vmatpush1.msra.mxu0 0.0
        %4063 = vmatprep.subr.mxu0 0.0
        %4064 = vmatpush1.msra.mxu0 0.0
        %4065 = vmatprep.subr.mxu0 0.0
        %4066 = vmatpush1.msra.mxu0 0.0
        %4067 = vmatprep.subr.mxu0 0.0
        %4068 = vmatpush1.msra.mxu0 0.0
        %4069 = vmatprep.subr.mxu0 0.0
        %4070 = vmatpush1.msra.mxu0 0.0
        %4071 = vmatprep.subr.mxu0 0.0
        %4072 = vmatpush1.msra.mxu0 0.0
        %4073 = vmatprep.mubr.f32.mxu0 0.0
        %4074 = vmatmul.mubr.f32.gmra.mrb[0].mxu0 %v3541
        %v4075 = vpop.f32.mrb[0].mxu0
        %v4076 = vadd.f32 %v3931, %v4075
        %v4077 = vpop.f32.mrb[0].mxu0
        %4078 = vmatprep.mubr.f32.mxu0 0.0
        %4079 = vmatmul.mubr.f32.gmra.mrb[0].mxu0 %v3542
        %v4080 = vpop.f32.mrb[0].mxu0
        %v4081 = vadd.f32 %v3936, %v4080
        %v4082 = vpop.f32.mrb[0].mxu0
        %4083 = vmatprep.mubr.f32.mxu0 0.0
        %4084 = vmatmul.mubr.f32.gmra.mrb[0].mxu0 %v3543
        %v4085 = vpop.f32.mrb[0].mxu0
        %v4086 = vadd.f32 %v3941, %v4085
        %v4087 = vpop.f32.mrb[0].mxu0
        %4088 = vmatprep.mubr.f32.mxu0 0.0
        %4089 = vmatmul.mubr.f32.gmra.mrb[0].mxu0 %v3544
        %v4090 = vpop.f32.mrb[0].mxu0
        %v4091 = vadd.f32 %v3946, %v4090
        %v4092 = vpop.f32.mrb[0].mxu0
        %4093 = vmatprep.mubr.f32.mxu0 0.0
        %4094 = vmatmul.mubr.f32.gmra.mrb[0].mxu0 %v3545
        %v4095 = vpop.f32.mrb[0].mxu0
        %v4096 = vadd.f32 %v3951, %v4095
        %v4097 = vpop.f32.mrb[0].mxu0
        %4098 = vmatprep.mubr.f32.mxu0 0.0
        %4099 = vmatmul.mubr.f32.gmra.mrb[0].mxu0 %v3546
        %v4100 = vpop.f32.mrb[0].mxu0
        %v4101 = vadd.f32 %v3956, %v4100
        %v4102 = vpop.f32.mrb[0].mxu0
        %4103 = vmatprep.mubr.f32.mxu0 0.0
        %4104 = vmatmul.mubr.f32.gmra.mrb[0].mxu0 %v3547
        %v4105 = vpop.f32.mrb[0].mxu0
        %v4106 = vadd.f32 %v3961, %v4105
        %v4107 = vpop.f32.mrb[0].mxu0
        %4108 = vmatprep.mubr.f32.mxu0 0.0
        %4109 = vmatmul.mubr.f32.gmra.mrb[0].mxu0 %v3548
        %v4110 = vpop.f32.mrb[0].mxu0
        %v4111 = vadd.f32 %v3966, %v4110
        %v4112 = vpop.f32.mrb[0].mxu0
        %4113 = vmatprep.mubr.f32.mxu0 0.0
        %4114 = vmatmul.mubr.f32.gmra.mrb[0].mxu0 %v3549
        %v4115 = vpop.f32.mrb[0].mxu0
        %v4116 = vadd.f32 %v3971, %v4115
        %v4117 = vpop.f32.mrb[0].mxu0
        %4118 = vmatprep.mubr.f32.mxu0 0.0
        %4119 = vmatmul.mubr.f32.gmra.mrb[0].mxu0 %v3550
        %v4120 = vpop.f32.mrb[0].mxu0
        %v4121 = vadd.f32 %v3976, %v4120
        %v4122 = vpop.f32.mrb[0].mxu0
        %4123 = vmatprep.mubr.f32.mxu0 0.0
        %4124 = vmatmul.mubr.f32.gmra.mrb[0].mxu0 %v3551
        %v4125 = vpop.f32.mrb[0].mxu0
        %v4126 = vadd.f32 %v3981, %v4125
        %v4127 = vpop.f32.mrb[0].mxu0
        %4128 = vmatprep.mubr.f32.mxu0 0.0
        %4129 = vmatmul.mubr.f32.gmra.mrb[0].mxu0 %v3552
        %v4130 = vpop.f32.mrb[0].mxu0
        %v4131 = vadd.f32 %v3986, %v4130
        %v4132 = vpop.f32.mrb[0].mxu0
        %4133 = vmatprep.mubr.f32.mxu0 0.0
        %4134 = vmatmul.mubr.f32.gmra.mrb[0].mxu0 %v3553
        %v4135 = vpop.f32.mrb[0].mxu0
        %v4136 = vadd.f32 %v3991, %v4135
        %v4137 = vpop.f32.mrb[0].mxu0
        %4138 = vmatprep.mubr.f32.mxu0 0.0
        %4139 = vmatmul.mubr.f32.gmra.mrb[0].mxu0 %v3554
        %v4140 = vpop.f32.mrb[0].mxu0
        %v4141 = vadd.f32 %v3996, %v4140
        %v4142 = vpop.f32.mrb[0].mxu0
        %4143 = vmatprep.mubr.f32.mxu0 0.0
        %4144 = vmatmul.mubr.f32.gmra.mrb[0].mxu0 %v3555
        %v4145 = vpop.f32.mrb[0].mxu0
        %v4146 = vadd.f32 %v4001, %v4145
        %v4147 = vpop.f32.mrb[0].mxu0
        %4148 = vmatprep.mubr.f32.mxu0 0.0
        %4149 = vmatmul.mubr.f32.gmra.mrb[0].mxu0 %v3556
        %v4150 = vpop.f32.mrb[0].mxu0
        %v4151 = vadd.f32 %v4006, %v4150
        %v4152 = vpop.f32.mrb[0].mxu0
        %4153 = vdwg.mxu0
        %s4154 = scalar_lea.vmem %s15, 256
        %v4155 = vld [vmem:[%s4154] sm:$0xff]
        %v4156 = vld [vmem:[%s4154 + $0x8] sm:$0xff]
        %v4157 = vld [vmem:[%s4154 + $0x10] sm:$0xff]
        %v4158 = vld [vmem:[%s4154 + $0x18] sm:$0xff]
        %v4159 = vld [vmem:[%s4154 + $0x20] sm:$0xff]
        %v4160 = vld [vmem:[%s4154 + $0x28] sm:$0xff]
        %v4161 = vld [vmem:[%s4154 + $0x30] sm:$0xff]
        %v4162 = vld [vmem:[%s4154 + $0x38] sm:$0xff]
        %v4163 = vld [vmem:[%s4154 + $0x40] sm:$0xff]
        %v4164 = vld [vmem:[%s4154 + $0x48] sm:$0xff]
        %v4165 = vld [vmem:[%s4154 + $0x50] sm:$0xff]
        %v4166 = vld [vmem:[%s4154 + $0x58] sm:$0xff]
        %v4167 = vld [vmem:[%s4154 + $0x60] sm:$0xff]
        %v4168 = vld [vmem:[%s4154 + $0x68] sm:$0xff]
        %v4169 = vld [vmem:[%s4154 + $0x70] sm:$0xff]
        %v4170 = vld [vmem:[%s4154 + $0x78] sm:$0xff]
        %4171 = vmatprep.subr.mxu0 0.0
        %4172 = vmatpush1.msra.mxu0 %v3525
        %4173 = vmatprep.subr.mxu0 0.0
        %4174 = vmatpush1.msra.mxu0 %v3526
        %4175 = vmatprep.subr.mxu0 0.0
        %4176 = vmatpush1.msra.mxu0 %v3527
        %4177 = vmatprep.subr.mxu0 0.0
        %4178 = vmatpush1.msra.mxu0 %v3528
        %4179 = vmatprep.subr.mxu0 0.0
        %4180 = vmatpush1.msra.mxu0 %v3529
        %4181 = vmatprep.subr.mxu0 0.0
        %4182 = vmatpush1.msra.mxu0 %v3530
        %4183 = vmatprep.subr.mxu0 0.0
        %4184 = vmatpush1.msra.mxu0 %v3531
        %4185 = vmatprep.subr.mxu0 0.0
        %4186 = vmatpush1.msra.mxu0 %v3532
        %4187 = vmatprep.subr.mxu0 0.0
        %4188 = vmatpush1.msra.mxu0 %v3533
        %4189 = vmatprep.subr.mxu0 0.0
        %4190 = vmatpush1.msra.mxu0 %v3534
        %4191 = vmatprep.subr.mxu0 0.0
        %4192 = vmatpush1.msra.mxu0 %v3535
        %4193 = vmatprep.subr.mxu0 0.0
        %4194 = vmatpush1.msra.mxu0 %v3536
        %4195 = vmatprep.subr.mxu0 0.0
        %4196 = vmatpush1.msra.mxu0 %v3537
        %4197 = vmatprep.subr.mxu0 0.0
        %4198 = vmatpush1.msra.mxu0 %v3538
        %4199 = vmatprep.subr.mxu0 0.0
        %4200 = vmatpush1.msra.mxu0 %v3539
        %4201 = vmatprep.subr.mxu0 0.0
        %4202 = vmatpush1.msra.mxu0 %v3540
        %4203 = vmatprep.subr.mxu0 0.0
        %4204 = vmatpush1.msra.mxu0 0.0
        %4205 = vmatprep.subr.mxu0 0.0
        %4206 = vmatpush1.msra.mxu0 0.0
        %4207 = vmatprep.subr.mxu0 0.0
        %4208 = vmatpush1.msra.mxu0 0.0
        %4209 = vmatprep.subr.mxu0 0.0
        %4210 = vmatpush1.msra.mxu0 0.0
        %4211 = vmatprep.subr.mxu0 0.0
        %4212 = vmatpush1.msra.mxu0 0.0
        %4213 = vmatprep.subr.mxu0 0.0
        %4214 = vmatpush1.msra.mxu0 0.0
        %4215 = vmatprep.subr.mxu0 0.0
        %4216 = vmatpush1.msra.mxu0 0.0
        %4217 = vmatprep.subr.mxu0 0.0
        %4218 = vmatpush1.msra.mxu0 0.0
        %4219 = vmatprep.subr.mxu0 0.0
        %4220 = vmatpush1.msra.mxu0 0.0
        %4221 = vmatprep.subr.mxu0 0.0
        %4222 = vmatpush1.msra.mxu0 0.0
        %4223 = vmatprep.subr.mxu0 0.0
        %4224 = vmatpush1.msra.mxu0 0.0
        %4225 = vmatprep.subr.mxu0 0.0
        %4226 = vmatpush1.msra.mxu0 0.0
        %4227 = vmatprep.subr.mxu0 0.0
        %4228 = vmatpush1.msra.mxu0 0.0
        %4229 = vmatprep.subr.mxu0 0.0
        %4230 = vmatpush1.msra.mxu0 0.0
        %4231 = vmatprep.subr.mxu0 0.0
        %4232 = vmatpush1.msra.mxu0 0.0
        %4233 = vmatprep.subr.mxu0 0.0
        %4234 = vmatpush1.msra.mxu0 0.0
        %4235 = vmatprep.mubr.f32.mxu0 0.0
        %4236 = vmatmul.mubr.f32.gmra.mrb[0].mxu0 %v4155
        %v4237 = vpop.f32.mrb[0].mxu0
        %v4238 = vadd.f32 0.0, %v4237
        %v4239 = vpop.f32.mrb[0].mxu0
        %4240 = vmatprep.mubr.f32.mxu0 0.0
        %4241 = vmatmul.mubr.f32.gmra.mrb[0].mxu0 %v4156
        %v4242 = vpop.f32.mrb[0].mxu0
        %v4243 = vadd.f32 0.0, %v4242
        %v4244 = vpop.f32.mrb[0].mxu0
        %4245 = vmatprep.mubr.f32.mxu0 0.0
        %4246 = vmatmul.mubr.f32.gmra.mrb[0].mxu0 %v4157
        %v4247 = vpop.f32.mrb[0].mxu0
        %v4248 = vadd.f32 0.0, %v4247
        %v4249 = vpop.f32.mrb[0].mxu0
        %4250 = vmatprep.mubr.f32.mxu0 0.0
        %4251 = vmatmul.mubr.f32.gmra.mrb[0].mxu0 %v4158
        %v4252 = vpop.f32.mrb[0].mxu0
        %v4253 = vadd.f32 0.0, %v4252
        %v4254 = vpop.f32.mrb[0].mxu0
        %4255 = vmatprep.mubr.f32.mxu0 0.0
        %4256 = vmatmul.mubr.f32.gmra.mrb[0].mxu0 %v4159
        %v4257 = vpop.f32.mrb[0].mxu0
        %v4258 = vadd.f32 0.0, %v4257
        %v4259 = vpop.f32.mrb[0].mxu0
        %4260 = vmatprep.mubr.f32.mxu0 0.0
        %4261 = vmatmul.mubr.f32.gmra.mrb[0].mxu0 %v4160
        %v4262 = vpop.f32.mrb[0].mxu0
        %v4263 = vadd.f32 0.0, %v4262
        %v4264 = vpop.f32.mrb[0].mxu0
        %4265 = vmatprep.mubr.f32.mxu0 0.0
        %4266 = vmatmul.mubr.f32.gmra.mrb[0].mxu0 %v4161
        %v4267 = vpop.f32.mrb[0].mxu0
        %v4268 = vadd.f32 0.0, %v4267
        %v4269 = vpop.f32.mrb[0].mxu0
        %4270 = vmatprep.mubr.f32.mxu0 0.0
        %4271 = vmatmul.mubr.f32.gmra.mrb[0].mxu0 %v4162
        %v4272 = vpop.f32.mrb[0].mxu0
        %v4273 = vadd.f32 0.0, %v4272
        %v4274 = vpop.f32.mrb[0].mxu0
        %4275 = vmatprep.mubr.f32.mxu0 0.0
        %4276 = vmatmul.mubr.f32.gmra.mrb[0].mxu0 %v4163
        %v4277 = vpop.f32.mrb[0].mxu0
        %v4278 = vadd.f32 0.0, %v4277
        %v4279 = vpop.f32.mrb[0].mxu0
        %4280 = vmatprep.mubr.f32.mxu0 0.0
        %4281 = vmatmul.mubr.f32.gmra.mrb[0].mxu0 %v4164
        %v4282 = vpop.f32.mrb[0].mxu0
        %v4283 = vadd.f32 0.0, %v4282
        %v4284 = vpop.f32.mrb[0].mxu0
        %4285 = vmatprep.mubr.f32.mxu0 0.0
        %4286 = vmatmul.mubr.f32.gmra.mrb[0].mxu0 %v4165
        %v4287 = vpop.f32.mrb[0].mxu0
        %v4288 = vadd.f32 0.0, %v4287
        %v4289 = vpop.f32.mrb[0].mxu0
        %4290 = vmatprep.mubr.f32.mxu0 0.0
        %4291 = vmatmul.mubr.f32.gmra.mrb[0].mxu0 %v4166
        %v4292 = vpop.f32.mrb[0].mxu0
        %v4293 = vadd.f32 0.0, %v4292
        %v4294 = vpop.f32.mrb[0].mxu0
        %4295 = vmatprep.mubr.f32.mxu0 0.0
        %4296 = vmatmul.mubr.f32.gmra.mrb[0].mxu0 %v4167
        %v4297 = vpop.f32.mrb[0].mxu0
        %v4298 = vadd.f32 0.0, %v4297
        %v4299 = vpop.f32.mrb[0].mxu0
        %4300 = vmatprep.mubr.f32.mxu0 0.0
        %4301 = vmatmul.mubr.f32.gmra.mrb[0].mxu0 %v4168
        %v4302 = vpop.f32.mrb[0].mxu0
        %v4303 = vadd.f32 0.0, %v4302
        %v4304 = vpop.f32.mrb[0].mxu0
        %4305 = vmatprep.mubr.f32.mxu0 0.0
        %4306 = vmatmul.mubr.f32.gmra.mrb[0].mxu0 %v4169
        %v4307 = vpop.f32.mrb[0].mxu0
        %v4308 = vadd.f32 0.0, %v4307
        %v4309 = vpop.f32.mrb[0].mxu0
        %4310 = vmatprep.mubr.f32.mxu0 0.0
        %4311 = vmatmul.mubr.f32.gmra.mrb[0].mxu0 %v4170
        %v4312 = vpop.f32.mrb[0].mxu0
        %v4313 = vadd.f32 0.0, %v4312
        %v4314 = vpop.f32.mrb[0].mxu0
        %4315 = vdwg.mxu0
        %v4316 = vadd.f32 %v4076, %v4238
        %v4317 = vadd.f32 %v4081, %v4243
        %v4318 = vadd.f32 %v4086, %v4248
        %v4319 = vadd.f32 %v4091, %v4253
        %v4320 = vadd.f32 %v4096, %v4258
        %v4321 = vadd.f32 %v4101, %v4263
        %v4322 = vadd.f32 %v4106, %v4268
        %v4323 = vadd.f32 %v4111, %v4273
        %v4324 = vadd.f32 %v4116, %v4278
        %v4325 = vadd.f32 %v4121, %v4283
        %v4326 = vadd.f32 %v4126, %v4288
        %v4327 = vadd.f32 %v4131, %v4293
        %v4328 = vadd.f32 %v4136, %v4298
        %v4329 = vadd.f32 %v4141, %v4303
        %v4330 = vadd.f32 %v4146, %v4308
        %v4331 = vadd.f32 %v4151, %v4313
        %v4332 = vld [vmem:[%s16] sm:$0xff]
        %v4333 = vld [vmem:[%s16 + $0x8] sm:$0xff]
        %v4334 = vld [vmem:[%s16 + $0x10] sm:$0xff]
        %v4335 = vld [vmem:[%s16 + $0x18] sm:$0xff]
        %v4336 = vld [vmem:[%s16 + $0x20] sm:$0xff]
        %v4337 = vld [vmem:[%s16 + $0x28] sm:$0xff]
        %v4338 = vld [vmem:[%s16 + $0x30] sm:$0xff]
        %v4339 = vld [vmem:[%s16 + $0x38] sm:$0xff]
        %v4340 = vld [vmem:[%s16 + $0x40] sm:$0xff]
        %v4341 = vld [vmem:[%s16 + $0x48] sm:$0xff]
        %v4342 = vld [vmem:[%s16 + $0x50] sm:$0xff]
        %v4343 = vld [vmem:[%s16 + $0x58] sm:$0xff]
        %v4344 = vld [vmem:[%s16 + $0x60] sm:$0xff]
        %v4345 = vld [vmem:[%s16 + $0x68] sm:$0xff]
        %v4346 = vld [vmem:[%s16 + $0x70] sm:$0xff]
        %v4347 = vld [vmem:[%s16 + $0x78] sm:$0xff]
        %4349 = vset.pattern.permute.xlu0 0
        %4350 = vperm.xlu0 %4349, %v4332
        %v4351 = vpop.permute.xlu0 %4350
        %4354 = vset.pattern.permute.xlu0 0
        %4355 = vperm.xlu0 %4354, %v4333
        %v4356 = vpop.permute.xlu0 %4355
        %4359 = vset.pattern.permute.xlu0 0
        %4360 = vperm.xlu0 %4359, %v4334
        %v4361 = vpop.permute.xlu0 %4360
        %4364 = vset.pattern.permute.xlu0 0
        %4365 = vperm.xlu0 %4364, %v4335
        %v4366 = vpop.permute.xlu0 %4365
        %4369 = vset.pattern.permute.xlu0 0
        %4370 = vperm.xlu0 %4369, %v4336
        %v4371 = vpop.permute.xlu0 %4370
        %4374 = vset.pattern.permute.xlu0 0
        %4375 = vperm.xlu0 %4374, %v4337
        %v4376 = vpop.permute.xlu0 %4375
        %4379 = vset.pattern.permute.xlu0 0
        %4380 = vperm.xlu0 %4379, %v4338
        %v4381 = vpop.permute.xlu0 %4380
        %4384 = vset.pattern.permute.xlu0 0
        %4385 = vperm.xlu0 %4384, %v4339
        %v4386 = vpop.permute.xlu0 %4385
        %4389 = vset.pattern.permute.xlu0 0
        %4390 = vperm.xlu0 %4389, %v4340
        %v4391 = vpop.permute.xlu0 %4390
        %4394 = vset.pattern.permute.xlu0 0
        %4395 = vperm.xlu0 %4394, %v4341
        %v4396 = vpop.permute.xlu0 %4395
        %4399 = vset.pattern.permute.xlu0 0
        %4400 = vperm.xlu0 %4399, %v4342
        %v4401 = vpop.permute.xlu0 %4400
        %4404 = vset.pattern.permute.xlu0 0
        %4405 = vperm.xlu0 %4404, %v4343
        %v4406 = vpop.permute.xlu0 %4405
        %4409 = vset.pattern.permute.xlu0 0
        %4410 = vperm.xlu0 %4409, %v4344
        %v4411 = vpop.permute.xlu0 %4410
        %4414 = vset.pattern.permute.xlu0 0
        %4415 = vperm.xlu0 %4414, %v4345
        %v4416 = vpop.permute.xlu0 %4415
        %4419 = vset.pattern.permute.xlu0 0
        %4420 = vperm.xlu0 %4419, %v4346
        %v4421 = vpop.permute.xlu0 %4420
        %4424 = vset.pattern.permute.xlu0 0
        %4425 = vperm.xlu0 %4424, %v4347
        %v4426 = vpop.permute.xlu0 %4425
        %v4428 = vadd.f32 %v4316, %v4351
        %v4429 = vadd.f32 %v4317, %v4356
        %v4430 = vadd.f32 %v4318, %v4361
        %v4431 = vadd.f32 %v4319, %v4366
        %v4432 = vadd.f32 %v4320, %v4371
        %v4433 = vadd.f32 %v4321, %v4376
        %v4434 = vadd.f32 %v4322, %v4381
        %v4435 = vadd.f32 %v4323, %v4386
        %v4436 = vadd.f32 %v4324, %v4391
        %v4437 = vadd.f32 %v4325, %v4396
        %v4438 = vadd.f32 %v4326, %v4401
        %v4439 = vadd.f32 %v4327, %v4406
        %v4440 = vadd.f32 %v4328, %v4411
        %v4441 = vadd.f32 %v4329, %v4416
        %v4442 = vadd.f32 %v4330, %v4421
        %v4443 = vadd.f32 %v4331, %v4426
        %v4444 = vmax.f32 %v4428, 0.0
        %v4445 = vmax.f32 %v4429, 0.0
        %v4446 = vmax.f32 %v4430, 0.0
        %v4447 = vmax.f32 %v4431, 0.0
        %v4448 = vmax.f32 %v4432, 0.0
        %v4449 = vmax.f32 %v4433, 0.0
        %v4450 = vmax.f32 %v4434, 0.0
        %v4451 = vmax.f32 %v4435, 0.0
        %v4452 = vmax.f32 %v4436, 0.0
        %v4453 = vmax.f32 %v4437, 0.0
        %v4454 = vmax.f32 %v4438, 0.0
        %v4455 = vmax.f32 %v4439, 0.0
        %v4456 = vmax.f32 %v4440, 0.0
        %v4457 = vmax.f32 %v4441, 0.0
        %v4458 = vmax.f32 %v4442, 0.0
        %v4459 = vmax.f32 %v4443, 0.0
        %v4460 = vld [vmem:[%s17] sm:$0xff]
        %v4461 = vld [vmem:[%s17 + $0x8] sm:$0xff]
        %v4462 = vld [vmem:[%s17 + $0x10] sm:$0xff]
        %v4463 = vld [vmem:[%s17 + $0x18] sm:$0xff]
        %v4464 = vld [vmem:[%s17 + $0x20] sm:$0xff]
        %v4465 = vld [vmem:[%s17 + $0x28] sm:$0xff]
        %v4466 = vld [vmem:[%s17 + $0x30] sm:$0xff]
        %v4467 = vld [vmem:[%s17 + $0x38] sm:$0xff]
        %v4468 = vld [vmem:[%s17 + $0x40] sm:$0xff]
        %v4469 = vld [vmem:[%s17 + $0x48] sm:$0xff]
        %v4470 = vld [vmem:[%s17 + $0x50] sm:$0xff]
        %v4471 = vld [vmem:[%s17 + $0x58] sm:$0xff]
        %v4472 = vld [vmem:[%s17 + $0x60] sm:$0xff]
        %v4473 = vld [vmem:[%s17 + $0x68] sm:$0xff]
        %v4474 = vld [vmem:[%s17 + $0x70] sm:$0xff]
        %v4475 = vld [vmem:[%s17 + $0x78] sm:$0xff]
        %v4476 = vld [vmem:[%s18] sm:$0xff]
        %v4477 = vld [vmem:[%s18 + $0x8] sm:$0xff]
        %v4478 = vld [vmem:[%s18 + $0x10] sm:$0xff]
        %v4479 = vld [vmem:[%s18 + $0x18] sm:$0xff]
        %v4480 = vld [vmem:[%s18 + $0x20] sm:$0xff]
        %v4481 = vld [vmem:[%s18 + $0x28] sm:$0xff]
        %v4482 = vld [vmem:[%s18 + $0x30] sm:$0xff]
        %v4483 = vld [vmem:[%s18 + $0x38] sm:$0xff]
        %v4484 = vld [vmem:[%s18 + $0x40] sm:$0xff]
        %v4485 = vld [vmem:[%s18 + $0x48] sm:$0xff]
        %v4486 = vld [vmem:[%s18 + $0x50] sm:$0xff]
        %v4487 = vld [vmem:[%s18 + $0x58] sm:$0xff]
        %v4488 = vld [vmem:[%s18 + $0x60] sm:$0xff]
        %v4489 = vld [vmem:[%s18 + $0x68] sm:$0xff]
        %v4490 = vld [vmem:[%s18 + $0x70] sm:$0xff]
        %v4491 = vld [vmem:[%s18 + $0x78] sm:$0xff]
        %4493 = vset.pattern.permute.xlu0 0
        %4494 = vperm.xlu0 %4493, %v4476
        %v4495 = vpop.permute.xlu0 %4494
        %4498 = vset.pattern.permute.xlu0 0
        %4499 = vperm.xlu0 %4498, %v4477
        %v4500 = vpop.permute.xlu0 %4499
        %4503 = vset.pattern.permute.xlu0 0
        %4504 = vperm.xlu0 %4503, %v4478
        %v4505 = vpop.permute.xlu0 %4504
        %4508 = vset.pattern.permute.xlu0 0
        %4509 = vperm.xlu0 %4508, %v4479
        %v4510 = vpop.permute.xlu0 %4509
        %4513 = vset.pattern.permute.xlu0 0
        %4514 = vperm.xlu0 %4513, %v4480
        %v4515 = vpop.permute.xlu0 %4514
        %4518 = vset.pattern.permute.xlu0 0
        %4519 = vperm.xlu0 %4518, %v4481
        %v4520 = vpop.permute.xlu0 %4519
        %4523 = vset.pattern.permute.xlu0 0
        %4524 = vperm.xlu0 %4523, %v4482
        %v4525 = vpop.permute.xlu0 %4524
        %4528 = vset.pattern.permute.xlu0 0
        %4529 = vperm.xlu0 %4528, %v4483
        %v4530 = vpop.permute.xlu0 %4529
        %4533 = vset.pattern.permute.xlu0 0
        %4534 = vperm.xlu0 %4533, %v4484
        %v4535 = vpop.permute.xlu0 %4534
        %4538 = vset.pattern.permute.xlu0 0
        %4539 = vperm.xlu0 %4538, %v4485
        %v4540 = vpop.permute.xlu0 %4539
        %4543 = vset.pattern.permute.xlu0 0
        %4544 = vperm.xlu0 %4543, %v4486
        %v4545 = vpop.permute.xlu0 %4544
        %4548 = vset.pattern.permute.xlu0 0
        %4549 = vperm.xlu0 %4548, %v4487
        %v4550 = vpop.permute.xlu0 %4549
        %4553 = vset.pattern.permute.xlu0 0
        %4554 = vperm.xlu0 %4553, %v4488
        %v4555 = vpop.permute.xlu0 %4554
        %4558 = vset.pattern.permute.xlu0 0
        %4559 = vperm.xlu0 %4558, %v4489
        %v4560 = vpop.permute.xlu0 %4559
        %4563 = vset.pattern.permute.xlu0 0
        %4564 = vperm.xlu0 %4563, %v4490
        %v4565 = vpop.permute.xlu0 %4564
        %4568 = vset.pattern.permute.xlu0 0
        %4569 = vperm.xlu0 %4568, %v4491
        %v4570 = vpop.permute.xlu0 %4569
        %v4573 = vsel %vm1348, %v4460, 0
        %v4576 = vsel %vm1348, %v4461, 0
        %v4579 = vsel %vm1348, %v4462, 0
        %v4582 = vsel %vm1348, %v4463, 0
        %v4585 = vsel %vm1348, %v4464, 0
        %v4588 = vsel %vm1348, %v4465, 0
        %v4591 = vsel %vm1348, %v4466, 0
        %v4594 = vsel %vm1348, %v4467, 0
        %v4597 = vsel %vm1348, %v4468, 0
        %v4600 = vsel %vm1348, %v4469, 0
        %v4603 = vsel %vm1348, %v4470, 0
        %v4606 = vsel %vm1348, %v4471, 0
        %v4609 = vsel %vm1348, %v4472, 0
        %v4612 = vsel %vm1348, %v4473, 0
        %v4615 = vsel %vm1348, %v4474, 0
        %v4618 = vsel %vm1348, %v4475, 0
        %4620 = vmatprep.subr.mxu0 0.0
        %4621 = vmatpush1.msra.mxu0 %v2584
        %4622 = vmatprep.subr.mxu0 0.0
        %4623 = vmatpush1.msra.mxu0 %v2585
        %4624 = vmatprep.subr.mxu0 0.0
        %4625 = vmatpush1.msra.mxu0 0.0
        %4626 = vmatprep.subr.mxu0 0.0
        %4627 = vmatpush1.msra.mxu0 0.0
        %4628 = vmatprep.subr.mxu0 0.0
        %4629 = vmatpush1.msra.mxu0 0.0
        %4630 = vmatprep.subr.mxu0 0.0
        %4631 = vmatpush1.msra.mxu0 0.0
        %4632 = vmatprep.subr.mxu0 0.0
        %4633 = vmatpush1.msra.mxu0 0.0
        %4634 = vmatprep.subr.mxu0 0.0
        %4635 = vmatpush1.msra.mxu0 0.0
        %4636 = vmatprep.subr.mxu0 0.0
        %4637 = vmatpush1.msra.mxu0 0.0
        %4638 = vmatprep.subr.mxu0 0.0
        %4639 = vmatpush1.msra.mxu0 0.0
        %4640 = vmatprep.subr.mxu0 0.0
        %4641 = vmatpush1.msra.mxu0 0.0
        %4642 = vmatprep.subr.mxu0 0.0
        %4643 = vmatpush1.msra.mxu0 0.0
        %4644 = vmatprep.subr.mxu0 0.0
        %4645 = vmatpush1.msra.mxu0 0.0
        %4646 = vmatprep.subr.mxu0 0.0
        %4647 = vmatpush1.msra.mxu0 0.0
        %4648 = vmatprep.subr.mxu0 0.0
        %4649 = vmatpush1.msra.mxu0 0.0
        %4650 = vmatprep.subr.mxu0 0.0
        %4651 = vmatpush1.msra.mxu0 0.0
        %4652 = vmatprep.subr.mxu0 0.0
        %4653 = vmatpush1.msra.mxu0 0.0
        %4654 = vmatprep.subr.mxu0 0.0
        %4655 = vmatpush1.msra.mxu0 0.0
        %4656 = vmatprep.subr.mxu0 0.0
        %4657 = vmatpush1.msra.mxu0 0.0
        %4658 = vmatprep.subr.mxu0 0.0
        %4659 = vmatpush1.msra.mxu0 0.0
        %4660 = vmatprep.subr.mxu0 0.0
        %4661 = vmatpush1.msra.mxu0 0.0
        %4662 = vmatprep.subr.mxu0 0.0
        %4663 = vmatpush1.msra.mxu0 0.0
        %4664 = vmatprep.subr.mxu0 0.0
        %4665 = vmatpush1.msra.mxu0 0.0
        %4666 = vmatprep.subr.mxu0 0.0
        %4667 = vmatpush1.msra.mxu0 0.0
        %4668 = vmatprep.subr.mxu0 0.0
        %4669 = vmatpush1.msra.mxu0 0.0
        %4670 = vmatprep.subr.mxu0 0.0
        %4671 = vmatpush1.msra.mxu0 0.0
        %4672 = vmatprep.subr.mxu0 0.0
        %4673 = vmatpush1.msra.mxu0 0.0
        %4674 = vmatprep.subr.mxu0 0.0
        %4675 = vmatpush1.msra.mxu0 0.0
        %4676 = vmatprep.subr.mxu0 0.0
        %4677 = vmatpush1.msra.mxu0 0.0
        %4678 = vmatprep.subr.mxu0 0.0
        %4679 = vmatpush1.msra.mxu0 0.0
        %4680 = vmatprep.subr.mxu0 0.0
        %4681 = vmatpush1.msra.mxu0 0.0
        %4682 = vmatprep.subr.mxu0 0.0
        %4683 = vmatpush1.msra.mxu0 0.0
        %4684 = vmatprep.mubr.f32.mxu0 0.0
        %4685 = vmatmul.mubr.f32.gmra.mrb[0].mxu0 %v4573
        %v4686 = vpop.f32.mrb[0].mxu0
        %v4687 = vadd.f32 %v4495, %v4686
        %v4688 = vpop.f32.mrb[0].mxu0
        %4689 = vmatprep.mubr.f32.mxu0 0.0
        %4690 = vmatmul.mubr.f32.gmra.mrb[0].mxu0 %v4576
        %v4691 = vpop.f32.mrb[0].mxu0
        %v4692 = vadd.f32 %v4500, %v4691
        %v4693 = vpop.f32.mrb[0].mxu0
        %4694 = vmatprep.mubr.f32.mxu0 0.0
        %4695 = vmatmul.mubr.f32.gmra.mrb[0].mxu0 %v4579
        %v4696 = vpop.f32.mrb[0].mxu0
        %v4697 = vadd.f32 %v4505, %v4696
        %v4698 = vpop.f32.mrb[0].mxu0
        %4699 = vmatprep.mubr.f32.mxu0 0.0
        %4700 = vmatmul.mubr.f32.gmra.mrb[0].mxu0 %v4582
        %v4701 = vpop.f32.mrb[0].mxu0
        %v4702 = vadd.f32 %v4510, %v4701
        %v4703 = vpop.f32.mrb[0].mxu0
        %4704 = vmatprep.mubr.f32.mxu0 0.0
        %4705 = vmatmul.mubr.f32.gmra.mrb[0].mxu0 %v4585
        %v4706 = vpop.f32.mrb[0].mxu0
        %v4707 = vadd.f32 %v4515, %v4706
        %v4708 = vpop.f32.mrb[0].mxu0
        %4709 = vmatprep.mubr.f32.mxu0 0.0
        %4710 = vmatmul.mubr.f32.gmra.mrb[0].mxu0 %v4588
        %v4711 = vpop.f32.mrb[0].mxu0
        %v4712 = vadd.f32 %v4520, %v4711
        %v4713 = vpop.f32.mrb[0].mxu0
        %4714 = vmatprep.mubr.f32.mxu0 0.0
        %4715 = vmatmul.mubr.f32.gmra.mrb[0].mxu0 %v4591
        %v4716 = vpop.f32.mrb[0].mxu0
        %v4717 = vadd.f32 %v4525, %v4716
        %v4718 = vpop.f32.mrb[0].mxu0
        %4719 = vmatprep.mubr.f32.mxu0 0.0
        %4720 = vmatmul.mubr.f32.gmra.mrb[0].mxu0 %v4594
        %v4721 = vpop.f32.mrb[0].mxu0
        %v4722 = vadd.f32 %v4530, %v4721
        %v4723 = vpop.f32.mrb[0].mxu0
        %4724 = vmatprep.mubr.f32.mxu0 0.0
        %4725 = vmatmul.mubr.f32.gmra.mrb[0].mxu0 %v4597
        %v4726 = vpop.f32.mrb[0].mxu0
        %v4727 = vadd.f32 %v4535, %v4726
        %v4728 = vpop.f32.mrb[0].mxu0
        %4729 = vmatprep.mubr.f32.mxu0 0.0
        %4730 = vmatmul.mubr.f32.gmra.mrb[0].mxu0 %v4600
        %v4731 = vpop.f32.mrb[0].mxu0
        %v4732 = vadd.f32 %v4540, %v4731
        %v4733 = vpop.f32.mrb[0].mxu0
        %4734 = vmatprep.mubr.f32.mxu0 0.0
        %4735 = vmatmul.mubr.f32.gmra.mrb[0].mxu0 %v4603
        %v4736 = vpop.f32.mrb[0].mxu0
        %v4737 = vadd.f32 %v4545, %v4736
        %v4738 = vpop.f32.mrb[0].mxu0
        %4739 = vmatprep.mubr.f32.mxu0 0.0
        %4740 = vmatmul.mubr.f32.gmra.mrb[0].mxu0 %v4606
        %v4741 = vpop.f32.mrb[0].mxu0
        %v4742 = vadd.f32 %v4550, %v4741
        %v4743 = vpop.f32.mrb[0].mxu0
        %4744 = vmatprep.mubr.f32.mxu0 0.0
        %4745 = vmatmul.mubr.f32.gmra.mrb[0].mxu0 %v4609
        %v4746 = vpop.f32.mrb[0].mxu0
        %v4747 = vadd.f32 %v4555, %v4746
        %v4748 = vpop.f32.mrb[0].mxu0
        %4749 = vmatprep.mubr.f32.mxu0 0.0
        %4750 = vmatmul.mubr.f32.gmra.mrb[0].mxu0 %v4612
        %v4751 = vpop.f32.mrb[0].mxu0
        %v4752 = vadd.f32 %v4560, %v4751
        %v4753 = vpop.f32.mrb[0].mxu0
        %4754 = vmatprep.mubr.f32.mxu0 0.0
        %4755 = vmatmul.mubr.f32.gmra.mrb[0].mxu0 %v4615
        %v4756 = vpop.f32.mrb[0].mxu0
        %v4757 = vadd.f32 %v4565, %v4756
        %v4758 = vpop.f32.mrb[0].mxu0
        %4759 = vmatprep.mubr.f32.mxu0 0.0
        %4760 = vmatmul.mubr.f32.gmra.mrb[0].mxu0 %v4618
        %v4761 = vpop.f32.mrb[0].mxu0
        %v4762 = vadd.f32 %v4570, %v4761
        %v4763 = vpop.f32.mrb[0].mxu0
        %4764 = vdwg.mxu0
        %v4765 = vadd.f32 %v4444, %v4687
        %v4766 = vadd.f32 %v4445, %v4692
        %v4767 = vadd.f32 %v4446, %v4697
        %v4768 = vadd.f32 %v4447, %v4702
        %v4769 = vadd.f32 %v4448, %v4707
        %v4770 = vadd.f32 %v4449, %v4712
        %v4771 = vadd.f32 %v4450, %v4717
        %v4772 = vadd.f32 %v4451, %v4722
        %v4773 = vadd.f32 %v4452, %v4727
        %v4774 = vadd.f32 %v4453, %v4732
        %v4775 = vadd.f32 %v4454, %v4737
        %v4776 = vadd.f32 %v4455, %v4742
        %v4777 = vadd.f32 %v4456, %v4747
        %v4778 = vadd.f32 %v4457, %v4752
        %v4779 = vadd.f32 %v4458, %v4757
        %v4780 = vadd.f32 %v4459, %v4762
        %v4781 = vmax.f32 %v4765, 0.0
        %v4782 = vmax.f32 %v4766, 0.0
        %v4783 = vmax.f32 %v4767, 0.0
        %v4784 = vmax.f32 %v4768, 0.0
        %v4785 = vmax.f32 %v4769, 0.0
        %v4786 = vmax.f32 %v4770, 0.0
        %v4787 = vmax.f32 %v4771, 0.0
        %v4788 = vmax.f32 %v4772, 0.0
        %v4789 = vmax.f32 %v4773, 0.0
        %v4790 = vmax.f32 %v4774, 0.0
        %v4791 = vmax.f32 %v4775, 0.0
        %v4792 = vmax.f32 %v4776, 0.0
        %v4793 = vmax.f32 %v4777, 0.0
        %v4794 = vmax.f32 %v4778, 0.0
        %v4795 = vmax.f32 %v4779, 0.0
        %v4796 = vmax.f32 %v4780, 0.0
        %4797 = vst [vmem:[%s593] sm:$0xff] %v4781
        %4798 = vst [vmem:[%s593 + $0x8] sm:$0xff] %v4782
        %4799 = vst [vmem:[%s593 + $0x10] sm:$0xff] %v4783
        %4800 = vst [vmem:[%s593 + $0x18] sm:$0xff] %v4784
        %4801 = vst [vmem:[%s593 + $0x20] sm:$0xff] %v4785
        %4802 = vst [vmem:[%s593 + $0x28] sm:$0xff] %v4786
        %4803 = vst [vmem:[%s593 + $0x30] sm:$0xff] %v4787
        %4804 = vst [vmem:[%s593 + $0x38] sm:$0xff] %v4788
        %4805 = vst [vmem:[%s593 + $0x40] sm:$0xff] %v4789
        %4806 = vst [vmem:[%s593 + $0x48] sm:$0xff] %v4790
        %4807 = vst [vmem:[%s593 + $0x50] sm:$0xff] %v4791
        %4808 = vst [vmem:[%s593 + $0x58] sm:$0xff] %v4792
        %4809 = vst [vmem:[%s593 + $0x60] sm:$0xff] %v4793
        %4810 = vst [vmem:[%s593 + $0x68] sm:$0xff] %v4794
        %4811 = vst [vmem:[%s593 + $0x70] sm:$0xff] %v4795
        %4812 = vst [vmem:[%s593 + $0x78] sm:$0xff] %v4796
        %s4813 = sand.u32 %s445, 1
        %s4814 = scalar_lea.sflag [#allocation3], %s4813
        %s4815 = sand.u32 %s445, 1
        %s4816 = smul.addr %s4815, 128
        %s4817 = scalar_lea.vmem [#allocation2], %s4816
        // Predicated region
        $region97: #{tpu_custom_call.1} parent=95 // pred_check
          %p4818 = pneg %p455
        $region98: #{tpu_custom_call.1} parent=95 // pred_check_branch
          %4820 = sbr.rel (%p4818) target = $region100
        $region99: #{tpu_custom_call.1} parent=95 // pred_region
          %s4822 = ssub.s32 2048, 2048
          %4823 = vsyncadd %s4814, %s4822
          %s4824 = smul.addr %s33, 16
          %s4825 = smul.addr %s4824, 128
          %s4826 = scalar_lea.hbm %s19, %s4825
          %s4827 = sshll.u32 %s4817, 4
          %s4828 = int_to_ptr.vmem [resolvable:$true] %s4827
          %4833 = dma.vmem_to_hbm [thread:$0]  %s4828, 2048, %s4826, %s4814, 128, 128, 8
        $region100: #{tpu_custom_call.1} parent=95 // pred_fallthru
          _
      $region96: #{tpu_custom_call.1} parent=5 // pred_fallthru
        _
      %p4834 = scmp.le.s32.totalorder 2, %s28
      // Predicated region
      $region101: #{tpu_custom_call.1} parent=5 // pred_check
        %p4835 = pneg %p4834
      $region102: #{tpu_custom_call.1} parent=5 // pred_check_branch
        %4837 = sbr.rel (%p4835) target = $region104
      $region103: #{tpu_custom_call.1} parent=5 // pred_region
        %s4838 = ssub.s32 %s28, 2
        // Predicated region
        $region105: #{tpu_custom_call.1} parent=103 // pred_check
          %p4839 = pneg %p461
        $region106: #{tpu_custom_call.1} parent=103 // pred_check_branch
          %4841 = sbr.rel (%p4839) target = $region108
        $region107: #{tpu_custom_call.1} parent=103 // pred_region
          %s4842 = sand.u32 %s446, 1
          %s4843 = scalar_lea.sflag [#allocation3], %s4842
          %s4844 = sand.u32 %s446, 1
          %s4845 = smul.addr %s4844, 128
          %s4846 = scalar_lea.vmem [#allocation2], %s4845
          %4847 = dma.done %s4843, 2048
        $region108: #{tpu_custom_call.1} parent=103 // pred_fallthru
          _
      $region104: #{tpu_custom_call.1} parent=5 // pred_fallthru
        _
    $region6: #{tpu_custom_call.1} parent=1 // loop_footer
      %s32 = sadd.s32 1, %s28
    $region7: #{tpu_custom_call.1} parent=1 // loop_footer_branch
      %27 = sbr.rel target = $region3
    $region8: #{tpu_custom_call.1} parent=1 // loop_exit
      _
    %4848 = vsyncpa [#allocation3], 1
    %s4849 = scalar_lea.sflag [#allocation3], 1
    %4850 = vsyncpa %s4849, 1

</llo_original>
